<compile_context>
chip_gen: v5e
topology: v5e:2x2
jax: 0.10.0
libtpu: 0.0.40
codegen_flags: <defaults>
</compile_context>

<pallas_src>
import numpy as np
import jax
import jax.numpy as jnp
from jax import lax
from jax.experimental import pallas as pl
from jax.experimental.pallas import tpu as pltpu

F32_EPS = float(np.finfo(np.float32).eps)


def make_rudy_kernel(num_bins_x, num_bins_y, xl, yl, bin_size_x, bin_size_y,
                     tile_nets, h_scale, v_scale, fuse_epilogue, use_bf16):
    """One net partition: accumulate [horizontal ; vertical] demand into a
    persistent (2*NBX, NBY) VMEM accumulator; optionally fuse the final
    scale/abs/max epilogue (single-partition / single-TC case)."""
    nbx, nby = num_bins_x, num_bins_y

    def kernel(nets_ref, out_ref, acc_ref, bxl_ref, bxh_ref, byl_ref, byh_ref):
        c = pl.program_id(1)   # net-chunk axis (innermost, "arbitrary")

        @pl.when(c == 0)
        def _init():
            # Loop-invariant bin lower AND upper edges, broadcast over the net
            # lane axis, computed once per partition/core into VMEM scratch.
            ix = lax.broadcasted_iota(jnp.int32, (nbx, tile_nets), 0)
            iy = lax.broadcasted_iota(jnp.int32, (nby, tile_nets), 0)
            bxl = xl + bin_size_x * ix.astype(jnp.float32)
            byl = yl + bin_size_y * iy.astype(jnp.float32)
            bxl_ref[...] = bxl
            bxh_ref[...] = bxl + bin_size_x
            byl_ref[...] = byl
            byh_ref[...] = byl + bin_size_y
            acc_ref[...] = jnp.zeros_like(acc_ref)

        # nets block: (8, TN), rows = [x_min, x_max, y_min, y_max, w_h, w_v, 0, 0]
        # Each field is consumed exactly once, so the implicit sublane
        # broadcast inside the min/max/mul below happens once per field.
        x_min = nets_ref[0:1, :]   # (1, TN)
        x_max = nets_ref[1:2, :]
        y_min = nets_ref[2:3, :]
        y_max = nets_ref[3:4, :]
        w_h   = nets_ref[4:5, :]   # wt / (y_max - y_min + eps), precomputed on host
        w_v   = nets_ref[5:6, :]   # wt / (x_max - x_min + eps), precomputed on host

        # Per-net overlap with every bin column / row (bins on sublanes,
        # nets on lanes); upper edges come straight from scratch (no adds).
        ov_x = jnp.maximum(jnp.minimum(x_max, bxh_ref[...]) -
                           jnp.maximum(x_min, bxl_ref[...]), 0.0)   # (NBX, TN)
        ov_y = jnp.maximum(jnp.minimum(y_max, byh_ref[...]) -
                           jnp.maximum(y_min, byl_ref[...]), 0.0)   # (NBY, TN)

        # Fold per-net weights into the narrower ov_x operand (NBX <= NBY).
        lhs_h = ov_x * w_h
        lhs_v = ov_x * w_v
        rhs = ov_y
        if use_bf16:
            lhs_h = lhs_h.astype(jnp.bfloat16)
            lhs_v = lhs_v.astype(jnp.bfloat16)
            rhs = rhs.astype(jnp.bfloat16)

        # Two MXU contractions over the net (lane) dim (A.B^T form, same as the
        # flash-attention q.k^T pattern; no explicit transpose materialized),
        # f32 accumulation into the two halves of the persistent accumulator.
        dn = (((1,), (1,)), ((), ()))
        acc_ref[0:nbx, :] += lax.dot_general(
            lhs_h, rhs, dn, preferred_element_type=jnp.float32)
        acc_ref[nbx:2 * nbx, :] += lax.dot_general(
            lhs_v, rhs, dn, preferred_element_type=jnp.float32)

        @pl.when(c == pl.num_programs(1) - 1)
        def _finalize():
            if fuse_epilogue:
                # Single-partition path: finish scale/abs/max in-kernel so only
                # the final (NBX, NBY) map is ever written to HBM.
                h = jnp.abs(acc_ref[0:nbx, :] * h_scale)
                v = jnp.abs(acc_ref[nbx:2 * nbx, :] * v_scale)
                out_ref[...] = jnp.maximum(h, v)
            else:
                # Multi-partition (v7x megacore) path: emit raw partial [h ; v].
                out_ref[0] = acc_ref[...]

    return kernel


def rudy_forward(pin_pos, netpin_start, flat_netpin, net_weights, seg_ids, *,
                 xl, xh, yl, yh, num_bins_x, num_bins_y,
                 unit_horizontal_capacity, unit_vertical_capacity,
                 tile_nets=1024, num_partials=1, use_bf16=False,
                 vmem_budget_bytes=24 * 1024 * 1024):
    """Pallas implementation of Rudy.forward. Returns route_utilization_map
    of shape (num_bins_x, num_bins_y), dtype float32.

    num_partials: 1 on single-TensorCore parts (v5e/v6e); 2 on v7x megacore.
    tile_nets: 512-1024 is a good default; automatically shrunk if the edge
    scratch would blow the VMEM budget (relevant on v7x's 64 MiB VMEM with
    very large bin grids)."""
    num_nets = int(netpin_start.shape[0] - 1)
    if num_nets <= 0:
        return jnp.zeros((num_bins_x, num_bins_y), jnp.float32)

    num_phys_pins = pin_pos.shape[0] // 2
    bin_size_x = (xh - xl) / num_bins_x
    bin_size_y = (yh - yl) / num_bins_y
    bin_area = bin_size_x * bin_size_y
    h_scale = 1.0 / (bin_area * unit_horizontal_capacity)
    v_scale = 1.0 / (bin_area * unit_vertical_capacity)

    # ---- tile_nets sizing vs. VMEM budget (edge scratch scales with bins) ----
    tile_nets = max(128, (int(tile_nets) // 128) * 128)

    def _vmem_est(tn):
        edges = (2 * num_bins_x + 2 * num_bins_y) * tn * 4          # bxl/bxh/byl/byh
        acc = 2 * num_bins_x * num_bins_y * 4                       # accumulator
        nets_blk = 2 * 8 * tn * 4                                   # double-buffered input
        out_blk = 2 * 2 * num_bins_x * num_bins_y * 4               # output block
        return edges + acc + nets_blk + out_blk

    while tile_nets > 128 and _vmem_est(tile_nets) > vmem_budget_bytes:
        tile_nets //= 2

    # ---- glue: per-net bounding boxes (segmented min/max over flat_netpin) ----
    px = pin_pos[:num_phys_pins]
    py = pin_pos[num_phys_pins:]
    pin_x = px[flat_netpin]
    pin_y = py[flat_netpin]
    x_min = jax.ops.segment_min(pin_x, seg_ids, num_segments=num_nets,
                                indices_are_sorted=True)
    x_max = jax.ops.segment_max(pin_x, seg_ids, num_segments=num_nets,
                                indices_are_sorted=True)
    y_min = jax.ops.segment_min(pin_y, seg_ids, num_segments=num_nets,
                                indices_are_sorted=True)
    y_max = jax.ops.segment_max(pin_y, seg_ids, num_segments=num_nets,
                                indices_are_sorted=True)

    wt = net_weights.astype(jnp.float32)
    w_h = wt / (y_max - y_min + F32_EPS)   # horizontal demand weight (per net)
    w_v = wt / (x_max - x_min + F32_EPS)   # vertical demand weight   (per net)

    # Lane-dense nets table: (8, num_nets_pad); padded nets have zero bbox and
    # zero weights so they contribute nothing.
    chunks_per_partial = int(pl.cdiv(num_nets, num_partials * tile_nets))
    num_nets_pad = num_partials * chunks_per_partial * tile_nets
    fields = jnp.stack([x_min, x_max, y_min, y_max, w_h, w_v],
                       axis=0).astype(jnp.float32)                   # (6, num_nets)
    nets = jnp.zeros((8, num_nets_pad), dtype=jnp.float32)
    nets = nets.at[:6, :num_nets].set(fields)

    fuse_epilogue = (num_partials == 1)
    kernel = make_rudy_kernel(num_bins_x, num_bins_y, xl, yl, bin_size_x,
                              bin_size_y, tile_nets, h_scale, v_scale,
                              fuse_epilogue, use_bf16)

    if fuse_epilogue:
        out_shape = jax.ShapeDtypeStruct((num_bins_x, num_bins_y), jnp.float32)
        out_specs = pl.BlockSpec((num_bins_x, num_bins_y), lambda p, c: (0, 0))
    else:
        out_shape = jax.ShapeDtypeStruct(
            (num_partials, 2 * num_bins_x, num_bins_y), jnp.float32)
        out_specs = pl.BlockSpec((1, 2 * num_bins_x, num_bins_y),
                                 lambda p, c: (p, 0, 0))

    flops = 2 * num_nets_pad * (2 * num_bins_x) * num_bins_y
    bytes_accessed = (nets.size * 4
                      + num_partials * 2 * num_bins_x * num_bins_y * 4)

    result = pl.pallas_call(
        kernel,
        out_shape=out_shape,
        grid_spec=pltpu.PrefetchScalarGridSpec(
            num_scalar_prefetch=0,
            grid=(num_partials, chunks_per_partial),
            in_specs=[pl.BlockSpec(
                (8, tile_nets),
                lambda p, c: (0, p * chunks_per_partial + c))],
            out_specs=out_specs,
            scratch_shapes=[
                pltpu.VMEM((2 * num_bins_x, num_bins_y), jnp.float32),  # accumulator
                pltpu.VMEM((num_bins_x, tile_nets), jnp.float32),       # bin x lower edges
                pltpu.VMEM((num_bins_x, tile_nets), jnp.float32),       # bin x upper edges
                pltpu.VMEM((num_bins_y, tile_nets), jnp.float32),       # bin y lower edges
                pltpu.VMEM((num_bins_y, tile_nets), jnp.float32),       # bin y upper edges
            ],
        ),
        compiler_params=pltpu.CompilerParams(
            dimension_semantics=("parallel", "arbitrary"),
            vmem_limit_bytes=32 * 1024 * 1024),
        cost_estimate=pl.CostEstimate(flops=flops, transcendentals=0,
                                      bytes_accessed=bytes_accessed),
    )(nets)

    if fuse_epilogue:
        return result

    # Tiny cross-partial epilogue (v7x megacore path): XLA fuses this 64-256 KiB
    # elementwise reduce; not worth a second Pallas launch.
    hv = jnp.sum(result, axis=0)
    h = jnp.abs(hv[:num_bins_x] * h_scale)
    v = jnp.abs(hv[num_bins_x:] * v_scale)
    return jnp.maximum(h, v)


def rudy_reference_numpy(x_min, x_max, y_min, y_max, wt, *, xl, yl,
                         num_bins_x, num_bins_y, bin_size_x, bin_size_y,
                         unit_horizontal_capacity, unit_vertical_capacity):
    """Dense numpy reference matching the C++/CUDA scatter semantics."""
    ix = np.arange(num_bins_x, dtype=np.float64)
    iy = np.arange(num_bins_y, dtype=np.float64)
    bin_xl = xl + ix * bin_size_x
    bin_yl = yl + iy * bin_size_y
    ov_x = np.maximum(np.minimum(x_max[:, None], bin_xl[None, :] + bin_size_x)
                      - np.maximum(x_min[:, None], bin_xl[None, :]), 0.0)
    ov_y = np.maximum(np.minimum(y_max[:, None], bin_yl[None, :] + bin_size_y)
                      - np.maximum(y_min[:, None], bin_yl[None, :]), 0.0)
    w_h = wt / (y_max - y_min + F32_EPS)
    w_v = wt / (x_max - x_min + F32_EPS)
    h_map = np.einsum('nx,ny->xy', ov_x, ov_y * w_h[:, None])
    v_map = np.einsum('nx,ny->xy', ov_x, ov_y * w_v[:, None])
    bin_area = bin_size_x * bin_size_y
    h_map = np.abs(h_map / (bin_area * unit_horizontal_capacity))
    v_map = np.abs(v_map / (bin_area * unit_vertical_capacity))
    return np.maximum(h_map, v_map)


if __name__ == "__main__":
    # ---- deterministic synthetic problem ----
    num_bins_x, num_bins_y = 64, 128
    xl, xh = 0.0, 64.0
    yl, yh = 0.0, 128.0
    unit_horizontal_capacity = 1.5625
    unit_vertical_capacity = 1.45
    num_nets = 200

    # Net -> pin structure (each pin belongs to exactly one net here).
    degrees = 2 + (np.arange(num_nets) % 5)                     # degrees in [2, 6]
    netpin_start_np = np.concatenate([[0], np.cumsum(degrees)]).astype(np.int32)
    num_pins = int(netpin_start_np[-1])
    flat_netpin_np = np.arange(num_pins, dtype=np.int32)
    seg_ids_np = np.repeat(np.arange(num_nets, dtype=np.int32), degrees)

    key = jax.random.PRNGKey(0)
    kx, ky, kw = jax.random.split(key, 3)
    pin_x = jax.random.uniform(kx, (num_pins,), jnp.float32, minval=xl, maxval=xh)
    pin_y = jax.random.uniform(ky, (num_pins,), jnp.float32, minval=yl, maxval=yh)
    pin_pos = jnp.concatenate([pin_x, pin_y])                    # [x..., y...]
    net_weights = jax.random.uniform(kw, (num_nets,), jnp.float32,
                                     minval=0.5, maxval=1.5)

    netpin_start = jnp.asarray(netpin_start_np)
    flat_netpin = jnp.asarray(flat_netpin_np)
    seg_ids = jnp.asarray(seg_ids_np)

    # ---- dense numpy reference ----
    px_np = np.asarray(pin_x, dtype=np.float64)
    py_np = np.asarray(pin_y, dtype=np.float64)
    xmin_np = np.array([px_np[netpin_start_np[i]:netpin_start_np[i + 1]].min()
                        for i in range(num_nets)])
    xmax_np = np.array([px_np[netpin_start_np[i]:netpin_start_np[i + 1]].max()
                        for i in range(num_nets)])
    ymin_np = np.array([py_np[netpin_start_np[i]:netpin_start_np[i + 1]].min()
                        for i in range(num_nets)])
    ymax_np = np.array([py_np[netpin_start_np[i]:netpin_start_np[i + 1]].max()
                        for i in range(num_nets)])
    ref = rudy_reference_numpy(
        xmin_np, xmax_np, ymin_np, ymax_np, np.asarray(net_weights, np.float64),
        xl=xl, yl=yl, num_bins_x=num_bins_x, num_bins_y=num_bins_y,
        bin_size_x=(xh - xl) / num_bins_x, bin_size_y=(yh - yl) / num_bins_y,
        unit_horizontal_capacity=unit_horizontal_capacity,
        unit_vertical_capacity=unit_vertical_capacity)

    # Single-partition (v5e/v6e default) path: fused in-kernel epilogue.
    route_map_1 = rudy_forward(
        pin_pos, netpin_start, flat_netpin, net_weights, seg_ids,
        xl=xl, xh=xh, yl=yl, yh=yh,
        num_bins_x=num_bins_x, num_bins_y=num_bins_y,
        unit_horizontal_capacity=unit_horizontal_capacity,
        unit_vertical_capacity=unit_vertical_capacity,
        tile_nets=1024, num_partials=1, use_bf16=False)
    route_map_1 = jax.block_until_ready(route_map_1)
    np.testing.assert_allclose(np.asarray(route_map_1), ref, rtol=5e-3, atol=5e-3)

    # Two-partition (v7x megacore) path: parallel grid axis + jnp epilogue.
    route_map_2 = rudy_forward(
        pin_pos, netpin_start, flat_netpin, net_weights, seg_ids,
        xl=xl, xh=xh, yl=yl, yh=yh,
        num_bins_x=num_bins_x, num_bins_y=num_bins_y,
        unit_horizontal_capacity=unit_horizontal_capacity,
        unit_vertical_capacity=unit_vertical_capacity,
        tile_nets=512, num_partials=2, use_bf16=False)
    route_map_2 = jax.block_until_ready(route_map_2)
    np.testing.assert_allclose(np.asarray(route_map_2), ref, rtol=5e-3, atol=5e-3)

    print("KERNEL_OK")
</pallas_src>

<mosaic_0001>
module attributes {stable_mosaic.version = 11 : i64} {
  func.func @kernel(%arg0: i32, %arg1: i32, %arg2: memref<8x1024xf32, #tpu.memory_space<vmem>>, %arg3: memref<64x128xf32, #tpu.memory_space<vmem>>, %arg4: memref<128x128xf32, #tpu.memory_space<vmem>>, %arg5: memref<64x1024xf32, #tpu.memory_space<vmem>>, %arg6: memref<64x1024xf32, #tpu.memory_space<vmem>>, %arg7: memref<128x1024xf32, #tpu.memory_space<vmem>>, %arg8: memref<128x1024xf32, #tpu.memory_space<vmem>>) attributes {dimension_semantics = [#tpu.dimension_semantics<parallel>, #tpu.dimension_semantics<arbitrary>], iteration_bounds = array<i64: 1, 1>, scalar_prefetch = 0 : i64, scratch_operands = 5 : i64, tpu.core_type = #tpu.core_type<tc>, window_params = [{transform_indices = @transform_0, window_bounds = array<i64: 8, 1024>}, {pipeline_mode = #tpu.pipeline_mode<synchronous>, transform_indices = @transform_1, window_bounds = array<i64: 64, 128>}]} {
    %c0_i32 = arith.constant 0 : i32
    %0 = arith.cmpi eq, %arg1, %c0_i32 : i32
    %1 = arith.extui %0 : i1 to i32
    %c0_i32_0 = arith.constant 0 : i32
    %2 = arith.cmpi ne, %1, %c0_i32_0 : i32
    scf.if %2 {
      %42 = tpu.iota {dimensions = array<i32: 0>} : vector<64x1024xi32>
      %43 = tpu.iota {dimensions = array<i32: 0>} : vector<128x1024xi32>
      %44 = arith.sitofp %42 : vector<64x1024xi32> to vector<64x1024xf32>
      %cst_27 = arith.constant 1.000000e+00 : f32
      %45 = vector.broadcast %cst_27 : f32 to vector<64x1024xf32>
      %46 = arith.mulf %45, %44 : vector<64x1024xf32>
      %cst_28 = arith.constant 0.000000e+00 : f32
      %47 = vector.broadcast %cst_28 : f32 to vector<64x1024xf32>
      %48 = arith.addf %47, %46 : vector<64x1024xf32>
      %49 = arith.sitofp %43 : vector<128x1024xi32> to vector<128x1024xf32>
      %cst_29 = arith.constant 1.000000e+00 : f32
      %50 = vector.broadcast %cst_29 : f32 to vector<128x1024xf32>
      %51 = arith.mulf %50, %49 : vector<128x1024xf32>
      %cst_30 = arith.constant 0.000000e+00 : f32
      %52 = vector.broadcast %cst_30 : f32 to vector<128x1024xf32>
      %53 = arith.addf %52, %51 : vector<128x1024xf32>
      %c0_31 = arith.constant 0 : index
      %c0_32 = arith.constant 0 : index
      %54 = vector.load %arg5[%c0_31, %c0_32] : memref<64x1024xf32, #tpu.memory_space<vmem>>, vector<64x1024xf32>
      tpu.vector_store %arg5[%c0_31, %c0_32], %48 {strides = array<i32>} : memref<64x1024xf32, #tpu.memory_space<vmem>>, vector<64x1024xf32>,
      %cst_33 = arith.constant 1.000000e+00 : f32
      %55 = vector.broadcast %cst_33 : f32 to vector<64x1024xf32>
      %56 = arith.addf %48, %55 : vector<64x1024xf32>
      %c0_34 = arith.constant 0 : index
      %c0_35 = arith.constant 0 : index
      %57 = vector.load %arg6[%c0_34, %c0_35] : memref<64x1024xf32, #tpu.memory_space<vmem>>, vector<64x1024xf32>
      tpu.vector_store %arg6[%c0_34, %c0_35], %56 {strides = array<i32>} : memref<64x1024xf32, #tpu.memory_space<vmem>>, vector<64x1024xf32>,
      %c0_36 = arith.constant 0 : index
      %c0_37 = arith.constant 0 : index
      %58 = vector.load %arg7[%c0_36, %c0_37] : memref<128x1024xf32, #tpu.memory_space<vmem>>, vector<128x1024xf32>
      tpu.vector_store %arg7[%c0_36, %c0_37], %53 {strides = array<i32>} : memref<128x1024xf32, #tpu.memory_space<vmem>>, vector<128x1024xf32>,
      %cst_38 = arith.constant 1.000000e+00 : f32
      %59 = vector.broadcast %cst_38 : f32 to vector<128x1024xf32>
      %60 = arith.addf %53, %59 : vector<128x1024xf32>
      %c0_39 = arith.constant 0 : index
      %c0_40 = arith.constant 0 : index
      %61 = vector.load %arg8[%c0_39, %c0_40] : memref<128x1024xf32, #tpu.memory_space<vmem>>, vector<128x1024xf32>
      tpu.vector_store %arg8[%c0_39, %c0_40], %60 {strides = array<i32>} : memref<128x1024xf32, #tpu.memory_space<vmem>>, vector<128x1024xf32>,
      %cst_41 = arith.constant 0.000000e+00 : f32
      %62 = vector.broadcast %cst_41 : f32 to vector<128x128xf32>
      %c0_42 = arith.constant 0 : index
      %c0_43 = arith.constant 0 : index
      %63 = vector.load %arg4[%c0_42, %c0_43] : memref<128x128xf32, #tpu.memory_space<vmem>>, vector<128x128xf32>
      tpu.vector_store %arg4[%c0_42, %c0_43], %62 {strides = array<i32>} : memref<128x128xf32, #tpu.memory_space<vmem>>, vector<128x128xf32>,
    } else {
    }
    %c0 = arith.constant 0 : index
    %c0_1 = arith.constant 0 : index
    %3 = vector.load %arg2[%c0, %c0_1] : memref<8x1024xf32, #tpu.memory_space<vmem>>, vector<1x1024xf32>
    %c1 = arith.constant 1 : index
    %c0_2 = arith.constant 0 : index
    %4 = vector.load %arg2[%c1, %c0_2] : memref<8x1024xf32, #tpu.memory_space<vmem>>, vector<1x1024xf32>
    %c2 = arith.constant 2 : index
    %c0_3 = arith.constant 0 : index
    %5 = vector.load %arg2[%c2, %c0_3] : memref<8x1024xf32, #tpu.memory_space<vmem>>, vector<1x1024xf32>
    %c3 = arith.constant 3 : index
    %c0_4 = arith.constant 0 : index
    %6 = vector.load %arg2[%c3, %c0_4] : memref<8x1024xf32, #tpu.memory_space<vmem>>, vector<1x1024xf32>
    %c4 = arith.constant 4 : index
    %c0_5 = arith.constant 0 : index
    %7 = vector.load %arg2[%c4, %c0_5] : memref<8x1024xf32, #tpu.memory_space<vmem>>, vector<1x1024xf32>
    %c5 = arith.constant 5 : index
    %c0_6 = arith.constant 0 : index
    %8 = vector.load %arg2[%c5, %c0_6] : memref<8x1024xf32, #tpu.memory_space<vmem>>, vector<1x1024xf32>
    %c0_7 = arith.constant 0 : index
    %c0_8 = arith.constant 0 : index
    %9 = vector.load %arg6[%c0_7, %c0_8] : memref<64x1024xf32, #tpu.memory_space<vmem>>, vector<64x1024xf32>
    %10 = vector.broadcast %4 : vector<1x1024xf32> to vector<64x1024xf32>
    %11 = arith.minimumf %10, %9 : vector<64x1024xf32>
    %c0_9 = arith.constant 0 : index
    %c0_10 = arith.constant 0 : index
    %12 = vector.load %arg5[%c0_9, %c0_10] : memref<64x1024xf32, #tpu.memory_space<vmem>>, vector<64x1024xf32>
    %13 = vector.broadcast %3 : vector<1x1024xf32> to vector<64x1024xf32>
    %14 = arith.maximumf %13, %12 : vector<64x1024xf32>
    %15 = arith.subf %11, %14 : vector<64x1024xf32>
    %cst = arith.constant 0.000000e+00 : f32
    %16 = vector.broadcast %cst : f32 to vector<64x1024xf32>
    %17 = arith.maximumf %15, %16 : vector<64x1024xf32>
    %c0_11 = arith.constant 0 : index
    %c0_12 = arith.constant 0 : index
    %18 = vector.load %arg8[%c0_11, %c0_12] : memref<128x1024xf32, #tpu.memory_space<vmem>>, vector<128x1024xf32>
    %19 = vector.broadcast %6 : vector<1x1024xf32> to vector<128x1024xf32>
    %20 = arith.minimumf %19, %18 : vector<128x1024xf32>
    %c0_13 = arith.constant 0 : index
    %c0_14 = arith.constant 0 : index
    %21 = vector.load %arg7[%c0_13, %c0_14] : memref<128x1024xf32, #tpu.memory_space<vmem>>, vector<128x1024xf32>
    %22 = vector.broadcast %5 : vector<1x1024xf32> to vector<128x1024xf32>
    %23 = arith.maximumf %22, %21 : vector<128x1024xf32>
    %24 = arith.subf %20, %23 : vector<128x1024xf32>
    %cst_15 = arith.constant 0.000000e+00 : f32
    %25 = vector.broadcast %cst_15 : f32 to vector<128x1024xf32>
    %26 = arith.maximumf %24, %25 : vector<128x1024xf32>
    %27 = vector.broadcast %7 : vector<1x1024xf32> to vector<64x1024xf32>
    %28 = arith.mulf %17, %27 : vector<64x1024xf32>
    %29 = vector.broadcast %8 : vector<1x1024xf32> to vector<64x1024xf32>
    %30 = arith.mulf %17, %29 : vector<64x1024xf32>
    %c0_16 = arith.constant 0 : index
    %c0_17 = arith.constant 0 : index
    %31 = vector.load %arg4[%c0_16, %c0_17] : memref<128x128xf32, #tpu.memory_space<vmem>>, vector<64x128xf32>
    %cst_18 = arith.constant dense<0.000000e+00> : vector<64x128xf32>
    %32 = tpu.matmul %28, %26, %cst_18 {dimension_numbers = #tpu.dot_dimension_numbers<[1], [1], [0], [0], [0, 0, 1, 0], [], []>} : vector<64x1024xf32>, vector<128x1024xf32>, vector<64x128xf32> -> vector<64x128xf32>
    %33 = arith.addf %31, %32 : vector<64x128xf32>
    %c0_19 = arith.constant 0 : index
    %c0_20 = arith.constant 0 : index
    %34 = vector.load %arg4[%c0_19, %c0_20] : memref<128x128xf32, #tpu.memory_space<vmem>>, vector<64x128xf32>
    tpu.vector_store %arg4[%c0_19, %c0_20], %33 {strides = array<i32>} : memref<128x128xf32, #tpu.memory_space<vmem>>, vector<64x128xf32>,
    %c64 = arith.constant 64 : index
    %c0_21 = arith.constant 0 : index
    %35 = vector.load %arg4[%c64, %c0_21] : memref<128x128xf32, #tpu.memory_space<vmem>>, vector<64x128xf32>
    %cst_22 = arith.constant dense<0.000000e+00> : vector<64x128xf32>
    %36 = tpu.matmul %30, %26, %cst_22 {dimension_numbers = #tpu.dot_dimension_numbers<[1], [1], [0], [0], [0, 0, 1, 0], [], []>} : vector<64x1024xf32>, vector<128x1024xf32>, vector<64x128xf32> -> vector<64x128xf32>
    %37 = arith.addf %35, %36 : vector<64x128xf32>
    %c64_23 = arith.constant 64 : index
    %c0_24 = arith.constant 0 : index
    %38 = vector.load %arg4[%c64_23, %c0_24] : memref<128x128xf32, #tpu.memory_space<vmem>>, vector<64x128xf32>
    tpu.vector_store %arg4[%c64_23, %c0_24], %37 {strides = array<i32>} : memref<128x128xf32, #tpu.memory_space<vmem>>, vector<64x128xf32>,
    %c0_i32_25 = arith.constant 0 : i32
    %39 = arith.cmpi eq, %arg1, %c0_i32_25 : i32
    %40 = arith.extui %39 : i1 to i32
    %c0_i32_26 = arith.constant 0 : i32
    %41 = arith.cmpi ne, %40, %c0_i32_26 : i32
    scf.if %41 {
      %c0_27 = arith.constant 0 : index
      %c0_28 = arith.constant 0 : index
      %42 = vector.load %arg4[%c0_27, %c0_28] : memref<128x128xf32, #tpu.memory_space<vmem>>, vector<64x128xf32>
      %cst_29 = arith.constant 6.400000e-01 : f32
      %43 = vector.broadcast %cst_29 : f32 to vector<64x128xf32>
      %44 = arith.mulf %42, %43 : vector<64x128xf32>
      %45 = math.absf %44 : vector<64x128xf32>
      %c64_30 = arith.constant 64 : index
      %c0_31 = arith.constant 0 : index
      %46 = vector.load %arg4[%c64_30, %c0_31] : memref<128x128xf32, #tpu.memory_space<vmem>>, vector<64x128xf32>
      %cst_32 = arith.constant 0.689655185 : f32
      %47 = vector.broadcast %cst_32 : f32 to vector<64x128xf32>
      %48 = arith.mulf %46, %47 : vector<64x128xf32>
      %49 = math.absf %48 : vector<64x128xf32>
      %50 = arith.maximumf %45, %49 : vector<64x128xf32>
      %c0_33 = arith.constant 0 : index
      %c0_34 = arith.constant 0 : index
      %51 = vector.load %arg3[%c0_33, %c0_34] : memref<64x128xf32, #tpu.memory_space<vmem>>, vector<64x128xf32>
      tpu.vector_store %arg3[%c0_33, %c0_34], %50 {strides = array<i32>} : memref<64x128xf32, #tpu.memory_space<vmem>>, vector<64x128xf32>,
    } else {
    }
    return
  }
  func.func @transform_0(%arg0: i32, %arg1: i32) -> (i32, i32) {
    %c1_i32 = arith.constant 1 : i32
    %0 = arith.muli %arg0, %c1_i32 : i32
    %1 = arith.addi %0, %arg1 : i32
    %c0_i32 = arith.constant 0 : i32
    %c0_i32_0 = arith.constant 0 : i32
    return %c0_i32, %1 : i32, i32
  }
  func.func @transform_1(%arg0: i32, %arg1: i32) -> (i32, i32) {
    %c0_i32 = arith.constant 0 : i32
    %c0_i32_0 = arith.constant 0 : i32
    %c0_i32_1 = arith.constant 0 : i32
    return %c0_i32, %c0_i32_0 : i32, i32
  }
}

</mosaic_0001>

<llo_original>
// kernel: tpu_custom_call.1
$region0: #{tpu_custom_call.1}
  #allocation0 [shape = 'u32[]', space=smem, size = 0x4, offset = 0x4, fixed_abs, tag = 'smem constant byte address 0x4 - core index']
  #allocation1 [shape = 'u32[72,128]{1,0:T(1,128)}', space=vmem, size = 0x9000, scoped, tag = 'internal scratch']
  #allocation2 [shape = 'f32[128,128]{1,0:T(8,128)}', space=vmem, size = 0x10000, scoped, tag = 'scratch operand']
  #allocation3 [shape = 'f32[64,1024]{1,0:T(8,128)}', space=vmem, size = 0x40000, scoped, tag = 'scratch operand']
  #allocation4 [shape = 'f32[64,1024]{1,0:T(8,128)}', space=vmem, size = 0x40000, scoped, tag = 'scratch operand']
  #allocation5 [shape = 'f32[128,1024]{1,0:T(8,128)}', space=vmem, size = 0x80000, scoped, tag = 'scratch operand']
  #allocation6 [shape = 'f32[128,1024]{1,0:T(8,128)}', space=vmem, size = 0x80000, scoped, tag = 'scratch operand']
  %s0 = inlined_call_operand.hbm [shape: f32[8,1024], index: 0, kind: input, shape index: {}]
  %s1 = inlined_call_operand.hbm [shape: f32[64,128], index: 1, kind: output, shape index: {}]
  %s2 = sld [smem:[#allocation0]]
  $region26: #{tpu_custom_call.1} parent=0
    _
  %s4 = ssub.s32 1, %s2
  %s5 = scalar_select 0, %s4, %s2
  $region1: #{tpu_custom_call.1} parent=0
    #allocation7 [shape = 'u8[32768]{0}', space=vmem, size = 0x8000, scoped, tag = 'input window, operand 0, single buffered']
    #allocation8 [shape = 's32[1]{0}', space=sflag, size = 0x4, scoped, tag = 'scoped memory for tpu_custom_call.1']
    #allocation9 [shape = 's32[1]{0}', space=sflag, size = 0x4, scoped, tag = 'scoped memory for tpu_custom_call.1']
    #allocation10 [shape = 'u8[32768]{0}', space=vmem, size = 0x8000, scoped, tag = 'output window, operand 0, single buffered']
    %6 = vsyncpa [#allocation8], 0
    %7 = vsyncpa [#allocation9], 0
    // Predicated region
    $region2: #{tpu_custom_call.1} parent=1 // pred_check
      _
    $region3: #{tpu_custom_call.1} parent=1 // pred_check_branch
      %9 = sbr.rel (0) target = $region5
    $region4: #{tpu_custom_call.1} parent=1 // pred_region
      %s10 = sadd.s32 0, 0
      %s11 = smul.u32 8, %s10
      %13 = vsyncadd [#allocation8], 0
      %s14 = smul.addr %s11, 8
      %s15 = scalar_lea.hbm %s0, %s14
      %s17 = sshll.u32 %s15, 4
      %s18 = int_to_ptr.hbm [resolvable:$true] %s17
      %s19 = sshll.u32 [#allocation7], 4
      %s20 = int_to_ptr.vmem [resolvable:$true] %s19
      %22 = dma.hbm_to_vmem [thread:$0]  %s18, 1024, %s20, [#allocation8]
    $region5: #{tpu_custom_call.1} parent=1 // pred_fallthru
      _
    // Predicated region
    $region6: #{tpu_custom_call.1} parent=1 // pred_check
      _
    $region7: #{tpu_custom_call.1} parent=1 // pred_check_branch
      %24 = sbr.rel (0) target = $region9
    $region8: #{tpu_custom_call.1} parent=1 // pred_region
      %26 = dma.done [#allocation8], 1024
    $region9: #{tpu_custom_call.1} parent=1 // pred_fallthru
      _
    %s27 = sadd.s32 0, 0
    %s28 = smul.u32 8, %s27
    %p29 = scmp.eq.s32.totalorder 0, 0
    // Predicated region
    $region10: #{tpu_custom_call.1} parent=1 // pred_check
      %p30 = pneg %p29
    $region11: #{tpu_custom_call.1} parent=1 // pred_check_branch
      %32 = sbr.rel (%p30) target = $region13
    $region12: #{tpu_custom_call.1} parent=1 // pred_region
      %v33 = vlaneseq
      %v34 = vshrl.u32 %v33, 7
      %v35 = vadd.s32 %v34, 8
      %v36 = vadd.s32 %v34, 16
      %v37 = vadd.s32 %v34, 24
      %v38 = vadd.s32 %v34, 32
      %v39 = vadd.s32 %v34, 40
      %v40 = vadd.s32 %v34, 48
      %v41 = vadd.s32 %v34, 56
      %v42 = vadd.s32 %v34, 64
      %v43 = vadd.s32 %v34, 72
      %v44 = vadd.s32 %v34, 80
      %v45 = vadd.s32 %v34, 88
      %v46 = vadd.s32 %v34, 96
      %v47 = vadd.s32 %v34, 104
      %v48 = vadd.s32 %v34, 112
      %v49 = vadd.s32 %v34, 120
      %v50 = vcvt.s32.f32 %v34
      %v51 = vcvt.s32.f32 %v35
      %v52 = vcvt.s32.f32 %v36
      %v53 = vcvt.s32.f32 %v37
      %v54 = vcvt.s32.f32 %v38
      %v55 = vcvt.s32.f32 %v39
      %v56 = vcvt.s32.f32 %v40
      %v57 = vcvt.s32.f32 %v41
      %v58 = vadd.f32 %v50, 0.0
      %v59 = vadd.f32 %v51, 0.0
      %v60 = vadd.f32 %v52, 0.0
      %v61 = vadd.f32 %v53, 0.0
      %v62 = vadd.f32 %v54, 0.0
      %v63 = vadd.f32 %v55, 0.0
      %v64 = vadd.f32 %v56, 0.0
      %v65 = vadd.f32 %v57, 0.0
      %v66 = vcvt.s32.f32 %v42
      %v67 = vcvt.s32.f32 %v43
      %v68 = vcvt.s32.f32 %v44
      %v69 = vcvt.s32.f32 %v45
      %v70 = vcvt.s32.f32 %v46
      %v71 = vcvt.s32.f32 %v47
      %v72 = vcvt.s32.f32 %v48
      %v73 = vcvt.s32.f32 %v49
      %v74 = vadd.f32 %v66, 0.0
      %v75 = vadd.f32 %v67, 0.0
      %v76 = vadd.f32 %v68, 0.0
      %v77 = vadd.f32 %v69, 0.0
      %v78 = vadd.f32 %v70, 0.0
      %v79 = vadd.f32 %v71, 0.0
      %v80 = vadd.f32 %v72, 0.0
      %v81 = vadd.f32 %v73, 0.0
      %82 = vst [vmem:[#allocation3] sm:$0xff] %v58
      %83 = vst [vmem:[#allocation3 + $0x8] sm:$0xff] %v58
      %84 = vst [vmem:[#allocation3 + $0x10] sm:$0xff] %v58
      %85 = vst [vmem:[#allocation3 + $0x18] sm:$0xff] %v58
      %86 = vst [vmem:[#allocation3 + $0x20] sm:$0xff] %v58
      %87 = vst [vmem:[#allocation3 + $0x28] sm:$0xff] %v58
      %88 = vst [vmem:[#allocation3 + $0x30] sm:$0xff] %v58
      %89 = vst [vmem:[#allocation3 + $0x38] sm:$0xff] %v58
      %90 = vst [vmem:[#allocation3 + $0x40] sm:$0xff] %v59
      %91 = vst [vmem:[#allocation3 + $0x48] sm:$0xff] %v59
      %92 = vst [vmem:[#allocation3 + $0x50] sm:$0xff] %v59
      %93 = vst [vmem:[#allocation3 + $0x58] sm:$0xff] %v59
      %94 = vst [vmem:[#allocation3 + $0x60] sm:$0xff] %v59
      %95 = vst [vmem:[#allocation3 + $0x68] sm:$0xff] %v59
      %96 = vst [vmem:[#allocation3 + $0x70] sm:$0xff] %v59
      %97 = vst [vmem:[#allocation3 + $0x78] sm:$0xff] %v59
      %98 = vst [vmem:[#allocation3 + $0x80] sm:$0xff] %v60
      %99 = vst [vmem:[#allocation3 + $0x88] sm:$0xff] %v60
      %100 = vst [vmem:[#allocation3 + $0x90] sm:$0xff] %v60
      %101 = vst [vmem:[#allocation3 + $0x98] sm:$0xff] %v60
      %102 = vst [vmem:[#allocation3 + $0xa0] sm:$0xff] %v60
      %103 = vst [vmem:[#allocation3 + $0xa8] sm:$0xff] %v60
      %104 = vst [vmem:[#allocation3 + $0xb0] sm:$0xff] %v60
      %105 = vst [vmem:[#allocation3 + $0xb8] sm:$0xff] %v60
      %106 = vst [vmem:[#allocation3 + $0xc0] sm:$0xff] %v61
      %107 = vst [vmem:[#allocation3 + $0xc8] sm:$0xff] %v61
      %108 = vst [vmem:[#allocation3 + $0xd0] sm:$0xff] %v61
      %109 = vst [vmem:[#allocation3 + $0xd8] sm:$0xff] %v61
      %110 = vst [vmem:[#allocation3 + $0xe0] sm:$0xff] %v61
      %111 = vst [vmem:[#allocation3 + $0xe8] sm:$0xff] %v61
      %112 = vst [vmem:[#allocation3 + $0xf0] sm:$0xff] %v61
      %113 = vst [vmem:[#allocation3 + $0xf8] sm:$0xff] %v61
      %114 = vst [vmem:[#allocation3 + $0x100] sm:$0xff] %v62
      %115 = vst [vmem:[#allocation3 + $0x108] sm:$0xff] %v62
      %116 = vst [vmem:[#allocation3 + $0x110] sm:$0xff] %v62
      %117 = vst [vmem:[#allocation3 + $0x118] sm:$0xff] %v62
      %118 = vst [vmem:[#allocation3 + $0x120] sm:$0xff] %v62
      %119 = vst [vmem:[#allocation3 + $0x128] sm:$0xff] %v62
      %120 = vst [vmem:[#allocation3 + $0x130] sm:$0xff] %v62
      %121 = vst [vmem:[#allocation3 + $0x138] sm:$0xff] %v62
      %122 = vst [vmem:[#allocation3 + $0x140] sm:$0xff] %v63
      %123 = vst [vmem:[#allocation3 + $0x148] sm:$0xff] %v63
      %124 = vst [vmem:[#allocation3 + $0x150] sm:$0xff] %v63
      %125 = vst [vmem:[#allocation3 + $0x158] sm:$0xff] %v63
      %126 = vst [vmem:[#allocation3 + $0x160] sm:$0xff] %v63
      %127 = vst [vmem:[#allocation3 + $0x168] sm:$0xff] %v63
      %128 = vst [vmem:[#allocation3 + $0x170] sm:$0xff] %v63
      %129 = vst [vmem:[#allocation3 + $0x178] sm:$0xff] %v63
      %130 = vst [vmem:[#allocation3 + $0x180] sm:$0xff] %v64
      %131 = vst [vmem:[#allocation3 + $0x188] sm:$0xff] %v64
      %132 = vst [vmem:[#allocation3 + $0x190] sm:$0xff] %v64
      %133 = vst [vmem:[#allocation3 + $0x198] sm:$0xff] %v64
      %134 = vst [vmem:[#allocation3 + $0x1a0] sm:$0xff] %v64
      %135 = vst [vmem:[#allocation3 + $0x1a8] sm:$0xff] %v64
      %136 = vst [vmem:[#allocation3 + $0x1b0] sm:$0xff] %v64
      %137 = vst [vmem:[#allocation3 + $0x1b8] sm:$0xff] %v64
      %138 = vst [vmem:[#allocation3 + $0x1c0] sm:$0xff] %v65
      %139 = vst [vmem:[#allocation3 + $0x1c8] sm:$0xff] %v65
      %140 = vst [vmem:[#allocation3 + $0x1d0] sm:$0xff] %v65
      %141 = vst [vmem:[#allocation3 + $0x1d8] sm:$0xff] %v65
      %142 = vst [vmem:[#allocation3 + $0x1e0] sm:$0xff] %v65
      %143 = vst [vmem:[#allocation3 + $0x1e8] sm:$0xff] %v65
      %144 = vst [vmem:[#allocation3 + $0x1f0] sm:$0xff] %v65
      %145 = vst [vmem:[#allocation3 + $0x1f8] sm:$0xff] %v65
      %v146 = vadd.f32 %v58, 1.0
      %v147 = vadd.f32 %v59, 1.0
      %v148 = vadd.f32 %v60, 1.0
      %v149 = vadd.f32 %v61, 1.0
      %v150 = vadd.f32 %v62, 1.0
      %v151 = vadd.f32 %v63, 1.0
      %v152 = vadd.f32 %v64, 1.0
      %v153 = vadd.f32 %v65, 1.0
      %154 = vst [vmem:[#allocation4] sm:$0xff] %v146
      %155 = vst [vmem:[#allocation4 + $0x8] sm:$0xff] %v146
      %156 = vst [vmem:[#allocation4 + $0x10] sm:$0xff] %v146
      %157 = vst [vmem:[#allocation4 + $0x18] sm:$0xff] %v146
      %158 = vst [vmem:[#allocation4 + $0x20] sm:$0xff] %v146
      %159 = vst [vmem:[#allocation4 + $0x28] sm:$0xff] %v146
      %160 = vst [vmem:[#allocation4 + $0x30] sm:$0xff] %v146
      %161 = vst [vmem:[#allocation4 + $0x38] sm:$0xff] %v146
      %162 = vst [vmem:[#allocation4 + $0x40] sm:$0xff] %v147
      %163 = vst [vmem:[#allocation4 + $0x48] sm:$0xff] %v147
      %164 = vst [vmem:[#allocation4 + $0x50] sm:$0xff] %v147
      %165 = vst [vmem:[#allocation4 + $0x58] sm:$0xff] %v147
      %166 = vst [vmem:[#allocation4 + $0x60] sm:$0xff] %v147
      %167 = vst [vmem:[#allocation4 + $0x68] sm:$0xff] %v147
      %168 = vst [vmem:[#allocation4 + $0x70] sm:$0xff] %v147
      %169 = vst [vmem:[#allocation4 + $0x78] sm:$0xff] %v147
      %170 = vst [vmem:[#allocation4 + $0x80] sm:$0xff] %v148
      %171 = vst [vmem:[#allocation4 + $0x88] sm:$0xff] %v148
      %172 = vst [vmem:[#allocation4 + $0x90] sm:$0xff] %v148
      %173 = vst [vmem:[#allocation4 + $0x98] sm:$0xff] %v148
      %174 = vst [vmem:[#allocation4 + $0xa0] sm:$0xff] %v148
      %175 = vst [vmem:[#allocation4 + $0xa8] sm:$0xff] %v148
      %176 = vst [vmem:[#allocation4 + $0xb0] sm:$0xff] %v148
      %177 = vst [vmem:[#allocation4 + $0xb8] sm:$0xff] %v148
      %178 = vst [vmem:[#allocation4 + $0xc0] sm:$0xff] %v149
      %179 = vst [vmem:[#allocation4 + $0xc8] sm:$0xff] %v149
      %180 = vst [vmem:[#allocation4 + $0xd0] sm:$0xff] %v149
      %181 = vst [vmem:[#allocation4 + $0xd8] sm:$0xff] %v149
      %182 = vst [vmem:[#allocation4 + $0xe0] sm:$0xff] %v149
      %183 = vst [vmem:[#allocation4 + $0xe8] sm:$0xff] %v149
      %184 = vst [vmem:[#allocation4 + $0xf0] sm:$0xff] %v149
      %185 = vst [vmem:[#allocation4 + $0xf8] sm:$0xff] %v149
      %186 = vst [vmem:[#allocation4 + $0x100] sm:$0xff] %v150
      %187 = vst [vmem:[#allocation4 + $0x108] sm:$0xff] %v150
      %188 = vst [vmem:[#allocation4 + $0x110] sm:$0xff] %v150
      %189 = vst [vmem:[#allocation4 + $0x118] sm:$0xff] %v150
      %190 = vst [vmem:[#allocation4 + $0x120] sm:$0xff] %v150
      %191 = vst [vmem:[#allocation4 + $0x128] sm:$0xff] %v150
      %192 = vst [vmem:[#allocation4 + $0x130] sm:$0xff] %v150
      %193 = vst [vmem:[#allocation4 + $0x138] sm:$0xff] %v150
      %194 = vst [vmem:[#allocation4 + $0x140] sm:$0xff] %v151
      %195 = vst [vmem:[#allocation4 + $0x148] sm:$0xff] %v151
      %196 = vst [vmem:[#allocation4 + $0x150] sm:$0xff] %v151
      %197 = vst [vmem:[#allocation4 + $0x158] sm:$0xff] %v151
      %198 = vst [vmem:[#allocation4 + $0x160] sm:$0xff] %v151
      %199 = vst [vmem:[#allocation4 + $0x168] sm:$0xff] %v151
      %200 = vst [vmem:[#allocation4 + $0x170] sm:$0xff] %v151
      %201 = vst [vmem:[#allocation4 + $0x178] sm:$0xff] %v151
      %202 = vst [vmem:[#allocation4 + $0x180] sm:$0xff] %v152
      %203 = vst [vmem:[#allocation4 + $0x188] sm:$0xff] %v152
      %204 = vst [vmem:[#allocation4 + $0x190] sm:$0xff] %v152
      %205 = vst [vmem:[#allocation4 + $0x198] sm:$0xff] %v152
      %206 = vst [vmem:[#allocation4 + $0x1a0] sm:$0xff] %v152
      %207 = vst [vmem:[#allocation4 + $0x1a8] sm:$0xff] %v152
      %208 = vst [vmem:[#allocation4 + $0x1b0] sm:$0xff] %v152
      %209 = vst [vmem:[#allocation4 + $0x1b8] sm:$0xff] %v152
      %210 = vst [vmem:[#allocation4 + $0x1c0] sm:$0xff] %v153
      %211 = vst [vmem:[#allocation4 + $0x1c8] sm:$0xff] %v153
      %212 = vst [vmem:[#allocation4 + $0x1d0] sm:$0xff] %v153
      %213 = vst [vmem:[#allocation4 + $0x1d8] sm:$0xff] %v153
      %214 = vst [vmem:[#allocation4 + $0x1e0] sm:$0xff] %v153
      %215 = vst [vmem:[#allocation4 + $0x1e8] sm:$0xff] %v153
      %216 = vst [vmem:[#allocation4 + $0x1f0] sm:$0xff] %v153
      %217 = vst [vmem:[#allocation4 + $0x1f8] sm:$0xff] %v153
      %218 = vst [vmem:[#allocation5] sm:$0xff] %v58
      %219 = vst [vmem:[#allocation5 + $0x8] sm:$0xff] %v58
      %220 = vst [vmem:[#allocation5 + $0x10] sm:$0xff] %v58
      %221 = vst [vmem:[#allocation5 + $0x18] sm:$0xff] %v58
      %222 = vst [vmem:[#allocation5 + $0x20] sm:$0xff] %v58
      %223 = vst [vmem:[#allocation5 + $0x28] sm:$0xff] %v58
      %224 = vst [vmem:[#allocation5 + $0x30] sm:$0xff] %v58
      %225 = vst [vmem:[#allocation5 + $0x38] sm:$0xff] %v58
      %226 = vst [vmem:[#allocation5 + $0x40] sm:$0xff] %v59
      %227 = vst [vmem:[#allocation5 + $0x48] sm:$0xff] %v59
      %228 = vst [vmem:[#allocation5 + $0x50] sm:$0xff] %v59
      %229 = vst [vmem:[#allocation5 + $0x58] sm:$0xff] %v59
      %230 = vst [vmem:[#allocation5 + $0x60] sm:$0xff] %v59
      %231 = vst [vmem:[#allocation5 + $0x68] sm:$0xff] %v59
      %232 = vst [vmem:[#allocation5 + $0x70] sm:$0xff] %v59
      %233 = vst [vmem:[#allocation5 + $0x78] sm:$0xff] %v59
      %234 = vst [vmem:[#allocation5 + $0x80] sm:$0xff] %v60
      %235 = vst [vmem:[#allocation5 + $0x88] sm:$0xff] %v60
      %236 = vst [vmem:[#allocation5 + $0x90] sm:$0xff] %v60
      %237 = vst [vmem:[#allocation5 + $0x98] sm:$0xff] %v60
      %238 = vst [vmem:[#allocation5 + $0xa0] sm:$0xff] %v60
      %239 = vst [vmem:[#allocation5 + $0xa8] sm:$0xff] %v60
      %240 = vst [vmem:[#allocation5 + $0xb0] sm:$0xff] %v60
      %241 = vst [vmem:[#allocation5 + $0xb8] sm:$0xff] %v60
      %242 = vst [vmem:[#allocation5 + $0xc0] sm:$0xff] %v61
      %243 = vst [vmem:[#allocation5 + $0xc8] sm:$0xff] %v61
      %244 = vst [vmem:[#allocation5 + $0xd0] sm:$0xff] %v61
      %245 = vst [vmem:[#allocation5 + $0xd8] sm:$0xff] %v61
      %246 = vst [vmem:[#allocation5 + $0xe0] sm:$0xff] %v61
      %247 = vst [vmem:[#allocation5 + $0xe8] sm:$0xff] %v61
      %248 = vst [vmem:[#allocation5 + $0xf0] sm:$0xff] %v61
      %249 = vst [vmem:[#allocation5 + $0xf8] sm:$0xff] %v61
      %250 = vst [vmem:[#allocation5 + $0x100] sm:$0xff] %v62
      %251 = vst [vmem:[#allocation5 + $0x108] sm:$0xff] %v62
      %252 = vst [vmem:[#allocation5 + $0x110] sm:$0xff] %v62
      %253 = vst [vmem:[#allocation5 + $0x118] sm:$0xff] %v62
      %254 = vst [vmem:[#allocation5 + $0x120] sm:$0xff] %v62
      %255 = vst [vmem:[#allocation5 + $0x128] sm:$0xff] %v62
      %256 = vst [vmem:[#allocation5 + $0x130] sm:$0xff] %v62
      %257 = vst [vmem:[#allocation5 + $0x138] sm:$0xff] %v62
      %258 = vst [vmem:[#allocation5 + $0x140] sm:$0xff] %v63
      %259 = vst [vmem:[#allocation5 + $0x148] sm:$0xff] %v63
      %260 = vst [vmem:[#allocation5 + $0x150] sm:$0xff] %v63
      %261 = vst [vmem:[#allocation5 + $0x158] sm:$0xff] %v63
      %262 = vst [vmem:[#allocation5 + $0x160] sm:$0xff] %v63
      %263 = vst [vmem:[#allocation5 + $0x168] sm:$0xff] %v63
      %264 = vst [vmem:[#allocation5 + $0x170] sm:$0xff] %v63
      %265 = vst [vmem:[#allocation5 + $0x178] sm:$0xff] %v63
      %266 = vst [vmem:[#allocation5 + $0x180] sm:$0xff] %v64
      %267 = vst [vmem:[#allocation5 + $0x188] sm:$0xff] %v64
      %268 = vst [vmem:[#allocation5 + $0x190] sm:$0xff] %v64
      %269 = vst [vmem:[#allocation5 + $0x198] sm:$0xff] %v64
      %270 = vst [vmem:[#allocation5 + $0x1a0] sm:$0xff] %v64
      %271 = vst [vmem:[#allocation5 + $0x1a8] sm:$0xff] %v64
      %272 = vst [vmem:[#allocation5 + $0x1b0] sm:$0xff] %v64
      %273 = vst [vmem:[#allocation5 + $0x1b8] sm:$0xff] %v64
      %274 = vst [vmem:[#allocation5 + $0x1c0] sm:$0xff] %v65
      %275 = vst [vmem:[#allocation5 + $0x1c8] sm:$0xff] %v65
      %276 = vst [vmem:[#allocation5 + $0x1d0] sm:$0xff] %v65
      %277 = vst [vmem:[#allocation5 + $0x1d8] sm:$0xff] %v65
      %278 = vst [vmem:[#allocation5 + $0x1e0] sm:$0xff] %v65
      %279 = vst [vmem:[#allocation5 + $0x1e8] sm:$0xff] %v65
      %280 = vst [vmem:[#allocation5 + $0x1f0] sm:$0xff] %v65
      %281 = vst [vmem:[#allocation5 + $0x1f8] sm:$0xff] %v65
      %282 = vst [vmem:[#allocation5 + $0x200] sm:$0xff] %v74
      %283 = vst [vmem:[#allocation5 + $0x208] sm:$0xff] %v74
      %284 = vst [vmem:[#allocation5 + $0x210] sm:$0xff] %v74
      %285 = vst [vmem:[#allocation5 + $0x218] sm:$0xff] %v74
      %286 = vst [vmem:[#allocation5 + $0x220] sm:$0xff] %v74
      %287 = vst [vmem:[#allocation5 + $0x228] sm:$0xff] %v74
      %288 = vst [vmem:[#allocation5 + $0x230] sm:$0xff] %v74
      %289 = vst [vmem:[#allocation5 + $0x238] sm:$0xff] %v74
      %290 = vst [vmem:[#allocation5 + $0x240] sm:$0xff] %v75
      %291 = vst [vmem:[#allocation5 + $0x248] sm:$0xff] %v75
      %292 = vst [vmem:[#allocation5 + $0x250] sm:$0xff] %v75
      %293 = vst [vmem:[#allocation5 + $0x258] sm:$0xff] %v75
      %294 = vst [vmem:[#allocation5 + $0x260] sm:$0xff] %v75
      %295 = vst [vmem:[#allocation5 + $0x268] sm:$0xff] %v75
      %296 = vst [vmem:[#allocation5 + $0x270] sm:$0xff] %v75
      %297 = vst [vmem:[#allocation5 + $0x278] sm:$0xff] %v75
      %298 = vst [vmem:[#allocation5 + $0x280] sm:$0xff] %v76
      %299 = vst [vmem:[#allocation5 + $0x288] sm:$0xff] %v76
      %300 = vst [vmem:[#allocation5 + $0x290] sm:$0xff] %v76
      %301 = vst [vmem:[#allocation5 + $0x298] sm:$0xff] %v76
      %302 = vst [vmem:[#allocation5 + $0x2a0] sm:$0xff] %v76
      %303 = vst [vmem:[#allocation5 + $0x2a8] sm:$0xff] %v76
      %304 = vst [vmem:[#allocation5 + $0x2b0] sm:$0xff] %v76
      %305 = vst [vmem:[#allocation5 + $0x2b8] sm:$0xff] %v76
      %306 = vst [vmem:[#allocation5 + $0x2c0] sm:$0xff] %v77
      %307 = vst [vmem:[#allocation5 + $0x2c8] sm:$0xff] %v77
      %308 = vst [vmem:[#allocation5 + $0x2d0] sm:$0xff] %v77
      %309 = vst [vmem:[#allocation5 + $0x2d8] sm:$0xff] %v77
      %310 = vst [vmem:[#allocation5 + $0x2e0] sm:$0xff] %v77
      %311 = vst [vmem:[#allocation5 + $0x2e8] sm:$0xff] %v77
      %312 = vst [vmem:[#allocation5 + $0x2f0] sm:$0xff] %v77
      %313 = vst [vmem:[#allocation5 + $0x2f8] sm:$0xff] %v77
      %314 = vst [vmem:[#allocation5 + $0x300] sm:$0xff] %v78
      %315 = vst [vmem:[#allocation5 + $0x308] sm:$0xff] %v78
      %316 = vst [vmem:[#allocation5 + $0x310] sm:$0xff] %v78
      %317 = vst [vmem:[#allocation5 + $0x318] sm:$0xff] %v78
      %318 = vst [vmem:[#allocation5 + $0x320] sm:$0xff] %v78
      %319 = vst [vmem:[#allocation5 + $0x328] sm:$0xff] %v78
      %320 = vst [vmem:[#allocation5 + $0x330] sm:$0xff] %v78
      %321 = vst [vmem:[#allocation5 + $0x338] sm:$0xff] %v78
      %322 = vst [vmem:[#allocation5 + $0x340] sm:$0xff] %v79
      %323 = vst [vmem:[#allocation5 + $0x348] sm:$0xff] %v79
      %324 = vst [vmem:[#allocation5 + $0x350] sm:$0xff] %v79
      %325 = vst [vmem:[#allocation5 + $0x358] sm:$0xff] %v79
      %326 = vst [vmem:[#allocation5 + $0x360] sm:$0xff] %v79
      %327 = vst [vmem:[#allocation5 + $0x368] sm:$0xff] %v79
      %328 = vst [vmem:[#allocation5 + $0x370] sm:$0xff] %v79
      %329 = vst [vmem:[#allocation5 + $0x378] sm:$0xff] %v79
      %330 = vst [vmem:[#allocation5 + $0x380] sm:$0xff] %v80
      %331 = vst [vmem:[#allocation5 + $0x388] sm:$0xff] %v80
      %332 = vst [vmem:[#allocation5 + $0x390] sm:$0xff] %v80
      %333 = vst [vmem:[#allocation5 + $0x398] sm:$0xff] %v80
      %334 = vst [vmem:[#allocation5 + $0x3a0] sm:$0xff] %v80
      %335 = vst [vmem:[#allocation5 + $0x3a8] sm:$0xff] %v80
      %336 = vst [vmem:[#allocation5 + $0x3b0] sm:$0xff] %v80
      %337 = vst [vmem:[#allocation5 + $0x3b8] sm:$0xff] %v80
      %338 = vst [vmem:[#allocation5 + $0x3c0] sm:$0xff] %v81
      %339 = vst [vmem:[#allocation5 + $0x3c8] sm:$0xff] %v81
      %340 = vst [vmem:[#allocation5 + $0x3d0] sm:$0xff] %v81
      %341 = vst [vmem:[#allocation5 + $0x3d8] sm:$0xff] %v81
      %342 = vst [vmem:[#allocation5 + $0x3e0] sm:$0xff] %v81
      %343 = vst [vmem:[#allocation5 + $0x3e8] sm:$0xff] %v81
      %344 = vst [vmem:[#allocation5 + $0x3f0] sm:$0xff] %v81
      %345 = vst [vmem:[#allocation5 + $0x3f8] sm:$0xff] %v81
      %v346 = vadd.f32 %v74, 1.0
      %v347 = vadd.f32 %v75, 1.0
      %v348 = vadd.f32 %v76, 1.0
      %v349 = vadd.f32 %v77, 1.0
      %v350 = vadd.f32 %v78, 1.0
      %v351 = vadd.f32 %v79, 1.0
      %v352 = vadd.f32 %v80, 1.0
      %v353 = vadd.f32 %v81, 1.0
      %354 = vst [vmem:[#allocation6] sm:$0xff] %v146
      %355 = vst [vmem:[#allocation6 + $0x8] sm:$0xff] %v146
      %356 = vst [vmem:[#allocation6 + $0x10] sm:$0xff] %v146
      %357 = vst [vmem:[#allocation6 + $0x18] sm:$0xff] %v146
      %358 = vst [vmem:[#allocation6 + $0x20] sm:$0xff] %v146
      %359 = vst [vmem:[#allocation6 + $0x28] sm:$0xff] %v146
      %360 = vst [vmem:[#allocation6 + $0x30] sm:$0xff] %v146
      %361 = vst [vmem:[#allocation6 + $0x38] sm:$0xff] %v146
      %362 = vst [vmem:[#allocation6 + $0x40] sm:$0xff] %v147
      %363 = vst [vmem:[#allocation6 + $0x48] sm:$0xff] %v147
      %364 = vst [vmem:[#allocation6 + $0x50] sm:$0xff] %v147
      %365 = vst [vmem:[#allocation6 + $0x58] sm:$0xff] %v147
      %366 = vst [vmem:[#allocation6 + $0x60] sm:$0xff] %v147
      %367 = vst [vmem:[#allocation6 + $0x68] sm:$0xff] %v147
      %368 = vst [vmem:[#allocation6 + $0x70] sm:$0xff] %v147
      %369 = vst [vmem:[#allocation6 + $0x78] sm:$0xff] %v147
      %370 = vst [vmem:[#allocation6 + $0x80] sm:$0xff] %v148
      %371 = vst [vmem:[#allocation6 + $0x88] sm:$0xff] %v148
      %372 = vst [vmem:[#allocation6 + $0x90] sm:$0xff] %v148
      %373 = vst [vmem:[#allocation6 + $0x98] sm:$0xff] %v148
      %374 = vst [vmem:[#allocation6 + $0xa0] sm:$0xff] %v148
      %375 = vst [vmem:[#allocation6 + $0xa8] sm:$0xff] %v148
      %376 = vst [vmem:[#allocation6 + $0xb0] sm:$0xff] %v148
      %377 = vst [vmem:[#allocation6 + $0xb8] sm:$0xff] %v148
      %378 = vst [vmem:[#allocation6 + $0xc0] sm:$0xff] %v149
      %379 = vst [vmem:[#allocation6 + $0xc8] sm:$0xff] %v149
      %380 = vst [vmem:[#allocation6 + $0xd0] sm:$0xff] %v149
      %381 = vst [vmem:[#allocation6 + $0xd8] sm:$0xff] %v149
      %382 = vst [vmem:[#allocation6 + $0xe0] sm:$0xff] %v149
      %383 = vst [vmem:[#allocation6 + $0xe8] sm:$0xff] %v149
      %384 = vst [vmem:[#allocation6 + $0xf0] sm:$0xff] %v149
      %385 = vst [vmem:[#allocation6 + $0xf8] sm:$0xff] %v149
      %386 = vst [vmem:[#allocation6 + $0x100] sm:$0xff] %v150
      %387 = vst [vmem:[#allocation6 + $0x108] sm:$0xff] %v150
      %388 = vst [vmem:[#allocation6 + $0x110] sm:$0xff] %v150
      %389 = vst [vmem:[#allocation6 + $0x118] sm:$0xff] %v150
      %390 = vst [vmem:[#allocation6 + $0x120] sm:$0xff] %v150
      %391 = vst [vmem:[#allocation6 + $0x128] sm:$0xff] %v150
      %392 = vst [vmem:[#allocation6 + $0x130] sm:$0xff] %v150
      %393 = vst [vmem:[#allocation6 + $0x138] sm:$0xff] %v150
      %394 = vst [vmem:[#allocation6 + $0x140] sm:$0xff] %v151
      %395 = vst [vmem:[#allocation6 + $0x148] sm:$0xff] %v151
      %396 = vst [vmem:[#allocation6 + $0x150] sm:$0xff] %v151
      %397 = vst [vmem:[#allocation6 + $0x158] sm:$0xff] %v151
      %398 = vst [vmem:[#allocation6 + $0x160] sm:$0xff] %v151
      %399 = vst [vmem:[#allocation6 + $0x168] sm:$0xff] %v151
      %400 = vst [vmem:[#allocation6 + $0x170] sm:$0xff] %v151
      %401 = vst [vmem:[#allocation6 + $0x178] sm:$0xff] %v151
      %402 = vst [vmem:[#allocation6 + $0x180] sm:$0xff] %v152
      %403 = vst [vmem:[#allocation6 + $0x188] sm:$0xff] %v152
      %404 = vst [vmem:[#allocation6 + $0x190] sm:$0xff] %v152
      %405 = vst [vmem:[#allocation6 + $0x198] sm:$0xff] %v152
      %406 = vst [vmem:[#allocation6 + $0x1a0] sm:$0xff] %v152
      %407 = vst [vmem:[#allocation6 + $0x1a8] sm:$0xff] %v152
      %408 = vst [vmem:[#allocation6 + $0x1b0] sm:$0xff] %v152
      %409 = vst [vmem:[#allocation6 + $0x1b8] sm:$0xff] %v152
      %410 = vst [vmem:[#allocation6 + $0x1c0] sm:$0xff] %v153
      %411 = vst [vmem:[#allocation6 + $0x1c8] sm:$0xff] %v153
      %412 = vst [vmem:[#allocation6 + $0x1d0] sm:$0xff] %v153
      %413 = vst [vmem:[#allocation6 + $0x1d8] sm:$0xff] %v153
      %414 = vst [vmem:[#allocation6 + $0x1e0] sm:$0xff] %v153
      %415 = vst [vmem:[#allocation6 + $0x1e8] sm:$0xff] %v153
      %416 = vst [vmem:[#allocation6 + $0x1f0] sm:$0xff] %v153
      %417 = vst [vmem:[#allocation6 + $0x1f8] sm:$0xff] %v153
      %418 = vst [vmem:[#allocation6 + $0x200] sm:$0xff] %v346
      %419 = vst [vmem:[#allocation6 + $0x208] sm:$0xff] %v346
      %420 = vst [vmem:[#allocation6 + $0x210] sm:$0xff] %v346
      %421 = vst [vmem:[#allocation6 + $0x218] sm:$0xff] %v346
      %422 = vst [vmem:[#allocation6 + $0x220] sm:$0xff] %v346
      %423 = vst [vmem:[#allocation6 + $0x228] sm:$0xff] %v346
      %424 = vst [vmem:[#allocation6 + $0x230] sm:$0xff] %v346
      %425 = vst [vmem:[#allocation6 + $0x238] sm:$0xff] %v346
      %426 = vst [vmem:[#allocation6 + $0x240] sm:$0xff] %v347
      %427 = vst [vmem:[#allocation6 + $0x248] sm:$0xff] %v347
      %428 = vst [vmem:[#allocation6 + $0x250] sm:$0xff] %v347
      %429 = vst [vmem:[#allocation6 + $0x258] sm:$0xff] %v347
      %430 = vst [vmem:[#allocation6 + $0x260] sm:$0xff] %v347
      %431 = vst [vmem:[#allocation6 + $0x268] sm:$0xff] %v347
      %432 = vst [vmem:[#allocation6 + $0x270] sm:$0xff] %v347
      %433 = vst [vmem:[#allocation6 + $0x278] sm:$0xff] %v347
      %434 = vst [vmem:[#allocation6 + $0x280] sm:$0xff] %v348
      %435 = vst [vmem:[#allocation6 + $0x288] sm:$0xff] %v348
      %436 = vst [vmem:[#allocation6 + $0x290] sm:$0xff] %v348
      %437 = vst [vmem:[#allocation6 + $0x298] sm:$0xff] %v348
      %438 = vst [vmem:[#allocation6 + $0x2a0] sm:$0xff] %v348
      %439 = vst [vmem:[#allocation6 + $0x2a8] sm:$0xff] %v348
      %440 = vst [vmem:[#allocation6 + $0x2b0] sm:$0xff] %v348
      %441 = vst [vmem:[#allocation6 + $0x2b8] sm:$0xff] %v348
      %442 = vst [vmem:[#allocation6 + $0x2c0] sm:$0xff] %v349
      %443 = vst [vmem:[#allocation6 + $0x2c8] sm:$0xff] %v349
      %444 = vst [vmem:[#allocation6 + $0x2d0] sm:$0xff] %v349
      %445 = vst [vmem:[#allocation6 + $0x2d8] sm:$0xff] %v349
      %446 = vst [vmem:[#allocation6 + $0x2e0] sm:$0xff] %v349
      %447 = vst [vmem:[#allocation6 + $0x2e8] sm:$0xff] %v349
      %448 = vst [vmem:[#allocation6 + $0x2f0] sm:$0xff] %v349
      %449 = vst [vmem:[#allocation6 + $0x2f8] sm:$0xff] %v349
      %450 = vst [vmem:[#allocation6 + $0x300] sm:$0xff] %v350
      %451 = vst [vmem:[#allocation6 + $0x308] sm:$0xff] %v350
      %452 = vst [vmem:[#allocation6 + $0x310] sm:$0xff] %v350
      %453 = vst [vmem:[#allocation6 + $0x318] sm:$0xff] %v350
      %454 = vst [vmem:[#allocation6 + $0x320] sm:$0xff] %v350
      %455 = vst [vmem:[#allocation6 + $0x328] sm:$0xff] %v350
      %456 = vst [vmem:[#allocation6 + $0x330] sm:$0xff] %v350
      %457 = vst [vmem:[#allocation6 + $0x338] sm:$0xff] %v350
      %458 = vst [vmem:[#allocation6 + $0x340] sm:$0xff] %v351
      %459 = vst [vmem:[#allocation6 + $0x348] sm:$0xff] %v351
      %460 = vst [vmem:[#allocation6 + $0x350] sm:$0xff] %v351
      %461 = vst [vmem:[#allocation6 + $0x358] sm:$0xff] %v351
      %462 = vst [vmem:[#allocation6 + $0x360] sm:$0xff] %v351
      %463 = vst [vmem:[#allocation6 + $0x368] sm:$0xff] %v351
      %464 = vst [vmem:[#allocation6 + $0x370] sm:$0xff] %v351
      %465 = vst [vmem:[#allocation6 + $0x378] sm:$0xff] %v351
      %466 = vst [vmem:[#allocation6 + $0x380] sm:$0xff] %v352
      %467 = vst [vmem:[#allocation6 + $0x388] sm:$0xff] %v352
      %468 = vst [vmem:[#allocation6 + $0x390] sm:$0xff] %v352
      %469 = vst [vmem:[#allocation6 + $0x398] sm:$0xff] %v352
      %470 = vst [vmem:[#allocation6 + $0x3a0] sm:$0xff] %v352
      %471 = vst [vmem:[#allocation6 + $0x3a8] sm:$0xff] %v352
      %472 = vst [vmem:[#allocation6 + $0x3b0] sm:$0xff] %v352
      %473 = vst [vmem:[#allocation6 + $0x3b8] sm:$0xff] %v352
      %474 = vst [vmem:[#allocation6 + $0x3c0] sm:$0xff] %v353
      %475 = vst [vmem:[#allocation6 + $0x3c8] sm:$0xff] %v353
      %476 = vst [vmem:[#allocation6 + $0x3d0] sm:$0xff] %v353
      %477 = vst [vmem:[#allocation6 + $0x3d8] sm:$0xff] %v353
      %478 = vst [vmem:[#allocation6 + $0x3e0] sm:$0xff] %v353
      %479 = vst [vmem:[#allocation6 + $0x3e8] sm:$0xff] %v353
      %480 = vst [vmem:[#allocation6 + $0x3f0] sm:$0xff] %v353
      %481 = vst [vmem:[#allocation6 + $0x3f8] sm:$0xff] %v353
      %482 = vst [vmem:[#allocation2] sm:$0xff] 0.0
      %483 = vst [vmem:[#allocation2 + $0x8] sm:$0xff] 0.0
      %484 = vst [vmem:[#allocation2 + $0x10] sm:$0xff] 0.0
      %485 = vst [vmem:[#allocation2 + $0x18] sm:$0xff] 0.0
      %486 = vst [vmem:[#allocation2 + $0x20] sm:$0xff] 0.0
      %487 = vst [vmem:[#allocation2 + $0x28] sm:$0xff] 0.0
      %488 = vst [vmem:[#allocation2 + $0x30] sm:$0xff] 0.0
      %489 = vst [vmem:[#allocation2 + $0x38] sm:$0xff] 0.0
      %490 = vst [vmem:[#allocation2 + $0x40] sm:$0xff] 0.0
      %491 = vst [vmem:[#allocation2 + $0x48] sm:$0xff] 0.0
      %492 = vst [vmem:[#allocation2 + $0x50] sm:$0xff] 0.0
      %493 = vst [vmem:[#allocation2 + $0x58] sm:$0xff] 0.0
      %494 = vst [vmem:[#allocation2 + $0x60] sm:$0xff] 0.0
      %495 = vst [vmem:[#allocation2 + $0x68] sm:$0xff] 0.0
      %496 = vst [vmem:[#allocation2 + $0x70] sm:$0xff] 0.0
      %497 = vst [vmem:[#allocation2 + $0x78] sm:$0xff] 0.0
    $region13: #{tpu_custom_call.1} parent=1 // pred_fallthru
      _
    %v498 = vld [vmem:[#allocation7] ss:$8 sm:$0xf]
    %v499 = vld [vmem:[#allocation7] ss:$8 sm:$0xf0]
    %v500 = vor.u32 %v498, %v499
    %s501 = scalar_lea.vmem [#allocation7], 1
    %v502 = vld [vmem:[%s501] ss:$8 sm:$0xf]
    %v503 = vld [vmem:[%s501] ss:$8 sm:$0xf0]
    %v504 = vor.u32 %v502, %v503
    %s505 = scalar_lea.vmem [#allocation7], 2
    %v506 = vld [vmem:[%s505] ss:$8 sm:$0xf]
    %v507 = vld [vmem:[%s505] ss:$8 sm:$0xf0]
    %v508 = vor.u32 %v506, %v507
    %s509 = scalar_lea.vmem [#allocation7], 3
    %v510 = vld [vmem:[%s509] ss:$8 sm:$0xf]
    %v511 = vld [vmem:[%s509] ss:$8 sm:$0xf0]
    %v512 = vor.u32 %v510, %v511
    %s513 = scalar_lea.vmem [#allocation7], 4
    %v514 = vld [vmem:[%s513] ss:$8 sm:$0xf]
    %v515 = vld [vmem:[%s513] ss:$8 sm:$0xf0]
    %v516 = vor.u32 %v514, %v515
    %s517 = scalar_lea.vmem [#allocation7], 5
    %v518 = vld [vmem:[%s517] ss:$8 sm:$0xf]
    %v519 = vld [vmem:[%s517] ss:$8 sm:$0xf0]
    %v520 = vor.u32 %v518, %v519
    %v521 = vld [vmem:[#allocation4] sm:$0xff]
    %v522 = vld [vmem:[#allocation4 + $0x8] sm:$0xff]
    %v523 = vld [vmem:[#allocation4 + $0x10] sm:$0xff]
    %v524 = vld [vmem:[#allocation4 + $0x18] sm:$0xff]
    %v525 = vld [vmem:[#allocation4 + $0x20] sm:$0xff]
    %v526 = vld [vmem:[#allocation4 + $0x28] sm:$0xff]
    %v527 = vld [vmem:[#allocation4 + $0x30] sm:$0xff]
    %v528 = vld [vmem:[#allocation4 + $0x38] sm:$0xff]
    %v529 = vld [vmem:[#allocation4 + $0x40] sm:$0xff]
    %v530 = vld [vmem:[#allocation4 + $0x48] sm:$0xff]
    %v531 = vld [vmem:[#allocation4 + $0x50] sm:$0xff]
    %v532 = vld [vmem:[#allocation4 + $0x58] sm:$0xff]
    %v533 = vld [vmem:[#allocation4 + $0x60] sm:$0xff]
    %v534 = vld [vmem:[#allocation4 + $0x68] sm:$0xff]
    %v535 = vld [vmem:[#allocation4 + $0x70] sm:$0xff]
    %v536 = vld [vmem:[#allocation4 + $0x78] sm:$0xff]
    %v537 = vld [vmem:[#allocation4 + $0x80] sm:$0xff]
    %v538 = vld [vmem:[#allocation4 + $0x88] sm:$0xff]
    %v539 = vld [vmem:[#allocation4 + $0x90] sm:$0xff]
    %v540 = vld [vmem:[#allocation4 + $0x98] sm:$0xff]
    %v541 = vld [vmem:[#allocation4 + $0xa0] sm:$0xff]
    %v542 = vld [vmem:[#allocation4 + $0xa8] sm:$0xff]
    %v543 = vld [vmem:[#allocation4 + $0xb0] sm:$0xff]
    %v544 = vld [vmem:[#allocation4 + $0xb8] sm:$0xff]
    %v545 = vld [vmem:[#allocation4 + $0xc0] sm:$0xff]
    %v546 = vld [vmem:[#allocation4 + $0xc8] sm:$0xff]
    %v547 = vld [vmem:[#allocation4 + $0xd0] sm:$0xff]
    %v548 = vld [vmem:[#allocation4 + $0xd8] sm:$0xff]
    %v549 = vld [vmem:[#allocation4 + $0xe0] sm:$0xff]
    %v550 = vld [vmem:[#allocation4 + $0xe8] sm:$0xff]
    %v551 = vld [vmem:[#allocation4 + $0xf0] sm:$0xff]
    %v552 = vld [vmem:[#allocation4 + $0xf8] sm:$0xff]
    %v553 = vld [vmem:[#allocation4 + $0x100] sm:$0xff]
    %v554 = vld [vmem:[#allocation4 + $0x108] sm:$0xff]
    %v555 = vld [vmem:[#allocation4 + $0x110] sm:$0xff]
    %v556 = vld [vmem:[#allocation4 + $0x118] sm:$0xff]
    %v557 = vld [vmem:[#allocation4 + $0x120] sm:$0xff]
    %v558 = vld [vmem:[#allocation4 + $0x128] sm:$0xff]
    %v559 = vld [vmem:[#allocation4 + $0x130] sm:$0xff]
    %v560 = vld [vmem:[#allocation4 + $0x138] sm:$0xff]
    %v561 = vld [vmem:[#allocation4 + $0x140] sm:$0xff]
    %v562 = vld [vmem:[#allocation4 + $0x148] sm:$0xff]
    %v563 = vld [vmem:[#allocation4 + $0x150] sm:$0xff]
    %v564 = vld [vmem:[#allocation4 + $0x158] sm:$0xff]
    %v565 = vld [vmem:[#allocation4 + $0x160] sm:$0xff]
    %v566 = vld [vmem:[#allocation4 + $0x168] sm:$0xff]
    %v567 = vld [vmem:[#allocation4 + $0x170] sm:$0xff]
    %v568 = vld [vmem:[#allocation4 + $0x178] sm:$0xff]
    %v569 = vld [vmem:[#allocation4 + $0x180] sm:$0xff]
    %v570 = vld [vmem:[#allocation4 + $0x188] sm:$0xff]
    %v571 = vld [vmem:[#allocation4 + $0x190] sm:$0xff]
    %v572 = vld [vmem:[#allocation4 + $0x198] sm:$0xff]
    %v573 = vld [vmem:[#allocation4 + $0x1a0] sm:$0xff]
    %v574 = vld [vmem:[#allocation4 + $0x1a8] sm:$0xff]
    %v575 = vld [vmem:[#allocation4 + $0x1b0] sm:$0xff]
    %v576 = vld [vmem:[#allocation4 + $0x1b8] sm:$0xff]
    %v577 = vld [vmem:[#allocation4 + $0x1c0] sm:$0xff]
    %v578 = vld [vmem:[#allocation4 + $0x1c8] sm:$0xff]
    %v579 = vld [vmem:[#allocation4 + $0x1d0] sm:$0xff]
    %v580 = vld [vmem:[#allocation4 + $0x1d8] sm:$0xff]
    %v581 = vld [vmem:[#allocation4 + $0x1e0] sm:$0xff]
    %v582 = vld [vmem:[#allocation4 + $0x1e8] sm:$0xff]
    %v583 = vld [vmem:[#allocation4 + $0x1f0] sm:$0xff]
    %v584 = vld [vmem:[#allocation4 + $0x1f8] sm:$0xff]
    %v586 = vperm.slane %v504, 0
    %v587 = vperm.slane %v504, 1
    %v588 = vperm.slane %v504, 2
    %v589 = vperm.slane %v504, 3
    %v590 = vperm.slane %v504, 4
    %v591 = vperm.slane %v504, 5
    %v592 = vperm.slane %v504, 6
    %v593 = vperm.slane %v504, 7
    %v602 = vmin.f32 %v586, %v521
    %v603 = vmin.f32 %v587, %v522
    %v604 = vmin.f32 %v588, %v523
    %v605 = vmin.f32 %v589, %v524
    %v606 = vmin.f32 %v590, %v525
    %v607 = vmin.f32 %v591, %v526
    %v608 = vmin.f32 %v592, %v527
    %v609 = vmin.f32 %v593, %v528
    %v610 = vmin.f32 %v586, %v529
    %v611 = vmin.f32 %v587, %v530
    %v612 = vmin.f32 %v588, %v531
    %v613 = vmin.f32 %v589, %v532
    %v614 = vmin.f32 %v590, %v533
    %v615 = vmin.f32 %v591, %v534
    %v616 = vmin.f32 %v592, %v535
    %v617 = vmin.f32 %v593, %v536
    %v618 = vmin.f32 %v586, %v537
    %v619 = vmin.f32 %v587, %v538
    %v620 = vmin.f32 %v588, %v539
    %v621 = vmin.f32 %v589, %v540
    %v622 = vmin.f32 %v590, %v541
    %v623 = vmin.f32 %v591, %v542
    %v624 = vmin.f32 %v592, %v543
    %v625 = vmin.f32 %v593, %v544
    %v626 = vmin.f32 %v586, %v545
    %v627 = vmin.f32 %v587, %v546
    %v628 = vmin.f32 %v588, %v547
    %v629 = vmin.f32 %v589, %v548
    %v630 = vmin.f32 %v590, %v549
    %v631 = vmin.f32 %v591, %v550
    %v632 = vmin.f32 %v592, %v551
    %v633 = vmin.f32 %v593, %v552
    %v634 = vmin.f32 %v586, %v553
    %v635 = vmin.f32 %v587, %v554
    %v636 = vmin.f32 %v588, %v555
    %v637 = vmin.f32 %v589, %v556
    %v638 = vmin.f32 %v590, %v557
    %v639 = vmin.f32 %v591, %v558
    %v640 = vmin.f32 %v592, %v559
    %v641 = vmin.f32 %v593, %v560
    %v642 = vmin.f32 %v586, %v561
    %v643 = vmin.f32 %v587, %v562
    %v644 = vmin.f32 %v588, %v563
    %v645 = vmin.f32 %v589, %v564
    %v646 = vmin.f32 %v590, %v565
    %v647 = vmin.f32 %v591, %v566
    %v648 = vmin.f32 %v592, %v567
    %v649 = vmin.f32 %v593, %v568
    %v650 = vmin.f32 %v586, %v569
    %v651 = vmin.f32 %v587, %v570
    %v652 = vmin.f32 %v588, %v571
    %v653 = vmin.f32 %v589, %v572
    %v654 = vmin.f32 %v590, %v573
    %v655 = vmin.f32 %v591, %v574
    %v656 = vmin.f32 %v592, %v575
    %v657 = vmin.f32 %v593, %v576
    %v658 = vmin.f32 %v586, %v577
    %v659 = vmin.f32 %v587, %v578
    %v660 = vmin.f32 %v588, %v579
    %v661 = vmin.f32 %v589, %v580
    %v662 = vmin.f32 %v590, %v581
    %v663 = vmin.f32 %v591, %v582
    %v664 = vmin.f32 %v592, %v583
    %v665 = vmin.f32 %v593, %v584
    %v666 = vld [vmem:[#allocation3] sm:$0xff]
    %v667 = vld [vmem:[#allocation3 + $0x8] sm:$0xff]
    %v668 = vld [vmem:[#allocation3 + $0x10] sm:$0xff]
    %v669 = vld [vmem:[#allocation3 + $0x18] sm:$0xff]
    %v670 = vld [vmem:[#allocation3 + $0x20] sm:$0xff]
    %v671 = vld [vmem:[#allocation3 + $0x28] sm:$0xff]
    %v672 = vld [vmem:[#allocation3 + $0x30] sm:$0xff]
    %v673 = vld [vmem:[#allocation3 + $0x38] sm:$0xff]
    %v674 = vld [vmem:[#allocation3 + $0x40] sm:$0xff]
    %v675 = vld [vmem:[#allocation3 + $0x48] sm:$0xff]
    %v676 = vld [vmem:[#allocation3 + $0x50] sm:$0xff]
    %v677 = vld [vmem:[#allocation3 + $0x58] sm:$0xff]
    %v678 = vld [vmem:[#allocation3 + $0x60] sm:$0xff]
    %v679 = vld [vmem:[#allocation3 + $0x68] sm:$0xff]
    %v680 = vld [vmem:[#allocation3 + $0x70] sm:$0xff]
    %v681 = vld [vmem:[#allocation3 + $0x78] sm:$0xff]
    %v682 = vld [vmem:[#allocation3 + $0x80] sm:$0xff]
    %v683 = vld [vmem:[#allocation3 + $0x88] sm:$0xff]
    %v684 = vld [vmem:[#allocation3 + $0x90] sm:$0xff]
    %v685 = vld [vmem:[#allocation3 + $0x98] sm:$0xff]
    %v686 = vld [vmem:[#allocation3 + $0xa0] sm:$0xff]
    %v687 = vld [vmem:[#allocation3 + $0xa8] sm:$0xff]
    %v688 = vld [vmem:[#allocation3 + $0xb0] sm:$0xff]
    %v689 = vld [vmem:[#allocation3 + $0xb8] sm:$0xff]
    %v690 = vld [vmem:[#allocation3 + $0xc0] sm:$0xff]
    %v691 = vld [vmem:[#allocation3 + $0xc8] sm:$0xff]
    %v692 = vld [vmem:[#allocation3 + $0xd0] sm:$0xff]
    %v693 = vld [vmem:[#allocation3 + $0xd8] sm:$0xff]
    %v694 = vld [vmem:[#allocation3 + $0xe0] sm:$0xff]
    %v695 = vld [vmem:[#allocation3 + $0xe8] sm:$0xff]
    %v696 = vld [vmem:[#allocation3 + $0xf0] sm:$0xff]
    %v697 = vld [vmem:[#allocation3 + $0xf8] sm:$0xff]
    %v698 = vld [vmem:[#allocation3 + $0x100] sm:$0xff]
    %v699 = vld [vmem:[#allocation3 + $0x108] sm:$0xff]
    %v700 = vld [vmem:[#allocation3 + $0x110] sm:$0xff]
    %v701 = vld [vmem:[#allocation3 + $0x118] sm:$0xff]
    %v702 = vld [vmem:[#allocation3 + $0x120] sm:$0xff]
    %v703 = vld [vmem:[#allocation3 + $0x128] sm:$0xff]
    %v704 = vld [vmem:[#allocation3 + $0x130] sm:$0xff]
    %v705 = vld [vmem:[#allocation3 + $0x138] sm:$0xff]
    %v706 = vld [vmem:[#allocation3 + $0x140] sm:$0xff]
    %v707 = vld [vmem:[#allocation3 + $0x148] sm:$0xff]
    %v708 = vld [vmem:[#allocation3 + $0x150] sm:$0xff]
    %v709 = vld [vmem:[#allocation3 + $0x158] sm:$0xff]
    %v710 = vld [vmem:[#allocation3 + $0x160] sm:$0xff]
    %v711 = vld [vmem:[#allocation3 + $0x168] sm:$0xff]
    %v712 = vld [vmem:[#allocation3 + $0x170] sm:$0xff]
    %v713 = vld [vmem:[#allocation3 + $0x178] sm:$0xff]
    %v714 = vld [vmem:[#allocation3 + $0x180] sm:$0xff]
    %v715 = vld [vmem:[#allocation3 + $0x188] sm:$0xff]
    %v716 = vld [vmem:[#allocation3 + $0x190] sm:$0xff]
    %v717 = vld [vmem:[#allocation3 + $0x198] sm:$0xff]
    %v718 = vld [vmem:[#allocation3 + $0x1a0] sm:$0xff]
    %v719 = vld [vmem:[#allocation3 + $0x1a8] sm:$0xff]
    %v720 = vld [vmem:[#allocation3 + $0x1b0] sm:$0xff]
    %v721 = vld [vmem:[#allocation3 + $0x1b8] sm:$0xff]
    %v722 = vld [vmem:[#allocation3 + $0x1c0] sm:$0xff]
    %v723 = vld [vmem:[#allocation3 + $0x1c8] sm:$0xff]
    %v724 = vld [vmem:[#allocation3 + $0x1d0] sm:$0xff]
    %v725 = vld [vmem:[#allocation3 + $0x1d8] sm:$0xff]
    %v726 = vld [vmem:[#allocation3 + $0x1e0] sm:$0xff]
    %v727 = vld [vmem:[#allocation3 + $0x1e8] sm:$0xff]
    %v728 = vld [vmem:[#allocation3 + $0x1f0] sm:$0xff]
    %v729 = vld [vmem:[#allocation3 + $0x1f8] sm:$0xff]
    %v731 = vperm.slane %v500, 0
    %v732 = vperm.slane %v500, 1
    %v733 = vperm.slane %v500, 2
    %v734 = vperm.slane %v500, 3
    %v735 = vperm.slane %v500, 4
    %v736 = vperm.slane %v500, 5
    %v737 = vperm.slane %v500, 6
    %v738 = vperm.slane %v500, 7
    %v747 = vmax.f32 %v731, %v666
    %v748 = vmax.f32 %v732, %v667
    %v749 = vmax.f32 %v733, %v668
    %v750 = vmax.f32 %v734, %v669
    %v751 = vmax.f32 %v735, %v670
    %v752 = vmax.f32 %v736, %v671
    %v753 = vmax.f32 %v737, %v672
    %v754 = vmax.f32 %v738, %v673
    %v755 = vmax.f32 %v731, %v674
    %v756 = vmax.f32 %v732, %v675
    %v757 = vmax.f32 %v733, %v676
    %v758 = vmax.f32 %v734, %v677
    %v759 = vmax.f32 %v735, %v678
    %v760 = vmax.f32 %v736, %v679
    %v761 = vmax.f32 %v737, %v680
    %v762 = vmax.f32 %v738, %v681
    %v763 = vmax.f32 %v731, %v682
    %v764 = vmax.f32 %v732, %v683
    %v765 = vmax.f32 %v733, %v684
    %v766 = vmax.f32 %v734, %v685
    %v767 = vmax.f32 %v735, %v686
    %v768 = vmax.f32 %v736, %v687
    %v769 = vmax.f32 %v737, %v688
    %v770 = vmax.f32 %v738, %v689
    %v771 = vmax.f32 %v731, %v690
    %v772 = vmax.f32 %v732, %v691
    %v773 = vmax.f32 %v733, %v692
    %v774 = vmax.f32 %v734, %v693
    %v775 = vmax.f32 %v735, %v694
    %v776 = vmax.f32 %v736, %v695
    %v777 = vmax.f32 %v737, %v696
    %v778 = vmax.f32 %v738, %v697
    %v779 = vmax.f32 %v731, %v698
    %v780 = vmax.f32 %v732, %v699
    %v781 = vmax.f32 %v733, %v700
    %v782 = vmax.f32 %v734, %v701
    %v783 = vmax.f32 %v735, %v702
    %v784 = vmax.f32 %v736, %v703
    %v785 = vmax.f32 %v737, %v704
    %v786 = vmax.f32 %v738, %v705
    %v787 = vmax.f32 %v731, %v706
    %v788 = vmax.f32 %v732, %v707
    %v789 = vmax.f32 %v733, %v708
    %v790 = vmax.f32 %v734, %v709
    %v791 = vmax.f32 %v735, %v710
    %v792 = vmax.f32 %v736, %v711
    %v793 = vmax.f32 %v737, %v712
    %v794 = vmax.f32 %v738, %v713
    %v795 = vmax.f32 %v731, %v714
    %v796 = vmax.f32 %v732, %v715
    %v797 = vmax.f32 %v733, %v716
    %v798 = vmax.f32 %v734, %v717
    %v799 = vmax.f32 %v735, %v718
    %v800 = vmax.f32 %v736, %v719
    %v801 = vmax.f32 %v737, %v720
    %v802 = vmax.f32 %v738, %v721
    %v803 = vmax.f32 %v731, %v722
    %v804 = vmax.f32 %v732, %v723
    %v805 = vmax.f32 %v733, %v724
    %v806 = vmax.f32 %v734, %v725
    %v807 = vmax.f32 %v735, %v726
    %v808 = vmax.f32 %v736, %v727
    %v809 = vmax.f32 %v737, %v728
    %v810 = vmax.f32 %v738, %v729
    %v811 = vsub.f32 %v602, %v747
    %v812 = vsub.f32 %v603, %v748
    %v813 = vsub.f32 %v604, %v749
    %v814 = vsub.f32 %v605, %v750
    %v815 = vsub.f32 %v606, %v751
    %v816 = vsub.f32 %v607, %v752
    %v817 = vsub.f32 %v608, %v753
    %v818 = vsub.f32 %v609, %v754
    %v819 = vsub.f32 %v610, %v755
    %v820 = vsub.f32 %v611, %v756
    %v821 = vsub.f32 %v612, %v757
    %v822 = vsub.f32 %v613, %v758
    %v823 = vsub.f32 %v614, %v759
    %v824 = vsub.f32 %v615, %v760
    %v825 = vsub.f32 %v616, %v761
    %v826 = vsub.f32 %v617, %v762
    %v827 = vsub.f32 %v618, %v763
    %v828 = vsub.f32 %v619, %v764
    %v829 = vsub.f32 %v620, %v765
    %v830 = vsub.f32 %v621, %v766
    %v831 = vsub.f32 %v622, %v767
    %v832 = vsub.f32 %v623, %v768
    %v833 = vsub.f32 %v624, %v769
    %v834 = vsub.f32 %v625, %v770
    %v835 = vsub.f32 %v626, %v771
    %v836 = vsub.f32 %v627, %v772
    %v837 = vsub.f32 %v628, %v773
    %v838 = vsub.f32 %v629, %v774
    %v839 = vsub.f32 %v630, %v775
    %v840 = vsub.f32 %v631, %v776
    %v841 = vsub.f32 %v632, %v777
    %v842 = vsub.f32 %v633, %v778
    %v843 = vsub.f32 %v634, %v779
    %v844 = vsub.f32 %v635, %v780
    %v845 = vsub.f32 %v636, %v781
    %v846 = vsub.f32 %v637, %v782
    %v847 = vsub.f32 %v638, %v783
    %v848 = vsub.f32 %v639, %v784
    %v849 = vsub.f32 %v640, %v785
    %v850 = vsub.f32 %v641, %v786
    %v851 = vsub.f32 %v642, %v787
    %v852 = vsub.f32 %v643, %v788
    %v853 = vsub.f32 %v644, %v789
    %v854 = vsub.f32 %v645, %v790
    %v855 = vsub.f32 %v646, %v791
    %v856 = vsub.f32 %v647, %v792
    %v857 = vsub.f32 %v648, %v793
    %v858 = vsub.f32 %v649, %v794
    %v859 = vsub.f32 %v650, %v795
    %v860 = vsub.f32 %v651, %v796
    %v861 = vsub.f32 %v652, %v797
    %v862 = vsub.f32 %v653, %v798
    %v863 = vsub.f32 %v654, %v799
    %v864 = vsub.f32 %v655, %v800
    %v865 = vsub.f32 %v656, %v801
    %v866 = vsub.f32 %v657, %v802
    %v867 = vsub.f32 %v658, %v803
    %v868 = vsub.f32 %v659, %v804
    %v869 = vsub.f32 %v660, %v805
    %v870 = vsub.f32 %v661, %v806
    %v871 = vsub.f32 %v662, %v807
    %v872 = vsub.f32 %v663, %v808
    %v873 = vsub.f32 %v664, %v809
    %v874 = vsub.f32 %v665, %v810
    %v875 = vmax.f32 %v811, 0.0
    %v876 = vmax.f32 %v812, 0.0
    %v877 = vmax.f32 %v813, 0.0
    %v878 = vmax.f32 %v814, 0.0
    %v879 = vmax.f32 %v815, 0.0
    %v880 = vmax.f32 %v816, 0.0
    %v881 = vmax.f32 %v817, 0.0
    %v882 = vmax.f32 %v818, 0.0
    %v883 = vmax.f32 %v819, 0.0
    %v884 = vmax.f32 %v820, 0.0
    %v885 = vmax.f32 %v821, 0.0
    %v886 = vmax.f32 %v822, 0.0
    %v887 = vmax.f32 %v823, 0.0
    %v888 = vmax.f32 %v824, 0.0
    %v889 = vmax.f32 %v825, 0.0
    %v890 = vmax.f32 %v826, 0.0
    %v891 = vmax.f32 %v827, 0.0
    %v892 = vmax.f32 %v828, 0.0
    %v893 = vmax.f32 %v829, 0.0
    %v894 = vmax.f32 %v830, 0.0
    %v895 = vmax.f32 %v831, 0.0
    %v896 = vmax.f32 %v832, 0.0
    %v897 = vmax.f32 %v833, 0.0
    %v898 = vmax.f32 %v834, 0.0
    %v899 = vmax.f32 %v835, 0.0
    %v900 = vmax.f32 %v836, 0.0
    %v901 = vmax.f32 %v837, 0.0
    %v902 = vmax.f32 %v838, 0.0
    %v903 = vmax.f32 %v839, 0.0
    %v904 = vmax.f32 %v840, 0.0
    %v905 = vmax.f32 %v841, 0.0
    %v906 = vmax.f32 %v842, 0.0
    %v907 = vmax.f32 %v843, 0.0
    %v908 = vmax.f32 %v844, 0.0
    %v909 = vmax.f32 %v845, 0.0
    %v910 = vmax.f32 %v846, 0.0
    %v911 = vmax.f32 %v847, 0.0
    %v912 = vmax.f32 %v848, 0.0
    %v913 = vmax.f32 %v849, 0.0
    %v914 = vmax.f32 %v850, 0.0
    %v915 = vmax.f32 %v851, 0.0
    %v916 = vmax.f32 %v852, 0.0
    %v917 = vmax.f32 %v853, 0.0
    %v918 = vmax.f32 %v854, 0.0
    %v919 = vmax.f32 %v855, 0.0
    %v920 = vmax.f32 %v856, 0.0
    %v921 = vmax.f32 %v857, 0.0
    %v922 = vmax.f32 %v858, 0.0
    %v923 = vmax.f32 %v859, 0.0
    %v924 = vmax.f32 %v860, 0.0
    %v925 = vmax.f32 %v861, 0.0
    %v926 = vmax.f32 %v862, 0.0
    %v927 = vmax.f32 %v863, 0.0
    %v928 = vmax.f32 %v864, 0.0
    %v929 = vmax.f32 %v865, 0.0
    %v930 = vmax.f32 %v866, 0.0
    %v931 = vmax.f32 %v867, 0.0
    %v932 = vmax.f32 %v868, 0.0
    %v933 = vmax.f32 %v869, 0.0
    %v934 = vmax.f32 %v870, 0.0
    %v935 = vmax.f32 %v871, 0.0
    %v936 = vmax.f32 %v872, 0.0
    %v937 = vmax.f32 %v873, 0.0
    %v938 = vmax.f32 %v874, 0.0
    %v939 = vld [vmem:[#allocation6] sm:$0xff]
    %v940 = vld [vmem:[#allocation6 + $0x8] sm:$0xff]
    %v941 = vld [vmem:[#allocation6 + $0x10] sm:$0xff]
    %v942 = vld [vmem:[#allocation6 + $0x18] sm:$0xff]
    %v943 = vld [vmem:[#allocation6 + $0x20] sm:$0xff]
    %v944 = vld [vmem:[#allocation6 + $0x28] sm:$0xff]
    %v945 = vld [vmem:[#allocation6 + $0x30] sm:$0xff]
    %v946 = vld [vmem:[#allocation6 + $0x38] sm:$0xff]
    %v947 = vld [vmem:[#allocation6 + $0x40] sm:$0xff]
    %v948 = vld [vmem:[#allocation6 + $0x48] sm:$0xff]
    %v949 = vld [vmem:[#allocation6 + $0x50] sm:$0xff]
    %v950 = vld [vmem:[#allocation6 + $0x58] sm:$0xff]
    %v951 = vld [vmem:[#allocation6 + $0x60] sm:$0xff]
    %v952 = vld [vmem:[#allocation6 + $0x68] sm:$0xff]
    %v953 = vld [vmem:[#allocation6 + $0x70] sm:$0xff]
    %v954 = vld [vmem:[#allocation6 + $0x78] sm:$0xff]
    %v955 = vld [vmem:[#allocation6 + $0x80] sm:$0xff]
    %v956 = vld [vmem:[#allocation6 + $0x88] sm:$0xff]
    %v957 = vld [vmem:[#allocation6 + $0x90] sm:$0xff]
    %v958 = vld [vmem:[#allocation6 + $0x98] sm:$0xff]
    %v959 = vld [vmem:[#allocation6 + $0xa0] sm:$0xff]
    %v960 = vld [vmem:[#allocation6 + $0xa8] sm:$0xff]
    %v961 = vld [vmem:[#allocation6 + $0xb0] sm:$0xff]
    %v962 = vld [vmem:[#allocation6 + $0xb8] sm:$0xff]
    %v963 = vld [vmem:[#allocation6 + $0xc0] sm:$0xff]
    %v964 = vld [vmem:[#allocation6 + $0xc8] sm:$0xff]
    %v965 = vld [vmem:[#allocation6 + $0xd0] sm:$0xff]
    %v966 = vld [vmem:[#allocation6 + $0xd8] sm:$0xff]
    %v967 = vld [vmem:[#allocation6 + $0xe0] sm:$0xff]
    %v968 = vld [vmem:[#allocation6 + $0xe8] sm:$0xff]
    %v969 = vld [vmem:[#allocation6 + $0xf0] sm:$0xff]
    %v970 = vld [vmem:[#allocation6 + $0xf8] sm:$0xff]
    %v971 = vld [vmem:[#allocation6 + $0x100] sm:$0xff]
    %v972 = vld [vmem:[#allocation6 + $0x108] sm:$0xff]
    %v973 = vld [vmem:[#allocation6 + $0x110] sm:$0xff]
    %v974 = vld [vmem:[#allocation6 + $0x118] sm:$0xff]
    %v975 = vld [vmem:[#allocation6 + $0x120] sm:$0xff]
    %v976 = vld [vmem:[#allocation6 + $0x128] sm:$0xff]
    %v977 = vld [vmem:[#allocation6 + $0x130] sm:$0xff]
    %v978 = vld [vmem:[#allocation6 + $0x138] sm:$0xff]
    %v979 = vld [vmem:[#allocation6 + $0x140] sm:$0xff]
    %v980 = vld [vmem:[#allocation6 + $0x148] sm:$0xff]
    %v981 = vld [vmem:[#allocation6 + $0x150] sm:$0xff]
    %v982 = vld [vmem:[#allocation6 + $0x158] sm:$0xff]
    %v983 = vld [vmem:[#allocation6 + $0x160] sm:$0xff]
    %v984 = vld [vmem:[#allocation6 + $0x168] sm:$0xff]
    %v985 = vld [vmem:[#allocation6 + $0x170] sm:$0xff]
    %v986 = vld [vmem:[#allocation6 + $0x178] sm:$0xff]
    %v987 = vld [vmem:[#allocation6 + $0x180] sm:$0xff]
    %v988 = vld [vmem:[#allocation6 + $0x188] sm:$0xff]
    %v989 = vld [vmem:[#allocation6 + $0x190] sm:$0xff]
    %v990 = vld [vmem:[#allocation6 + $0x198] sm:$0xff]
    %v991 = vld [vmem:[#allocation6 + $0x1a0] sm:$0xff]
    %v992 = vld [vmem:[#allocation6 + $0x1a8] sm:$0xff]
    %v993 = vld [vmem:[#allocation6 + $0x1b0] sm:$0xff]
    %v994 = vld [vmem:[#allocation6 + $0x1b8] sm:$0xff]
    %v995 = vld [vmem:[#allocation6 + $0x1c0] sm:$0xff]
    %v996 = vld [vmem:[#allocation6 + $0x1c8] sm:$0xff]
    %v997 = vld [vmem:[#allocation6 + $0x1d0] sm:$0xff]
    %v998 = vld [vmem:[#allocation6 + $0x1d8] sm:$0xff]
    %v999 = vld [vmem:[#allocation6 + $0x1e0] sm:$0xff]
    %v1000 = vld [vmem:[#allocation6 + $0x1e8] sm:$0xff]
    %v1001 = vld [vmem:[#allocation6 + $0x1f0] sm:$0xff]
    %v1002 = vld [vmem:[#allocation6 + $0x1f8] sm:$0xff]
    %v1003 = vld [vmem:[#allocation6 + $0x200] sm:$0xff]
    %v1004 = vld [vmem:[#allocation6 + $0x208] sm:$0xff]
    %v1005 = vld [vmem:[#allocation6 + $0x210] sm:$0xff]
    %v1006 = vld [vmem:[#allocation6 + $0x218] sm:$0xff]
    %v1007 = vld [vmem:[#allocation6 + $0x220] sm:$0xff]
    %v1008 = vld [vmem:[#allocation6 + $0x228] sm:$0xff]
    %v1009 = vld [vmem:[#allocation6 + $0x230] sm:$0xff]
    %v1010 = vld [vmem:[#allocation6 + $0x238] sm:$0xff]
    %v1011 = vld [vmem:[#allocation6 + $0x240] sm:$0xff]
    %v1012 = vld [vmem:[#allocation6 + $0x248] sm:$0xff]
    %v1013 = vld [vmem:[#allocation6 + $0x250] sm:$0xff]
    %v1014 = vld [vmem:[#allocation6 + $0x258] sm:$0xff]
    %v1015 = vld [vmem:[#allocation6 + $0x260] sm:$0xff]
    %v1016 = vld [vmem:[#allocation6 + $0x268] sm:$0xff]
    %v1017 = vld [vmem:[#allocation6 + $0x270] sm:$0xff]
    %v1018 = vld [vmem:[#allocation6 + $0x278] sm:$0xff]
    %v1019 = vld [vmem:[#allocation6 + $0x280] sm:$0xff]
    %v1020 = vld [vmem:[#allocation6 + $0x288] sm:$0xff]
    %v1021 = vld [vmem:[#allocation6 + $0x290] sm:$0xff]
    %v1022 = vld [vmem:[#allocation6 + $0x298] sm:$0xff]
    %v1023 = vld [vmem:[#allocation6 + $0x2a0] sm:$0xff]
    %v1024 = vld [vmem:[#allocation6 + $0x2a8] sm:$0xff]
    %v1025 = vld [vmem:[#allocation6 + $0x2b0] sm:$0xff]
    %v1026 = vld [vmem:[#allocation6 + $0x2b8] sm:$0xff]
    %v1027 = vld [vmem:[#allocation6 + $0x2c0] sm:$0xff]
    %v1028 = vld [vmem:[#allocation6 + $0x2c8] sm:$0xff]
    %v1029 = vld [vmem:[#allocation6 + $0x2d0] sm:$0xff]
    %v1030 = vld [vmem:[#allocation6 + $0x2d8] sm:$0xff]
    %v1031 = vld [vmem:[#allocation6 + $0x2e0] sm:$0xff]
    %v1032 = vld [vmem:[#allocation6 + $0x2e8] sm:$0xff]
    %v1033 = vld [vmem:[#allocation6 + $0x2f0] sm:$0xff]
    %v1034 = vld [vmem:[#allocation6 + $0x2f8] sm:$0xff]
    %v1035 = vld [vmem:[#allocation6 + $0x300] sm:$0xff]
    %v1036 = vld [vmem:[#allocation6 + $0x308] sm:$0xff]
    %v1037 = vld [vmem:[#allocation6 + $0x310] sm:$0xff]
    %v1038 = vld [vmem:[#allocation6 + $0x318] sm:$0xff]
    %v1039 = vld [vmem:[#allocation6 + $0x320] sm:$0xff]
    %v1040 = vld [vmem:[#allocation6 + $0x328] sm:$0xff]
    %v1041 = vld [vmem:[#allocation6 + $0x330] sm:$0xff]
    %v1042 = vld [vmem:[#allocation6 + $0x338] sm:$0xff]
    %v1043 = vld [vmem:[#allocation6 + $0x340] sm:$0xff]
    %v1044 = vld [vmem:[#allocation6 + $0x348] sm:$0xff]
    %v1045 = vld [vmem:[#allocation6 + $0x350] sm:$0xff]
    %v1046 = vld [vmem:[#allocation6 + $0x358] sm:$0xff]
    %v1047 = vld [vmem:[#allocation6 + $0x360] sm:$0xff]
    %v1048 = vld [vmem:[#allocation6 + $0x368] sm:$0xff]
    %v1049 = vld [vmem:[#allocation6 + $0x370] sm:$0xff]
    %v1050 = vld [vmem:[#allocation6 + $0x378] sm:$0xff]
    %v1051 = vld [vmem:[#allocation6 + $0x380] sm:$0xff]
    %v1052 = vld [vmem:[#allocation6 + $0x388] sm:$0xff]
    %v1053 = vld [vmem:[#allocation6 + $0x390] sm:$0xff]
    %v1054 = vld [vmem:[#allocation6 + $0x398] sm:$0xff]
    %v1055 = vld [vmem:[#allocation6 + $0x3a0] sm:$0xff]
    %v1056 = vld [vmem:[#allocation6 + $0x3a8] sm:$0xff]
    %v1057 = vld [vmem:[#allocation6 + $0x3b0] sm:$0xff]
    %v1058 = vld [vmem:[#allocation6 + $0x3b8] sm:$0xff]
    %v1059 = vld [vmem:[#allocation6 + $0x3c0] sm:$0xff]
    %v1060 = vld [vmem:[#allocation6 + $0x3c8] sm:$0xff]
    %v1061 = vld [vmem:[#allocation6 + $0x3d0] sm:$0xff]
    %v1062 = vld [vmem:[#allocation6 + $0x3d8] sm:$0xff]
    %v1063 = vld [vmem:[#allocation6 + $0x3e0] sm:$0xff]
    %v1064 = vld [vmem:[#allocation6 + $0x3e8] sm:$0xff]
    %v1065 = vld [vmem:[#allocation6 + $0x3f0] sm:$0xff]
    %v1066 = vld [vmem:[#allocation6 + $0x3f8] sm:$0xff]
    %v1068 = vperm.slane %v512, 0
    %v1069 = vperm.slane %v512, 1
    %v1070 = vperm.slane %v512, 2
    %v1071 = vperm.slane %v512, 3
    %v1072 = vperm.slane %v512, 4
    %v1073 = vperm.slane %v512, 5
    %v1074 = vperm.slane %v512, 6
    %v1075 = vperm.slane %v512, 7
    %v1084 = vmin.f32 %v1068, %v939
    %v1085 = vmin.f32 %v1069, %v940
    %v1086 = vmin.f32 %v1070, %v941
    %v1087 = vmin.f32 %v1071, %v942
    %v1088 = vmin.f32 %v1072, %v943
    %v1089 = vmin.f32 %v1073, %v944
    %v1090 = vmin.f32 %v1074, %v945
    %v1091 = vmin.f32 %v1075, %v946
    %v1092 = vmin.f32 %v1068, %v947
    %v1093 = vmin.f32 %v1069, %v948
    %v1094 = vmin.f32 %v1070, %v949
    %v1095 = vmin.f32 %v1071, %v950
    %v1096 = vmin.f32 %v1072, %v951
    %v1097 = vmin.f32 %v1073, %v952
    %v1098 = vmin.f32 %v1074, %v953
    %v1099 = vmin.f32 %v1075, %v954
    %v1100 = vmin.f32 %v1068, %v955
    %v1101 = vmin.f32 %v1069, %v956
    %v1102 = vmin.f32 %v1070, %v957
    %v1103 = vmin.f32 %v1071, %v958
    %v1104 = vmin.f32 %v1072, %v959
    %v1105 = vmin.f32 %v1073, %v960
    %v1106 = vmin.f32 %v1074, %v961
    %v1107 = vmin.f32 %v1075, %v962
    %v1108 = vmin.f32 %v1068, %v963
    %v1109 = vmin.f32 %v1069, %v964
    %v1110 = vmin.f32 %v1070, %v965
    %v1111 = vmin.f32 %v1071, %v966
    %v1112 = vmin.f32 %v1072, %v967
    %v1113 = vmin.f32 %v1073, %v968
    %v1114 = vmin.f32 %v1074, %v969
    %v1115 = vmin.f32 %v1075, %v970
    %v1116 = vmin.f32 %v1068, %v971
    %v1117 = vmin.f32 %v1069, %v972
    %v1118 = vmin.f32 %v1070, %v973
    %v1119 = vmin.f32 %v1071, %v974
    %v1120 = vmin.f32 %v1072, %v975
    %v1121 = vmin.f32 %v1073, %v976
    %v1122 = vmin.f32 %v1074, %v977
    %v1123 = vmin.f32 %v1075, %v978
    %v1124 = vmin.f32 %v1068, %v979
    %v1125 = vmin.f32 %v1069, %v980
    %v1126 = vmin.f32 %v1070, %v981
    %v1127 = vmin.f32 %v1071, %v982
    %v1128 = vmin.f32 %v1072, %v983
    %v1129 = vmin.f32 %v1073, %v984
    %v1130 = vmin.f32 %v1074, %v985
    %v1131 = vmin.f32 %v1075, %v986
    %v1132 = vmin.f32 %v1068, %v987
    %v1133 = vmin.f32 %v1069, %v988
    %v1134 = vmin.f32 %v1070, %v989
    %v1135 = vmin.f32 %v1071, %v990
    %v1136 = vmin.f32 %v1072, %v991
    %v1137 = vmin.f32 %v1073, %v992
    %v1138 = vmin.f32 %v1074, %v993
    %v1139 = vmin.f32 %v1075, %v994
    %v1140 = vmin.f32 %v1068, %v995
    %v1141 = vmin.f32 %v1069, %v996
    %v1142 = vmin.f32 %v1070, %v997
    %v1143 = vmin.f32 %v1071, %v998
    %v1144 = vmin.f32 %v1072, %v999
    %v1145 = vmin.f32 %v1073, %v1000
    %v1146 = vmin.f32 %v1074, %v1001
    %v1147 = vmin.f32 %v1075, %v1002
    %v1148 = vmin.f32 %v1068, %v1003
    %v1149 = vmin.f32 %v1069, %v1004
    %v1150 = vmin.f32 %v1070, %v1005
    %v1151 = vmin.f32 %v1071, %v1006
    %v1152 = vmin.f32 %v1072, %v1007
    %v1153 = vmin.f32 %v1073, %v1008
    %v1154 = vmin.f32 %v1074, %v1009
    %v1155 = vmin.f32 %v1075, %v1010
    %v1156 = vmin.f32 %v1068, %v1011
    %v1157 = vmin.f32 %v1069, %v1012
    %v1158 = vmin.f32 %v1070, %v1013
    %v1159 = vmin.f32 %v1071, %v1014
    %v1160 = vmin.f32 %v1072, %v1015
    %v1161 = vmin.f32 %v1073, %v1016
    %v1162 = vmin.f32 %v1074, %v1017
    %v1163 = vmin.f32 %v1075, %v1018
    %v1164 = vmin.f32 %v1068, %v1019
    %v1165 = vmin.f32 %v1069, %v1020
    %v1166 = vmin.f32 %v1070, %v1021
    %v1167 = vmin.f32 %v1071, %v1022
    %v1168 = vmin.f32 %v1072, %v1023
    %v1169 = vmin.f32 %v1073, %v1024
    %v1170 = vmin.f32 %v1074, %v1025
    %v1171 = vmin.f32 %v1075, %v1026
    %v1172 = vmin.f32 %v1068, %v1027
    %v1173 = vmin.f32 %v1069, %v1028
    %v1174 = vmin.f32 %v1070, %v1029
    %v1175 = vmin.f32 %v1071, %v1030
    %v1176 = vmin.f32 %v1072, %v1031
    %v1177 = vmin.f32 %v1073, %v1032
    %v1178 = vmin.f32 %v1074, %v1033
    %v1179 = vmin.f32 %v1075, %v1034
    %v1180 = vmin.f32 %v1068, %v1035
    %v1181 = vmin.f32 %v1069, %v1036
    %v1182 = vmin.f32 %v1070, %v1037
    %v1183 = vmin.f32 %v1071, %v1038
    %v1184 = vmin.f32 %v1072, %v1039
    %v1185 = vmin.f32 %v1073, %v1040
    %v1186 = vmin.f32 %v1074, %v1041
    %v1187 = vmin.f32 %v1075, %v1042
    %v1188 = vmin.f32 %v1068, %v1043
    %v1189 = vmin.f32 %v1069, %v1044
    %v1190 = vmin.f32 %v1070, %v1045
    %v1191 = vmin.f32 %v1071, %v1046
    %v1192 = vmin.f32 %v1072, %v1047
    %v1193 = vmin.f32 %v1073, %v1048
    %v1194 = vmin.f32 %v1074, %v1049
    %v1195 = vmin.f32 %v1075, %v1050
    %v1196 = vmin.f32 %v1068, %v1051
    %v1197 = vmin.f32 %v1069, %v1052
    %v1198 = vmin.f32 %v1070, %v1053
    %v1199 = vmin.f32 %v1071, %v1054
    %v1200 = vmin.f32 %v1072, %v1055
    %v1201 = vmin.f32 %v1073, %v1056
    %v1202 = vmin.f32 %v1074, %v1057
    %v1203 = vmin.f32 %v1075, %v1058
    %v1204 = vmin.f32 %v1068, %v1059
    %v1205 = vmin.f32 %v1069, %v1060
    %v1206 = vmin.f32 %v1070, %v1061
    %v1207 = vmin.f32 %v1071, %v1062
    %v1208 = vmin.f32 %v1072, %v1063
    %v1209 = vmin.f32 %v1073, %v1064
    %v1210 = vmin.f32 %v1074, %v1065
    %v1211 = vmin.f32 %v1075, %v1066
    %v1212 = vld [vmem:[#allocation5] sm:$0xff]
    %v1213 = vld [vmem:[#allocation5 + $0x8] sm:$0xff]
    %v1214 = vld [vmem:[#allocation5 + $0x10] sm:$0xff]
    %v1215 = vld [vmem:[#allocation5 + $0x18] sm:$0xff]
    %v1216 = vld [vmem:[#allocation5 + $0x20] sm:$0xff]
    %v1217 = vld [vmem:[#allocation5 + $0x28] sm:$0xff]
    %v1218 = vld [vmem:[#allocation5 + $0x30] sm:$0xff]
    %v1219 = vld [vmem:[#allocation5 + $0x38] sm:$0xff]
    %v1220 = vld [vmem:[#allocation5 + $0x40] sm:$0xff]
    %v1221 = vld [vmem:[#allocation5 + $0x48] sm:$0xff]
    %v1222 = vld [vmem:[#allocation5 + $0x50] sm:$0xff]
    %v1223 = vld [vmem:[#allocation5 + $0x58] sm:$0xff]
    %v1224 = vld [vmem:[#allocation5 + $0x60] sm:$0xff]
    %v1225 = vld [vmem:[#allocation5 + $0x68] sm:$0xff]
    %v1226 = vld [vmem:[#allocation5 + $0x70] sm:$0xff]
    %v1227 = vld [vmem:[#allocation5 + $0x78] sm:$0xff]
    %v1228 = vld [vmem:[#allocation5 + $0x80] sm:$0xff]
    %v1229 = vld [vmem:[#allocation5 + $0x88] sm:$0xff]
    %v1230 = vld [vmem:[#allocation5 + $0x90] sm:$0xff]
    %v1231 = vld [vmem:[#allocation5 + $0x98] sm:$0xff]
    %v1232 = vld [vmem:[#allocation5 + $0xa0] sm:$0xff]
    %v1233 = vld [vmem:[#allocation5 + $0xa8] sm:$0xff]
    %v1234 = vld [vmem:[#allocation5 + $0xb0] sm:$0xff]
    %v1235 = vld [vmem:[#allocation5 + $0xb8] sm:$0xff]
    %v1236 = vld [vmem:[#allocation5 + $0xc0] sm:$0xff]
    %v1237 = vld [vmem:[#allocation5 + $0xc8] sm:$0xff]
    %v1238 = vld [vmem:[#allocation5 + $0xd0] sm:$0xff]
    %v1239 = vld [vmem:[#allocation5 + $0xd8] sm:$0xff]
    %v1240 = vld [vmem:[#allocation5 + $0xe0] sm:$0xff]
    %v1241 = vld [vmem:[#allocation5 + $0xe8] sm:$0xff]
    %v1242 = vld [vmem:[#allocation5 + $0xf0] sm:$0xff]
    %v1243 = vld [vmem:[#allocation5 + $0xf8] sm:$0xff]
    %v1244 = vld [vmem:[#allocation5 + $0x100] sm:$0xff]
    %v1245 = vld [vmem:[#allocation5 + $0x108] sm:$0xff]
    %v1246 = vld [vmem:[#allocation5 + $0x110] sm:$0xff]
    %v1247 = vld [vmem:[#allocation5 + $0x118] sm:$0xff]
    %v1248 = vld [vmem:[#allocation5 + $0x120] sm:$0xff]
    %v1249 = vld [vmem:[#allocation5 + $0x128] sm:$0xff]
    %v1250 = vld [vmem:[#allocation5 + $0x130] sm:$0xff]
    %v1251 = vld [vmem:[#allocation5 + $0x138] sm:$0xff]
    %v1252 = vld [vmem:[#allocation5 + $0x140] sm:$0xff]
    %v1253 = vld [vmem:[#allocation5 + $0x148] sm:$0xff]
    %v1254 = vld [vmem:[#allocation5 + $0x150] sm:$0xff]
    %v1255 = vld [vmem:[#allocation5 + $0x158] sm:$0xff]
    %v1256 = vld [vmem:[#allocation5 + $0x160] sm:$0xff]
    %v1257 = vld [vmem:[#allocation5 + $0x168] sm:$0xff]
    %v1258 = vld [vmem:[#allocation5 + $0x170] sm:$0xff]
    %v1259 = vld [vmem:[#allocation5 + $0x178] sm:$0xff]
    %v1260 = vld [vmem:[#allocation5 + $0x180] sm:$0xff]
    %v1261 = vld [vmem:[#allocation5 + $0x188] sm:$0xff]
    %v1262 = vld [vmem:[#allocation5 + $0x190] sm:$0xff]
    %v1263 = vld [vmem:[#allocation5 + $0x198] sm:$0xff]
    %v1264 = vld [vmem:[#allocation5 + $0x1a0] sm:$0xff]
    %v1265 = vld [vmem:[#allocation5 + $0x1a8] sm:$0xff]
    %v1266 = vld [vmem:[#allocation5 + $0x1b0] sm:$0xff]
    %v1267 = vld [vmem:[#allocation5 + $0x1b8] sm:$0xff]
    %v1268 = vld [vmem:[#allocation5 + $0x1c0] sm:$0xff]
    %v1269 = vld [vmem:[#allocation5 + $0x1c8] sm:$0xff]
    %v1270 = vld [vmem:[#allocation5 + $0x1d0] sm:$0xff]
    %v1271 = vld [vmem:[#allocation5 + $0x1d8] sm:$0xff]
    %v1272 = vld [vmem:[#allocation5 + $0x1e0] sm:$0xff]
    %v1273 = vld [vmem:[#allocation5 + $0x1e8] sm:$0xff]
    %v1274 = vld [vmem:[#allocation5 + $0x1f0] sm:$0xff]
    %v1275 = vld [vmem:[#allocation5 + $0x1f8] sm:$0xff]
    %v1276 = vld [vmem:[#allocation5 + $0x200] sm:$0xff]
    %v1277 = vld [vmem:[#allocation5 + $0x208] sm:$0xff]
    %v1278 = vld [vmem:[#allocation5 + $0x210] sm:$0xff]
    %v1279 = vld [vmem:[#allocation5 + $0x218] sm:$0xff]
    %v1280 = vld [vmem:[#allocation5 + $0x220] sm:$0xff]
    %v1281 = vld [vmem:[#allocation5 + $0x228] sm:$0xff]
    %v1282 = vld [vmem:[#allocation5 + $0x230] sm:$0xff]
    %v1283 = vld [vmem:[#allocation5 + $0x238] sm:$0xff]
    %v1284 = vld [vmem:[#allocation5 + $0x240] sm:$0xff]
    %v1285 = vld [vmem:[#allocation5 + $0x248] sm:$0xff]
    %v1286 = vld [vmem:[#allocation5 + $0x250] sm:$0xff]
    %v1287 = vld [vmem:[#allocation5 + $0x258] sm:$0xff]
    %v1288 = vld [vmem:[#allocation5 + $0x260] sm:$0xff]
    %v1289 = vld [vmem:[#allocation5 + $0x268] sm:$0xff]
    %v1290 = vld [vmem:[#allocation5 + $0x270] sm:$0xff]
    %v1291 = vld [vmem:[#allocation5 + $0x278] sm:$0xff]
    %v1292 = vld [vmem:[#allocation5 + $0x280] sm:$0xff]
    %v1293 = vld [vmem:[#allocation5 + $0x288] sm:$0xff]
    %v1294 = vld [vmem:[#allocation5 + $0x290] sm:$0xff]
    %v1295 = vld [vmem:[#allocation5 + $0x298] sm:$0xff]
    %v1296 = vld [vmem:[#allocation5 + $0x2a0] sm:$0xff]
    %v1297 = vld [vmem:[#allocation5 + $0x2a8] sm:$0xff]
    %v1298 = vld [vmem:[#allocation5 + $0x2b0] sm:$0xff]
    %v1299 = vld [vmem:[#allocation5 + $0x2b8] sm:$0xff]
    %v1300 = vld [vmem:[#allocation5 + $0x2c0] sm:$0xff]
    %v1301 = vld [vmem:[#allocation5 + $0x2c8] sm:$0xff]
    %v1302 = vld [vmem:[#allocation5 + $0x2d0] sm:$0xff]
    %v1303 = vld [vmem:[#allocation5 + $0x2d8] sm:$0xff]
    %v1304 = vld [vmem:[#allocation5 + $0x2e0] sm:$0xff]
    %v1305 = vld [vmem:[#allocation5 + $0x2e8] sm:$0xff]
    %v1306 = vld [vmem:[#allocation5 + $0x2f0] sm:$0xff]
    %v1307 = vld [vmem:[#allocation5 + $0x2f8] sm:$0xff]
    %v1308 = vld [vmem:[#allocation5 + $0x300] sm:$0xff]
    %v1309 = vld [vmem:[#allocation5 + $0x308] sm:$0xff]
    %v1310 = vld [vmem:[#allocation5 + $0x310] sm:$0xff]
    %v1311 = vld [vmem:[#allocation5 + $0x318] sm:$0xff]
    %v1312 = vld [vmem:[#allocation5 + $0x320] sm:$0xff]
    %v1313 = vld [vmem:[#allocation5 + $0x328] sm:$0xff]
    %v1314 = vld [vmem:[#allocation5 + $0x330] sm:$0xff]
    %v1315 = vld [vmem:[#allocation5 + $0x338] sm:$0xff]
    %v1316 = vld [vmem:[#allocation5 + $0x340] sm:$0xff]
    %v1317 = vld [vmem:[#allocation5 + $0x348] sm:$0xff]
    %v1318 = vld [vmem:[#allocation5 + $0x350] sm:$0xff]
    %v1319 = vld [vmem:[#allocation5 + $0x358] sm:$0xff]
    %v1320 = vld [vmem:[#allocation5 + $0x360] sm:$0xff]
    %v1321 = vld [vmem:[#allocation5 + $0x368] sm:$0xff]
    %v1322 = vld [vmem:[#allocation5 + $0x370] sm:$0xff]
    %v1323 = vld [vmem:[#allocation5 + $0x378] sm:$0xff]
    %v1324 = vld [vmem:[#allocation5 + $0x380] sm:$0xff]
    %v1325 = vld [vmem:[#allocation5 + $0x388] sm:$0xff]
    %v1326 = vld [vmem:[#allocation5 + $0x390] sm:$0xff]
    %v1327 = vld [vmem:[#allocation5 + $0x398] sm:$0xff]
    %v1328 = vld [vmem:[#allocation5 + $0x3a0] sm:$0xff]
    %v1329 = vld [vmem:[#allocation5 + $0x3a8] sm:$0xff]
    %v1330 = vld [vmem:[#allocation5 + $0x3b0] sm:$0xff]
    %v1331 = vld [vmem:[#allocation5 + $0x3b8] sm:$0xff]
    %v1332 = vld [vmem:[#allocation5 + $0x3c0] sm:$0xff]
    %v1333 = vld [vmem:[#allocation5 + $0x3c8] sm:$0xff]
    %v1334 = vld [vmem:[#allocation5 + $0x3d0] sm:$0xff]
    %v1335 = vld [vmem:[#allocation5 + $0x3d8] sm:$0xff]
    %v1336 = vld [vmem:[#allocation5 + $0x3e0] sm:$0xff]
    %v1337 = vld [vmem:[#allocation5 + $0x3e8] sm:$0xff]
    %v1338 = vld [vmem:[#allocation5 + $0x3f0] sm:$0xff]
    %v1339 = vld [vmem:[#allocation5 + $0x3f8] sm:$0xff]
    %v1341 = vperm.slane %v508, 0
    %v1342 = vperm.slane %v508, 1
    %v1343 = vperm.slane %v508, 2
    %v1344 = vperm.slane %v508, 3
    %v1345 = vperm.slane %v508, 4
    %v1346 = vperm.slane %v508, 5
    %v1347 = vperm.slane %v508, 6
    %v1348 = vperm.slane %v508, 7
    %v1357 = vmax.f32 %v1341, %v1212
    %v1358 = vmax.f32 %v1342, %v1213
    %v1359 = vmax.f32 %v1343, %v1214
    %v1360 = vmax.f32 %v1344, %v1215
    %v1361 = vmax.f32 %v1345, %v1216
    %v1362 = vmax.f32 %v1346, %v1217
    %v1363 = vmax.f32 %v1347, %v1218
    %v1364 = vmax.f32 %v1348, %v1219
    %v1365 = vmax.f32 %v1341, %v1220
    %v1366 = vmax.f32 %v1342, %v1221
    %v1367 = vmax.f32 %v1343, %v1222
    %v1368 = vmax.f32 %v1344, %v1223
    %v1369 = vmax.f32 %v1345, %v1224
    %v1370 = vmax.f32 %v1346, %v1225
    %v1371 = vmax.f32 %v1347, %v1226
    %v1372 = vmax.f32 %v1348, %v1227
    %v1373 = vmax.f32 %v1341, %v1228
    %v1374 = vmax.f32 %v1342, %v1229
    %v1375 = vmax.f32 %v1343, %v1230
    %v1376 = vmax.f32 %v1344, %v1231
    %v1377 = vmax.f32 %v1345, %v1232
    %v1378 = vmax.f32 %v1346, %v1233
    %v1379 = vmax.f32 %v1347, %v1234
    %v1380 = vmax.f32 %v1348, %v1235
    %v1381 = vmax.f32 %v1341, %v1236
    %v1382 = vmax.f32 %v1342, %v1237
    %v1383 = vmax.f32 %v1343, %v1238
    %v1384 = vmax.f32 %v1344, %v1239
    %v1385 = vmax.f32 %v1345, %v1240
    %v1386 = vmax.f32 %v1346, %v1241
    %v1387 = vmax.f32 %v1347, %v1242
    %v1388 = vmax.f32 %v1348, %v1243
    %v1389 = vmax.f32 %v1341, %v1244
    %v1390 = vmax.f32 %v1342, %v1245
    %v1391 = vmax.f32 %v1343, %v1246
    %v1392 = vmax.f32 %v1344, %v1247
    %v1393 = vmax.f32 %v1345, %v1248
    %v1394 = vmax.f32 %v1346, %v1249
    %v1395 = vmax.f32 %v1347, %v1250
    %v1396 = vmax.f32 %v1348, %v1251
    %v1397 = vmax.f32 %v1341, %v1252
    %v1398 = vmax.f32 %v1342, %v1253
    %v1399 = vmax.f32 %v1343, %v1254
    %v1400 = vmax.f32 %v1344, %v1255
    %v1401 = vmax.f32 %v1345, %v1256
    %v1402 = vmax.f32 %v1346, %v1257
    %v1403 = vmax.f32 %v1347, %v1258
    %v1404 = vmax.f32 %v1348, %v1259
    %v1405 = vmax.f32 %v1341, %v1260
    %v1406 = vmax.f32 %v1342, %v1261
    %v1407 = vmax.f32 %v1343, %v1262
    %v1408 = vmax.f32 %v1344, %v1263
    %v1409 = vmax.f32 %v1345, %v1264
    %v1410 = vmax.f32 %v1346, %v1265
    %v1411 = vmax.f32 %v1347, %v1266
    %v1412 = vmax.f32 %v1348, %v1267
    %v1413 = vmax.f32 %v1341, %v1268
    %v1414 = vmax.f32 %v1342, %v1269
    %v1415 = vmax.f32 %v1343, %v1270
    %v1416 = vmax.f32 %v1344, %v1271
    %v1417 = vmax.f32 %v1345, %v1272
    %v1418 = vmax.f32 %v1346, %v1273
    %v1419 = vmax.f32 %v1347, %v1274
    %v1420 = vmax.f32 %v1348, %v1275
    %v1421 = vmax.f32 %v1341, %v1276
    %v1422 = vmax.f32 %v1342, %v1277
    %v1423 = vmax.f32 %v1343, %v1278
    %v1424 = vmax.f32 %v1344, %v1279
    %v1425 = vmax.f32 %v1345, %v1280
    %v1426 = vmax.f32 %v1346, %v1281
    %v1427 = vmax.f32 %v1347, %v1282
    %v1428 = vmax.f32 %v1348, %v1283
    %v1429 = vmax.f32 %v1341, %v1284
    %v1430 = vmax.f32 %v1342, %v1285
    %v1431 = vmax.f32 %v1343, %v1286
    %v1432 = vmax.f32 %v1344, %v1287
    %v1433 = vmax.f32 %v1345, %v1288
    %v1434 = vmax.f32 %v1346, %v1289
    %v1435 = vmax.f32 %v1347, %v1290
    %v1436 = vmax.f32 %v1348, %v1291
    %v1437 = vmax.f32 %v1341, %v1292
    %v1438 = vmax.f32 %v1342, %v1293
    %v1439 = vmax.f32 %v1343, %v1294
    %v1440 = vmax.f32 %v1344, %v1295
    %v1441 = vmax.f32 %v1345, %v1296
    %v1442 = vmax.f32 %v1346, %v1297
    %v1443 = vmax.f32 %v1347, %v1298
    %v1444 = vmax.f32 %v1348, %v1299
    %v1445 = vmax.f32 %v1341, %v1300
    %v1446 = vmax.f32 %v1342, %v1301
    %v1447 = vmax.f32 %v1343, %v1302
    %v1448 = vmax.f32 %v1344, %v1303
    %v1449 = vmax.f32 %v1345, %v1304
    %v1450 = vmax.f32 %v1346, %v1305
    %v1451 = vmax.f32 %v1347, %v1306
    %v1452 = vmax.f32 %v1348, %v1307
    %v1453 = vmax.f32 %v1341, %v1308
    %v1454 = vmax.f32 %v1342, %v1309
    %v1455 = vmax.f32 %v1343, %v1310
    %v1456 = vmax.f32 %v1344, %v1311
    %v1457 = vmax.f32 %v1345, %v1312
    %v1458 = vmax.f32 %v1346, %v1313
    %v1459 = vmax.f32 %v1347, %v1314
    %v1460 = vmax.f32 %v1348, %v1315
    %v1461 = vmax.f32 %v1341, %v1316
    %v1462 = vmax.f32 %v1342, %v1317
    %v1463 = vmax.f32 %v1343, %v1318
    %v1464 = vmax.f32 %v1344, %v1319
    %v1465 = vmax.f32 %v1345, %v1320
    %v1466 = vmax.f32 %v1346, %v1321
    %v1467 = vmax.f32 %v1347, %v1322
    %v1468 = vmax.f32 %v1348, %v1323
    %v1469 = vmax.f32 %v1341, %v1324
    %v1470 = vmax.f32 %v1342, %v1325
    %v1471 = vmax.f32 %v1343, %v1326
    %v1472 = vmax.f32 %v1344, %v1327
    %v1473 = vmax.f32 %v1345, %v1328
    %v1474 = vmax.f32 %v1346, %v1329
    %v1475 = vmax.f32 %v1347, %v1330
    %v1476 = vmax.f32 %v1348, %v1331
    %v1477 = vmax.f32 %v1341, %v1332
    %v1478 = vmax.f32 %v1342, %v1333
    %v1479 = vmax.f32 %v1343, %v1334
    %v1480 = vmax.f32 %v1344, %v1335
    %v1481 = vmax.f32 %v1345, %v1336
    %v1482 = vmax.f32 %v1346, %v1337
    %v1483 = vmax.f32 %v1347, %v1338
    %v1484 = vmax.f32 %v1348, %v1339
    %v1485 = vsub.f32 %v1084, %v1357
    %v1486 = vsub.f32 %v1085, %v1358
    %v1487 = vsub.f32 %v1086, %v1359
    %v1488 = vsub.f32 %v1087, %v1360
    %v1489 = vsub.f32 %v1088, %v1361
    %v1490 = vsub.f32 %v1089, %v1362
    %v1491 = vsub.f32 %v1090, %v1363
    %v1492 = vsub.f32 %v1091, %v1364
    %v1493 = vsub.f32 %v1092, %v1365
    %v1494 = vsub.f32 %v1093, %v1366
    %v1495 = vsub.f32 %v1094, %v1367
    %v1496 = vsub.f32 %v1095, %v1368
    %v1497 = vsub.f32 %v1096, %v1369
    %v1498 = vsub.f32 %v1097, %v1370
    %v1499 = vsub.f32 %v1098, %v1371
    %v1500 = vsub.f32 %v1099, %v1372
    %v1501 = vsub.f32 %v1100, %v1373
    %v1502 = vsub.f32 %v1101, %v1374
    %v1503 = vsub.f32 %v1102, %v1375
    %v1504 = vsub.f32 %v1103, %v1376
    %v1505 = vsub.f32 %v1104, %v1377
    %v1506 = vsub.f32 %v1105, %v1378
    %v1507 = vsub.f32 %v1106, %v1379
    %v1508 = vsub.f32 %v1107, %v1380
    %v1509 = vsub.f32 %v1108, %v1381
    %v1510 = vsub.f32 %v1109, %v1382
    %v1511 = vsub.f32 %v1110, %v1383
    %v1512 = vsub.f32 %v1111, %v1384
    %v1513 = vsub.f32 %v1112, %v1385
    %v1514 = vsub.f32 %v1113, %v1386
    %v1515 = vsub.f32 %v1114, %v1387
    %v1516 = vsub.f32 %v1115, %v1388
    %v1517 = vsub.f32 %v1116, %v1389
    %v1518 = vsub.f32 %v1117, %v1390
    %v1519 = vsub.f32 %v1118, %v1391
    %v1520 = vsub.f32 %v1119, %v1392
    %v1521 = vsub.f32 %v1120, %v1393
    %v1522 = vsub.f32 %v1121, %v1394
    %v1523 = vsub.f32 %v1122, %v1395
    %v1524 = vsub.f32 %v1123, %v1396
    %v1525 = vsub.f32 %v1124, %v1397
    %v1526 = vsub.f32 %v1125, %v1398
    %v1527 = vsub.f32 %v1126, %v1399
    %v1528 = vsub.f32 %v1127, %v1400
    %v1529 = vsub.f32 %v1128, %v1401
    %v1530 = vsub.f32 %v1129, %v1402
    %v1531 = vsub.f32 %v1130, %v1403
    %v1532 = vsub.f32 %v1131, %v1404
    %v1533 = vsub.f32 %v1132, %v1405
    %v1534 = vsub.f32 %v1133, %v1406
    %v1535 = vsub.f32 %v1134, %v1407
    %v1536 = vsub.f32 %v1135, %v1408
    %v1537 = vsub.f32 %v1136, %v1409
    %v1538 = vsub.f32 %v1137, %v1410
    %v1539 = vsub.f32 %v1138, %v1411
    %v1540 = vsub.f32 %v1139, %v1412
    %v1541 = vsub.f32 %v1140, %v1413
    %v1542 = vsub.f32 %v1141, %v1414
    %v1543 = vsub.f32 %v1142, %v1415
    %v1544 = vsub.f32 %v1143, %v1416
    %v1545 = vsub.f32 %v1144, %v1417
    %v1546 = vsub.f32 %v1145, %v1418
    %v1547 = vsub.f32 %v1146, %v1419
    %v1548 = vsub.f32 %v1147, %v1420
    %v1549 = vsub.f32 %v1148, %v1421
    %v1550 = vsub.f32 %v1149, %v1422
    %v1551 = vsub.f32 %v1150, %v1423
    %v1552 = vsub.f32 %v1151, %v1424
    %v1553 = vsub.f32 %v1152, %v1425
    %v1554 = vsub.f32 %v1153, %v1426
    %v1555 = vsub.f32 %v1154, %v1427
    %v1556 = vsub.f32 %v1155, %v1428
    %v1557 = vsub.f32 %v1156, %v1429
    %v1558 = vsub.f32 %v1157, %v1430
    %v1559 = vsub.f32 %v1158, %v1431
    %v1560 = vsub.f32 %v1159, %v1432
    %v1561 = vsub.f32 %v1160, %v1433
    %v1562 = vsub.f32 %v1161, %v1434
    %v1563 = vsub.f32 %v1162, %v1435
    %v1564 = vsub.f32 %v1163, %v1436
    %v1565 = vsub.f32 %v1164, %v1437
    %v1566 = vsub.f32 %v1165, %v1438
    %v1567 = vsub.f32 %v1166, %v1439
    %v1568 = vsub.f32 %v1167, %v1440
    %v1569 = vsub.f32 %v1168, %v1441
    %v1570 = vsub.f32 %v1169, %v1442
    %v1571 = vsub.f32 %v1170, %v1443
    %v1572 = vsub.f32 %v1171, %v1444
    %v1573 = vsub.f32 %v1172, %v1445
    %v1574 = vsub.f32 %v1173, %v1446
    %v1575 = vsub.f32 %v1174, %v1447
    %v1576 = vsub.f32 %v1175, %v1448
    %v1577 = vsub.f32 %v1176, %v1449
    %v1578 = vsub.f32 %v1177, %v1450
    %v1579 = vsub.f32 %v1178, %v1451
    %v1580 = vsub.f32 %v1179, %v1452
    %v1581 = vsub.f32 %v1180, %v1453
    %v1582 = vsub.f32 %v1181, %v1454
    %v1583 = vsub.f32 %v1182, %v1455
    %v1584 = vsub.f32 %v1183, %v1456
    %v1585 = vsub.f32 %v1184, %v1457
    %v1586 = vsub.f32 %v1185, %v1458
    %v1587 = vsub.f32 %v1186, %v1459
    %v1588 = vsub.f32 %v1187, %v1460
    %v1589 = vsub.f32 %v1188, %v1461
    %v1590 = vsub.f32 %v1189, %v1462
    %v1591 = vsub.f32 %v1190, %v1463
    %v1592 = vsub.f32 %v1191, %v1464
    %v1593 = vsub.f32 %v1192, %v1465
    %v1594 = vsub.f32 %v1193, %v1466
    %v1595 = vsub.f32 %v1194, %v1467
    %v1596 = vsub.f32 %v1195, %v1468
    %v1597 = vsub.f32 %v1196, %v1469
    %v1598 = vsub.f32 %v1197, %v1470
    %v1599 = vsub.f32 %v1198, %v1471
    %v1600 = vsub.f32 %v1199, %v1472
    %v1601 = vsub.f32 %v1200, %v1473
    %v1602 = vsub.f32 %v1201, %v1474
    %v1603 = vsub.f32 %v1202, %v1475
    %v1604 = vsub.f32 %v1203, %v1476
    %v1605 = vsub.f32 %v1204, %v1477
    %v1606 = vsub.f32 %v1205, %v1478
    %v1607 = vsub.f32 %v1206, %v1479
    %v1608 = vsub.f32 %v1207, %v1480
    %v1609 = vsub.f32 %v1208, %v1481
    %v1610 = vsub.f32 %v1209, %v1482
    %v1611 = vsub.f32 %v1210, %v1483
    %v1612 = vsub.f32 %v1211, %v1484
    %v1613 = vmax.f32 %v1485, 0.0
    %v1614 = vmax.f32 %v1486, 0.0
    %v1615 = vmax.f32 %v1487, 0.0
    %v1616 = vmax.f32 %v1488, 0.0
    %v1617 = vmax.f32 %v1489, 0.0
    %v1618 = vmax.f32 %v1490, 0.0
    %v1619 = vmax.f32 %v1491, 0.0
    %v1620 = vmax.f32 %v1492, 0.0
    %v1621 = vmax.f32 %v1493, 0.0
    %v1622 = vmax.f32 %v1494, 0.0
    %v1623 = vmax.f32 %v1495, 0.0
    %v1624 = vmax.f32 %v1496, 0.0
    %v1625 = vmax.f32 %v1497, 0.0
    %v1626 = vmax.f32 %v1498, 0.0
    %v1627 = vmax.f32 %v1499, 0.0
    %v1628 = vmax.f32 %v1500, 0.0
    %v1629 = vmax.f32 %v1501, 0.0
    %v1630 = vmax.f32 %v1502, 0.0
    %v1631 = vmax.f32 %v1503, 0.0
    %v1632 = vmax.f32 %v1504, 0.0
    %v1633 = vmax.f32 %v1505, 0.0
    %v1634 = vmax.f32 %v1506, 0.0
    %v1635 = vmax.f32 %v1507, 0.0
    %v1636 = vmax.f32 %v1508, 0.0
    %v1637 = vmax.f32 %v1509, 0.0
    %v1638 = vmax.f32 %v1510, 0.0
    %v1639 = vmax.f32 %v1511, 0.0
    %v1640 = vmax.f32 %v1512, 0.0
    %v1641 = vmax.f32 %v1513, 0.0
    %v1642 = vmax.f32 %v1514, 0.0
    %v1643 = vmax.f32 %v1515, 0.0
    %v1644 = vmax.f32 %v1516, 0.0
    %v1645 = vmax.f32 %v1517, 0.0
    %v1646 = vmax.f32 %v1518, 0.0
    %v1647 = vmax.f32 %v1519, 0.0
    %v1648 = vmax.f32 %v1520, 0.0
    %v1649 = vmax.f32 %v1521, 0.0
    %v1650 = vmax.f32 %v1522, 0.0
    %v1651 = vmax.f32 %v1523, 0.0
    %v1652 = vmax.f32 %v1524, 0.0
    %v1653 = vmax.f32 %v1525, 0.0
    %v1654 = vmax.f32 %v1526, 0.0
    %v1655 = vmax.f32 %v1527, 0.0
    %v1656 = vmax.f32 %v1528, 0.0
    %v1657 = vmax.f32 %v1529, 0.0
    %v1658 = vmax.f32 %v1530, 0.0
    %v1659 = vmax.f32 %v1531, 0.0
    %v1660 = vmax.f32 %v1532, 0.0
    %v1661 = vmax.f32 %v1533, 0.0
    %v1662 = vmax.f32 %v1534, 0.0
    %v1663 = vmax.f32 %v1535, 0.0
    %v1664 = vmax.f32 %v1536, 0.0
    %v1665 = vmax.f32 %v1537, 0.0
    %v1666 = vmax.f32 %v1538, 0.0
    %v1667 = vmax.f32 %v1539, 0.0
    %v1668 = vmax.f32 %v1540, 0.0
    %v1669 = vmax.f32 %v1541, 0.0
    %v1670 = vmax.f32 %v1542, 0.0
    %v1671 = vmax.f32 %v1543, 0.0
    %v1672 = vmax.f32 %v1544, 0.0
    %v1673 = vmax.f32 %v1545, 0.0
    %v1674 = vmax.f32 %v1546, 0.0
    %v1675 = vmax.f32 %v1547, 0.0
    %v1676 = vmax.f32 %v1548, 0.0
    %v1677 = vmax.f32 %v1549, 0.0
    %v1678 = vmax.f32 %v1550, 0.0
    %v1679 = vmax.f32 %v1551, 0.0
    %v1680 = vmax.f32 %v1552, 0.0
    %v1681 = vmax.f32 %v1553, 0.0
    %v1682 = vmax.f32 %v1554, 0.0
    %v1683 = vmax.f32 %v1555, 0.0
    %v1684 = vmax.f32 %v1556, 0.0
    %v1685 = vmax.f32 %v1557, 0.0
    %v1686 = vmax.f32 %v1558, 0.0
    %v1687 = vmax.f32 %v1559, 0.0
    %v1688 = vmax.f32 %v1560, 0.0
    %v1689 = vmax.f32 %v1561, 0.0
    %v1690 = vmax.f32 %v1562, 0.0
    %v1691 = vmax.f32 %v1563, 0.0
    %v1692 = vmax.f32 %v1564, 0.0
    %v1693 = vmax.f32 %v1565, 0.0
    %v1694 = vmax.f32 %v1566, 0.0
    %v1695 = vmax.f32 %v1567, 0.0
    %v1696 = vmax.f32 %v1568, 0.0
    %v1697 = vmax.f32 %v1569, 0.0
    %v1698 = vmax.f32 %v1570, 0.0
    %v1699 = vmax.f32 %v1571, 0.0
    %v1700 = vmax.f32 %v1572, 0.0
    %v1701 = vmax.f32 %v1573, 0.0
    %v1702 = vmax.f32 %v1574, 0.0
    %v1703 = vmax.f32 %v1575, 0.0
    %v1704 = vmax.f32 %v1576, 0.0
    %v1705 = vmax.f32 %v1577, 0.0
    %v1706 = vmax.f32 %v1578, 0.0
    %v1707 = vmax.f32 %v1579, 0.0
    %v1708 = vmax.f32 %v1580, 0.0
    %v1709 = vmax.f32 %v1581, 0.0
    %v1710 = vmax.f32 %v1582, 0.0
    %v1711 = vmax.f32 %v1583, 0.0
    %v1712 = vmax.f32 %v1584, 0.0
    %v1713 = vmax.f32 %v1585, 0.0
    %v1714 = vmax.f32 %v1586, 0.0
    %v1715 = vmax.f32 %v1587, 0.0
    %v1716 = vmax.f32 %v1588, 0.0
    %v1717 = vmax.f32 %v1589, 0.0
    %v1718 = vmax.f32 %v1590, 0.0
    %v1719 = vmax.f32 %v1591, 0.0
    %v1720 = vmax.f32 %v1592, 0.0
    %v1721 = vmax.f32 %v1593, 0.0
    %v1722 = vmax.f32 %v1594, 0.0
    %v1723 = vmax.f32 %v1595, 0.0
    %v1724 = vmax.f32 %v1596, 0.0
    %v1725 = vmax.f32 %v1597, 0.0
    %v1726 = vmax.f32 %v1598, 0.0
    %v1727 = vmax.f32 %v1599, 0.0
    %v1728 = vmax.f32 %v1600, 0.0
    %v1729 = vmax.f32 %v1601, 0.0
    %v1730 = vmax.f32 %v1602, 0.0
    %v1731 = vmax.f32 %v1603, 0.0
    %v1732 = vmax.f32 %v1604, 0.0
    %v1733 = vmax.f32 %v1605, 0.0
    %v1734 = vmax.f32 %v1606, 0.0
    %v1735 = vmax.f32 %v1607, 0.0
    %v1736 = vmax.f32 %v1608, 0.0
    %v1737 = vmax.f32 %v1609, 0.0
    %v1738 = vmax.f32 %v1610, 0.0
    %v1739 = vmax.f32 %v1611, 0.0
    %v1740 = vmax.f32 %v1612, 0.0
    %v1742 = vperm.slane %v516, 0
    %v1743 = vperm.slane %v516, 1
    %v1744 = vperm.slane %v516, 2
    %v1745 = vperm.slane %v516, 3
    %v1746 = vperm.slane %v516, 4
    %v1747 = vperm.slane %v516, 5
    %v1748 = vperm.slane %v516, 6
    %v1749 = vperm.slane %v516, 7
    %v1758 = vmul.f32 %v875, %v1742
    %v1759 = vmul.f32 %v876, %v1743
    %v1760 = vmul.f32 %v877, %v1744
    %v1761 = vmul.f32 %v878, %v1745
    %v1762 = vmul.f32 %v879, %v1746
    %v1763 = vmul.f32 %v880, %v1747
    %v1764 = vmul.f32 %v881, %v1748
    %v1765 = vmul.f32 %v882, %v1749
    %v1766 = vmul.f32 %v883, %v1742
    %v1767 = vmul.f32 %v884, %v1743
    %v1768 = vmul.f32 %v885, %v1744
    %v1769 = vmul.f32 %v886, %v1745
    %v1770 = vmul.f32 %v887, %v1746
    %v1771 = vmul.f32 %v888, %v1747
    %v1772 = vmul.f32 %v889, %v1748
    %v1773 = vmul.f32 %v890, %v1749
    %v1774 = vmul.f32 %v891, %v1742
    %v1775 = vmul.f32 %v892, %v1743
    %v1776 = vmul.f32 %v893, %v1744
    %v1777 = vmul.f32 %v894, %v1745
    %v1778 = vmul.f32 %v895, %v1746
    %v1779 = vmul.f32 %v896, %v1747
    %v1780 = vmul.f32 %v897, %v1748
    %v1781 = vmul.f32 %v898, %v1749
    %v1782 = vmul.f32 %v899, %v1742
    %v1783 = vmul.f32 %v900, %v1743
    %v1784 = vmul.f32 %v901, %v1744
    %v1785 = vmul.f32 %v902, %v1745
    %v1786 = vmul.f32 %v903, %v1746
    %v1787 = vmul.f32 %v904, %v1747
    %v1788 = vmul.f32 %v905, %v1748
    %v1789 = vmul.f32 %v906, %v1749
    %v1790 = vmul.f32 %v907, %v1742
    %v1791 = vmul.f32 %v908, %v1743
    %v1792 = vmul.f32 %v909, %v1744
    %v1793 = vmul.f32 %v910, %v1745
    %v1794 = vmul.f32 %v911, %v1746
    %v1795 = vmul.f32 %v912, %v1747
    %v1796 = vmul.f32 %v913, %v1748
    %v1797 = vmul.f32 %v914, %v1749
    %v1798 = vmul.f32 %v915, %v1742
    %v1799 = vmul.f32 %v916, %v1743
    %v1800 = vmul.f32 %v917, %v1744
    %v1801 = vmul.f32 %v918, %v1745
    %v1802 = vmul.f32 %v919, %v1746
    %v1803 = vmul.f32 %v920, %v1747
    %v1804 = vmul.f32 %v921, %v1748
    %v1805 = vmul.f32 %v922, %v1749
    %v1806 = vmul.f32 %v923, %v1742
    %v1807 = vmul.f32 %v924, %v1743
    %v1808 = vmul.f32 %v925, %v1744
    %v1809 = vmul.f32 %v926, %v1745
    %v1810 = vmul.f32 %v927, %v1746
    %v1811 = vmul.f32 %v928, %v1747
    %v1812 = vmul.f32 %v929, %v1748
    %v1813 = vmul.f32 %v930, %v1749
    %v1814 = vmul.f32 %v931, %v1742
    %v1815 = vmul.f32 %v932, %v1743
    %v1816 = vmul.f32 %v933, %v1744
    %v1817 = vmul.f32 %v934, %v1745
    %v1818 = vmul.f32 %v935, %v1746
    %v1819 = vmul.f32 %v936, %v1747
    %v1820 = vmul.f32 %v937, %v1748
    %v1821 = vmul.f32 %v938, %v1749
    %v1823 = vperm.slane %v520, 0
    %v1824 = vperm.slane %v520, 1
    %v1825 = vperm.slane %v520, 2
    %v1826 = vperm.slane %v520, 3
    %v1827 = vperm.slane %v520, 4
    %v1828 = vperm.slane %v520, 5
    %v1829 = vperm.slane %v520, 6
    %v1830 = vperm.slane %v520, 7
    %v1839 = vmul.f32 %v875, %v1823
    %v1840 = vmul.f32 %v876, %v1824
    %v1841 = vmul.f32 %v877, %v1825
    %v1842 = vmul.f32 %v878, %v1826
    %v1843 = vmul.f32 %v879, %v1827
    %v1844 = vmul.f32 %v880, %v1828
    %v1845 = vmul.f32 %v881, %v1829
    %v1846 = vmul.f32 %v882, %v1830
    %v1847 = vmul.f32 %v883, %v1823
    %v1848 = vmul.f32 %v884, %v1824
    %v1849 = vmul.f32 %v885, %v1825
    %v1850 = vmul.f32 %v886, %v1826
    %v1851 = vmul.f32 %v887, %v1827
    %v1852 = vmul.f32 %v888, %v1828
    %v1853 = vmul.f32 %v889, %v1829
    %v1854 = vmul.f32 %v890, %v1830
    %v1855 = vmul.f32 %v891, %v1823
    %v1856 = vmul.f32 %v892, %v1824
    %v1857 = vmul.f32 %v893, %v1825
    %v1858 = vmul.f32 %v894, %v1826
    %v1859 = vmul.f32 %v895, %v1827
    %v1860 = vmul.f32 %v896, %v1828
    %v1861 = vmul.f32 %v897, %v1829
    %v1862 = vmul.f32 %v898, %v1830
    %v1863 = vmul.f32 %v899, %v1823
    %v1864 = vmul.f32 %v900, %v1824
    %v1865 = vmul.f32 %v901, %v1825
    %v1866 = vmul.f32 %v902, %v1826
    %v1867 = vmul.f32 %v903, %v1827
    %v1868 = vmul.f32 %v904, %v1828
    %v1869 = vmul.f32 %v905, %v1829
    %v1870 = vmul.f32 %v906, %v1830
    %v1871 = vmul.f32 %v907, %v1823
    %v1872 = vmul.f32 %v908, %v1824
    %v1873 = vmul.f32 %v909, %v1825
    %v1874 = vmul.f32 %v910, %v1826
    %v1875 = vmul.f32 %v911, %v1827
    %v1876 = vmul.f32 %v912, %v1828
    %v1877 = vmul.f32 %v913, %v1829
    %v1878 = vmul.f32 %v914, %v1830
    %v1879 = vmul.f32 %v915, %v1823
    %v1880 = vmul.f32 %v916, %v1824
    %v1881 = vmul.f32 %v917, %v1825
    %v1882 = vmul.f32 %v918, %v1826
    %v1883 = vmul.f32 %v919, %v1827
    %v1884 = vmul.f32 %v920, %v1828
    %v1885 = vmul.f32 %v921, %v1829
    %v1886 = vmul.f32 %v922, %v1830
    %v1887 = vmul.f32 %v923, %v1823
    %v1888 = vmul.f32 %v924, %v1824
    %v1889 = vmul.f32 %v925, %v1825
    %v1890 = vmul.f32 %v926, %v1826
    %v1891 = vmul.f32 %v927, %v1827
    %v1892 = vmul.f32 %v928, %v1828
    %v1893 = vmul.f32 %v929, %v1829
    %v1894 = vmul.f32 %v930, %v1830
    %v1895 = vmul.f32 %v931, %v1823
    %v1896 = vmul.f32 %v932, %v1824
    %v1897 = vmul.f32 %v933, %v1825
    %v1898 = vmul.f32 %v934, %v1826
    %v1899 = vmul.f32 %v935, %v1827
    %v1900 = vmul.f32 %v936, %v1828
    %v1901 = vmul.f32 %v937, %v1829
    %v1902 = vmul.f32 %v938, %v1830
    %v1903 = vld [vmem:[#allocation2] sm:$0xff]
    %v1904 = vld [vmem:[#allocation2 + $0x8] sm:$0xff]
    %v1905 = vld [vmem:[#allocation2 + $0x10] sm:$0xff]
    %v1906 = vld [vmem:[#allocation2 + $0x18] sm:$0xff]
    %v1907 = vld [vmem:[#allocation2 + $0x20] sm:$0xff]
    %v1908 = vld [vmem:[#allocation2 + $0x28] sm:$0xff]
    %v1909 = vld [vmem:[#allocation2 + $0x30] sm:$0xff]
    %v1910 = vld [vmem:[#allocation2 + $0x38] sm:$0xff]
    %1911 = vmatpush.xpose.msra.mxu0 %v1733
    %1912 = vmatpush.xpose.msra.mxu0 %v1725
    %1913 = vmatpush.xpose.msra.mxu0 %v1717
    %1914 = vmatpush.xpose.msra.mxu0 %v1709
    %1915 = vmatpush.xpose.msra.mxu0 %v1701
    %1916 = vmatpush.xpose.msra.mxu0 %v1693
    %1917 = vmatpush.xpose.msra.mxu0 %v1685
    %1918 = vmatpush.xpose.msra.mxu0 %v1677
    %1919 = vmatpush.xpose.msra.mxu0 %v1669
    %1920 = vmatpush.xpose.msra.mxu0 %v1661
    %1921 = vmatpush.xpose.msra.mxu0 %v1653
    %1922 = vmatpush.xpose.msra.mxu0 %v1645
    %1923 = vmatpush.xpose.msra.mxu0 %v1637
    %1924 = vmatpush.xpose.msra.mxu0 %v1629
    %1925 = vmatpush.xpose.msra.mxu0 %v1621
    %1926 = vmatpush.xpose.msra.mxu0 %v1613
    %1927 = vmatmul.f32.gmra.mxu0 %v1758
    %v1928 = vpop.f32.mrf.mxu0
    %v1929 = vadd.f32 0.0, %v1928
    %1930 = vmatmul.f32.gmra.mxu0 %v1766
    %v1931 = vpop.f32.mrf.mxu0
    %v1932 = vadd.f32 0.0, %v1931
    %1933 = vmatmul.f32.gmra.mxu0 %v1774
    %v1934 = vpop.f32.mrf.mxu0
    %v1935 = vadd.f32 0.0, %v1934
    %1936 = vmatmul.f32.gmra.mxu0 %v1782
    %v1937 = vpop.f32.mrf.mxu0
    %v1938 = vadd.f32 0.0, %v1937
    %1939 = vmatmul.f32.gmra.mxu0 %v1790
    %v1940 = vpop.f32.mrf.mxu0
    %v1941 = vadd.f32 0.0, %v1940
    %1942 = vmatmul.f32.gmra.mxu0 %v1798
    %v1943 = vpop.f32.mrf.mxu0
    %v1944 = vadd.f32 0.0, %v1943
    %1945 = vmatmul.f32.gmra.mxu0 %v1806
    %v1946 = vpop.f32.mrf.mxu0
    %v1947 = vadd.f32 0.0, %v1946
    %1948 = vmatmul.f32.gmra.mxu0 %v1814
    %v1949 = vpop.f32.mrf.mxu0
    %v1950 = vadd.f32 0.0, %v1949
    %1951 = vdwg.mxu0
    %1952 = vmatpush.xpose.msra.mxu0 %v1734
    %1953 = vmatpush.xpose.msra.mxu0 %v1726
    %1954 = vmatpush.xpose.msra.mxu0 %v1718
    %1955 = vmatpush.xpose.msra.mxu0 %v1710
    %1956 = vmatpush.xpose.msra.mxu0 %v1702
    %1957 = vmatpush.xpose.msra.mxu0 %v1694
    %1958 = vmatpush.xpose.msra.mxu0 %v1686
    %1959 = vmatpush.xpose.msra.mxu0 %v1678
    %1960 = vmatpush.xpose.msra.mxu0 %v1670
    %1961 = vmatpush.xpose.msra.mxu0 %v1662
    %1962 = vmatpush.xpose.msra.mxu0 %v1654
    %1963 = vmatpush.xpose.msra.mxu0 %v1646
    %1964 = vmatpush.xpose.msra.mxu0 %v1638
    %1965 = vmatpush.xpose.msra.mxu0 %v1630
    %1966 = vmatpush.xpose.msra.mxu0 %v1622
    %1967 = vmatpush.xpose.msra.mxu0 %v1614
    %1968 = vmatmul.f32.gmra.mxu0 %v1759
    %v1969 = vpop.f32.mrf.mxu0
    %v1970 = vadd.f32 %v1929, %v1969
    %1971 = vmatmul.f32.gmra.mxu0 %v1767
    %v1972 = vpop.f32.mrf.mxu0
    %v1973 = vadd.f32 %v1932, %v1972
    %1974 = vmatmul.f32.gmra.mxu0 %v1775
    %v1975 = vpop.f32.mrf.mxu0
    %v1976 = vadd.f32 %v1935, %v1975
    %1977 = vmatmul.f32.gmra.mxu0 %v1783
    %v1978 = vpop.f32.mrf.mxu0
    %v1979 = vadd.f32 %v1938, %v1978
    %1980 = vmatmul.f32.gmra.mxu0 %v1791
    %v1981 = vpop.f32.mrf.mxu0
    %v1982 = vadd.f32 %v1941, %v1981
    %1983 = vmatmul.f32.gmra.mxu0 %v1799
    %v1984 = vpop.f32.mrf.mxu0
    %v1985 = vadd.f32 %v1944, %v1984
    %1986 = vmatmul.f32.gmra.mxu0 %v1807
    %v1987 = vpop.f32.mrf.mxu0
    %v1988 = vadd.f32 %v1947, %v1987
    %1989 = vmatmul.f32.gmra.mxu0 %v1815
    %v1990 = vpop.f32.mrf.mxu0
    %v1991 = vadd.f32 %v1950, %v1990
    %1992 = vdwg.mxu0
    %1993 = vmatpush.xpose.msra.mxu0 %v1735
    %1994 = vmatpush.xpose.msra.mxu0 %v1727
    %1995 = vmatpush.xpose.msra.mxu0 %v1719
    %1996 = vmatpush.xpose.msra.mxu0 %v1711
    %1997 = vmatpush.xpose.msra.mxu0 %v1703
    %1998 = vmatpush.xpose.msra.mxu0 %v1695
    %1999 = vmatpush.xpose.msra.mxu0 %v1687
    %2000 = vmatpush.xpose.msra.mxu0 %v1679
    %2001 = vmatpush.xpose.msra.mxu0 %v1671
    %2002 = vmatpush.xpose.msra.mxu0 %v1663
    %2003 = vmatpush.xpose.msra.mxu0 %v1655
    %2004 = vmatpush.xpose.msra.mxu0 %v1647
    %2005 = vmatpush.xpose.msra.mxu0 %v1639
    %2006 = vmatpush.xpose.msra.mxu0 %v1631
    %2007 = vmatpush.xpose.msra.mxu0 %v1623
    %2008 = vmatpush.xpose.msra.mxu0 %v1615
    %2009 = vmatmul.f32.gmra.mxu0 %v1760
    %v2010 = vpop.f32.mrf.mxu0
    %v2011 = vadd.f32 %v1970, %v2010
    %2012 = vmatmul.f32.gmra.mxu0 %v1768
    %v2013 = vpop.f32.mrf.mxu0
    %v2014 = vadd.f32 %v1973, %v2013
    %2015 = vmatmul.f32.gmra.mxu0 %v1776
    %v2016 = vpop.f32.mrf.mxu0
    %v2017 = vadd.f32 %v1976, %v2016
    %2018 = vmatmul.f32.gmra.mxu0 %v1784
    %v2019 = vpop.f32.mrf.mxu0
    %v2020 = vadd.f32 %v1979, %v2019
    %2021 = vmatmul.f32.gmra.mxu0 %v1792
    %v2022 = vpop.f32.mrf.mxu0
    %v2023 = vadd.f32 %v1982, %v2022
    %2024 = vmatmul.f32.gmra.mxu0 %v1800
    %v2025 = vpop.f32.mrf.mxu0
    %v2026 = vadd.f32 %v1985, %v2025
    %2027 = vmatmul.f32.gmra.mxu0 %v1808
    %v2028 = vpop.f32.mrf.mxu0
    %v2029 = vadd.f32 %v1988, %v2028
    %2030 = vmatmul.f32.gmra.mxu0 %v1816
    %v2031 = vpop.f32.mrf.mxu0
    %v2032 = vadd.f32 %v1991, %v2031
    %2033 = vdwg.mxu0
    %2034 = vmatpush.xpose.msra.mxu0 %v1736
    %2035 = vmatpush.xpose.msra.mxu0 %v1728
    %2036 = vmatpush.xpose.msra.mxu0 %v1720
    %2037 = vmatpush.xpose.msra.mxu0 %v1712
    %2038 = vmatpush.xpose.msra.mxu0 %v1704
    %2039 = vmatpush.xpose.msra.mxu0 %v1696
    %2040 = vmatpush.xpose.msra.mxu0 %v1688
    %2041 = vmatpush.xpose.msra.mxu0 %v1680
    %2042 = vmatpush.xpose.msra.mxu0 %v1672
    %2043 = vmatpush.xpose.msra.mxu0 %v1664
    %2044 = vmatpush.xpose.msra.mxu0 %v1656
    %2045 = vmatpush.xpose.msra.mxu0 %v1648
    %2046 = vmatpush.xpose.msra.mxu0 %v1640
    %2047 = vmatpush.xpose.msra.mxu0 %v1632
    %2048 = vmatpush.xpose.msra.mxu0 %v1624
    %2049 = vmatpush.xpose.msra.mxu0 %v1616
    %2050 = vmatmul.f32.gmra.mxu0 %v1761
    %v2051 = vpop.f32.mrf.mxu0
    %v2052 = vadd.f32 %v2011, %v2051
    %2053 = vmatmul.f32.gmra.mxu0 %v1769
    %v2054 = vpop.f32.mrf.mxu0
    %v2055 = vadd.f32 %v2014, %v2054
    %2056 = vmatmul.f32.gmra.mxu0 %v1777
    %v2057 = vpop.f32.mrf.mxu0
    %v2058 = vadd.f32 %v2017, %v2057
    %2059 = vmatmul.f32.gmra.mxu0 %v1785
    %v2060 = vpop.f32.mrf.mxu0
    %v2061 = vadd.f32 %v2020, %v2060
    %2062 = vmatmul.f32.gmra.mxu0 %v1793
    %v2063 = vpop.f32.mrf.mxu0
    %v2064 = vadd.f32 %v2023, %v2063
    %2065 = vmatmul.f32.gmra.mxu0 %v1801
    %v2066 = vpop.f32.mrf.mxu0
    %v2067 = vadd.f32 %v2026, %v2066
    %2068 = vmatmul.f32.gmra.mxu0 %v1809
    %v2069 = vpop.f32.mrf.mxu0
    %v2070 = vadd.f32 %v2029, %v2069
    %2071 = vmatmul.f32.gmra.mxu0 %v1817
    %v2072 = vpop.f32.mrf.mxu0
    %v2073 = vadd.f32 %v2032, %v2072
    %2074 = vdwg.mxu0
    %2075 = vmatpush.xpose.msra.mxu0 %v1737
    %2076 = vmatpush.xpose.msra.mxu0 %v1729
    %2077 = vmatpush.xpose.msra.mxu0 %v1721
    %2078 = vmatpush.xpose.msra.mxu0 %v1713
    %2079 = vmatpush.xpose.msra.mxu0 %v1705
    %2080 = vmatpush.xpose.msra.mxu0 %v1697
    %2081 = vmatpush.xpose.msra.mxu0 %v1689
    %2082 = vmatpush.xpose.msra.mxu0 %v1681
    %2083 = vmatpush.xpose.msra.mxu0 %v1673
    %2084 = vmatpush.xpose.msra.mxu0 %v1665
    %2085 = vmatpush.xpose.msra.mxu0 %v1657
    %2086 = vmatpush.xpose.msra.mxu0 %v1649
    %2087 = vmatpush.xpose.msra.mxu0 %v1641
    %2088 = vmatpush.xpose.msra.mxu0 %v1633
    %2089 = vmatpush.xpose.msra.mxu0 %v1625
    %2090 = vmatpush.xpose.msra.mxu0 %v1617
    %2091 = vmatmul.f32.gmra.mxu0 %v1762
    %v2092 = vpop.f32.mrf.mxu0
    %v2093 = vadd.f32 %v2052, %v2092
    %2094 = vmatmul.f32.gmra.mxu0 %v1770
    %v2095 = vpop.f32.mrf.mxu0
    %v2096 = vadd.f32 %v2055, %v2095
    %2097 = vmatmul.f32.gmra.mxu0 %v1778
    %v2098 = vpop.f32.mrf.mxu0
    %v2099 = vadd.f32 %v2058, %v2098
    %2100 = vmatmul.f32.gmra.mxu0 %v1786
    %v2101 = vpop.f32.mrf.mxu0
    %v2102 = vadd.f32 %v2061, %v2101
    %2103 = vmatmul.f32.gmra.mxu0 %v1794
    %v2104 = vpop.f32.mrf.mxu0
    %v2105 = vadd.f32 %v2064, %v2104
    %2106 = vmatmul.f32.gmra.mxu0 %v1802
    %v2107 = vpop.f32.mrf.mxu0
    %v2108 = vadd.f32 %v2067, %v2107
    %2109 = vmatmul.f32.gmra.mxu0 %v1810
    %v2110 = vpop.f32.mrf.mxu0
    %v2111 = vadd.f32 %v2070, %v2110
    %2112 = vmatmul.f32.gmra.mxu0 %v1818
    %v2113 = vpop.f32.mrf.mxu0
    %v2114 = vadd.f32 %v2073, %v2113
    %2115 = vdwg.mxu0
    %2116 = vmatpush.xpose.msra.mxu0 %v1738
    %2117 = vmatpush.xpose.msra.mxu0 %v1730
    %2118 = vmatpush.xpose.msra.mxu0 %v1722
    %2119 = vmatpush.xpose.msra.mxu0 %v1714
    %2120 = vmatpush.xpose.msra.mxu0 %v1706
    %2121 = vmatpush.xpose.msra.mxu0 %v1698
    %2122 = vmatpush.xpose.msra.mxu0 %v1690
    %2123 = vmatpush.xpose.msra.mxu0 %v1682
    %2124 = vmatpush.xpose.msra.mxu0 %v1674
    %2125 = vmatpush.xpose.msra.mxu0 %v1666
    %2126 = vmatpush.xpose.msra.mxu0 %v1658
    %2127 = vmatpush.xpose.msra.mxu0 %v1650
    %2128 = vmatpush.xpose.msra.mxu0 %v1642
    %2129 = vmatpush.xpose.msra.mxu0 %v1634
    %2130 = vmatpush.xpose.msra.mxu0 %v1626
    %2131 = vmatpush.xpose.msra.mxu0 %v1618
    %2132 = vmatmul.f32.gmra.mxu0 %v1763
    %v2133 = vpop.f32.mrf.mxu0
    %v2134 = vadd.f32 %v2093, %v2133
    %2135 = vmatmul.f32.gmra.mxu0 %v1771
    %v2136 = vpop.f32.mrf.mxu0
    %v2137 = vadd.f32 %v2096, %v2136
    %2138 = vmatmul.f32.gmra.mxu0 %v1779
    %v2139 = vpop.f32.mrf.mxu0
    %v2140 = vadd.f32 %v2099, %v2139
    %2141 = vmatmul.f32.gmra.mxu0 %v1787
    %v2142 = vpop.f32.mrf.mxu0
    %v2143 = vadd.f32 %v2102, %v2142
    %2144 = vmatmul.f32.gmra.mxu0 %v1795
    %v2145 = vpop.f32.mrf.mxu0
    %v2146 = vadd.f32 %v2105, %v2145
    %2147 = vmatmul.f32.gmra.mxu0 %v1803
    %v2148 = vpop.f32.mrf.mxu0
    %v2149 = vadd.f32 %v2108, %v2148
    %2150 = vmatmul.f32.gmra.mxu0 %v1811
    %v2151 = vpop.f32.mrf.mxu0
    %v2152 = vadd.f32 %v2111, %v2151
    %2153 = vmatmul.f32.gmra.mxu0 %v1819
    %v2154 = vpop.f32.mrf.mxu0
    %v2155 = vadd.f32 %v2114, %v2154
    %2156 = vdwg.mxu0
    %2157 = vmatpush.xpose.msra.mxu0 %v1739
    %2158 = vmatpush.xpose.msra.mxu0 %v1731
    %2159 = vmatpush.xpose.msra.mxu0 %v1723
    %2160 = vmatpush.xpose.msra.mxu0 %v1715
    %2161 = vmatpush.xpose.msra.mxu0 %v1707
    %2162 = vmatpush.xpose.msra.mxu0 %v1699
    %2163 = vmatpush.xpose.msra.mxu0 %v1691
    %2164 = vmatpush.xpose.msra.mxu0 %v1683
    %2165 = vmatpush.xpose.msra.mxu0 %v1675
    %2166 = vmatpush.xpose.msra.mxu0 %v1667
    %2167 = vmatpush.xpose.msra.mxu0 %v1659
    %2168 = vmatpush.xpose.msra.mxu0 %v1651
    %2169 = vmatpush.xpose.msra.mxu0 %v1643
    %2170 = vmatpush.xpose.msra.mxu0 %v1635
    %2171 = vmatpush.xpose.msra.mxu0 %v1627
    %2172 = vmatpush.xpose.msra.mxu0 %v1619
    %2173 = vmatmul.f32.gmra.mxu0 %v1764
    %v2174 = vpop.f32.mrf.mxu0
    %v2175 = vadd.f32 %v2134, %v2174
    %2176 = vmatmul.f32.gmra.mxu0 %v1772
    %v2177 = vpop.f32.mrf.mxu0
    %v2178 = vadd.f32 %v2137, %v2177
    %2179 = vmatmul.f32.gmra.mxu0 %v1780
    %v2180 = vpop.f32.mrf.mxu0
    %v2181 = vadd.f32 %v2140, %v2180
    %2182 = vmatmul.f32.gmra.mxu0 %v1788
    %v2183 = vpop.f32.mrf.mxu0
    %v2184 = vadd.f32 %v2143, %v2183
    %2185 = vmatmul.f32.gmra.mxu0 %v1796
    %v2186 = vpop.f32.mrf.mxu0
    %v2187 = vadd.f32 %v2146, %v2186
    %2188 = vmatmul.f32.gmra.mxu0 %v1804
    %v2189 = vpop.f32.mrf.mxu0
    %v2190 = vadd.f32 %v2149, %v2189
    %2191 = vmatmul.f32.gmra.mxu0 %v1812
    %v2192 = vpop.f32.mrf.mxu0
    %v2193 = vadd.f32 %v2152, %v2192
    %2194 = vmatmul.f32.gmra.mxu0 %v1820
    %v2195 = vpop.f32.mrf.mxu0
    %v2196 = vadd.f32 %v2155, %v2195
    %2197 = vdwg.mxu0
    %2198 = vmatpush.xpose.msra.mxu0 %v1740
    %2199 = vmatpush.xpose.msra.mxu0 %v1732
    %2200 = vmatpush.xpose.msra.mxu0 %v1724
    %2201 = vmatpush.xpose.msra.mxu0 %v1716
    %2202 = vmatpush.xpose.msra.mxu0 %v1708
    %2203 = vmatpush.xpose.msra.mxu0 %v1700
    %2204 = vmatpush.xpose.msra.mxu0 %v1692
    %2205 = vmatpush.xpose.msra.mxu0 %v1684
    %2206 = vmatpush.xpose.msra.mxu0 %v1676
    %2207 = vmatpush.xpose.msra.mxu0 %v1668
    %2208 = vmatpush.xpose.msra.mxu0 %v1660
    %2209 = vmatpush.xpose.msra.mxu0 %v1652
    %2210 = vmatpush.xpose.msra.mxu0 %v1644
    %2211 = vmatpush.xpose.msra.mxu0 %v1636
    %2212 = vmatpush.xpose.msra.mxu0 %v1628
    %2213 = vmatpush.xpose.msra.mxu0 %v1620
    %2214 = vmatmul.f32.gmra.mxu0 %v1765
    %v2215 = vpop.f32.mrf.mxu0
    %v2216 = vadd.f32 %v2175, %v2215
    %2217 = vmatmul.f32.gmra.mxu0 %v1773
    %v2218 = vpop.f32.mrf.mxu0
    %v2219 = vadd.f32 %v2178, %v2218
    %2220 = vmatmul.f32.gmra.mxu0 %v1781
    %v2221 = vpop.f32.mrf.mxu0
    %v2222 = vadd.f32 %v2181, %v2221
    %2223 = vmatmul.f32.gmra.mxu0 %v1789
    %v2224 = vpop.f32.mrf.mxu0
    %v2225 = vadd.f32 %v2184, %v2224
    %2226 = vmatmul.f32.gmra.mxu0 %v1797
    %v2227 = vpop.f32.mrf.mxu0
    %v2228 = vadd.f32 %v2187, %v2227
    %2229 = vmatmul.f32.gmra.mxu0 %v1805
    %v2230 = vpop.f32.mrf.mxu0
    %v2231 = vadd.f32 %v2190, %v2230
    %2232 = vmatmul.f32.gmra.mxu0 %v1813
    %v2233 = vpop.f32.mrf.mxu0
    %v2234 = vadd.f32 %v2193, %v2233
    %2235 = vmatmul.f32.gmra.mxu0 %v1821
    %v2236 = vpop.f32.mrf.mxu0
    %v2237 = vadd.f32 %v2196, %v2236
    %2238 = vdwg.mxu0
    %v2239 = vadd.f32 %v1903, %v2216
    %v2240 = vadd.f32 %v1904, %v2219
    %v2241 = vadd.f32 %v1905, %v2222
    %v2242 = vadd.f32 %v1906, %v2225
    %v2243 = vadd.f32 %v1907, %v2228
    %v2244 = vadd.f32 %v1908, %v2231
    %v2245 = vadd.f32 %v1909, %v2234
    %v2246 = vadd.f32 %v1910, %v2237
    %2247 = vst [vmem:[#allocation2] sm:$0xff] %v2239
    %2248 = vst [vmem:[#allocation2 + $0x8] sm:$0xff] %v2240
    %2249 = vst [vmem:[#allocation2 + $0x10] sm:$0xff] %v2241
    %2250 = vst [vmem:[#allocation2 + $0x18] sm:$0xff] %v2242
    %2251 = vst [vmem:[#allocation2 + $0x20] sm:$0xff] %v2243
    %2252 = vst [vmem:[#allocation2 + $0x28] sm:$0xff] %v2244
    %2253 = vst [vmem:[#allocation2 + $0x30] sm:$0xff] %v2245
    %2254 = vst [vmem:[#allocation2 + $0x38] sm:$0xff] %v2246
    %v2255 = vld [vmem:[#allocation2 + $0x40] sm:$0xff]
    %v2256 = vld [vmem:[#allocation2 + $0x48] sm:$0xff]
    %v2257 = vld [vmem:[#allocation2 + $0x50] sm:$0xff]
    %v2258 = vld [vmem:[#allocation2 + $0x58] sm:$0xff]
    %v2259 = vld [vmem:[#allocation2 + $0x60] sm:$0xff]
    %v2260 = vld [vmem:[#allocation2 + $0x68] sm:$0xff]
    %v2261 = vld [vmem:[#allocation2 + $0x70] sm:$0xff]
    %v2262 = vld [vmem:[#allocation2 + $0x78] sm:$0xff]
    %2263 = vmatpush.xpose.msra.mxu0 %v1733
    %2264 = vmatpush.xpose.msra.mxu0 %v1725
    %2265 = vmatpush.xpose.msra.mxu0 %v1717
    %2266 = vmatpush.xpose.msra.mxu0 %v1709
    %2267 = vmatpush.xpose.msra.mxu0 %v1701
    %2268 = vmatpush.xpose.msra.mxu0 %v1693
    %2269 = vmatpush.xpose.msra.mxu0 %v1685
    %2270 = vmatpush.xpose.msra.mxu0 %v1677
    %2271 = vmatpush.xpose.msra.mxu0 %v1669
    %2272 = vmatpush.xpose.msra.mxu0 %v1661
    %2273 = vmatpush.xpose.msra.mxu0 %v1653
    %2274 = vmatpush.xpose.msra.mxu0 %v1645
    %2275 = vmatpush.xpose.msra.mxu0 %v1637
    %2276 = vmatpush.xpose.msra.mxu0 %v1629
    %2277 = vmatpush.xpose.msra.mxu0 %v1621
    %2278 = vmatpush.xpose.msra.mxu0 %v1613
    %2279 = vmatmul.f32.gmra.mxu0 %v1839
    %v2280 = vpop.f32.mrf.mxu0
    %v2281 = vadd.f32 0.0, %v2280
    %2282 = vmatmul.f32.gmra.mxu0 %v1847
    %v2283 = vpop.f32.mrf.mxu0
    %v2284 = vadd.f32 0.0, %v2283
    %2285 = vmatmul.f32.gmra.mxu0 %v1855
    %v2286 = vpop.f32.mrf.mxu0
    %v2287 = vadd.f32 0.0, %v2286
    %2288 = vmatmul.f32.gmra.mxu0 %v1863
    %v2289 = vpop.f32.mrf.mxu0
    %v2290 = vadd.f32 0.0, %v2289
    %2291 = vmatmul.f32.gmra.mxu0 %v1871
    %v2292 = vpop.f32.mrf.mxu0
    %v2293 = vadd.f32 0.0, %v2292
    %2294 = vmatmul.f32.gmra.mxu0 %v1879
    %v2295 = vpop.f32.mrf.mxu0
    %v2296 = vadd.f32 0.0, %v2295
    %2297 = vmatmul.f32.gmra.mxu0 %v1887
    %v2298 = vpop.f32.mrf.mxu0
    %v2299 = vadd.f32 0.0, %v2298
    %2300 = vmatmul.f32.gmra.mxu0 %v1895
    %v2301 = vpop.f32.mrf.mxu0
    %v2302 = vadd.f32 0.0, %v2301
    %2303 = vdwg.mxu0
    %2304 = vmatpush.xpose.msra.mxu0 %v1734
    %2305 = vmatpush.xpose.msra.mxu0 %v1726
    %2306 = vmatpush.xpose.msra.mxu0 %v1718
    %2307 = vmatpush.xpose.msra.mxu0 %v1710
    %2308 = vmatpush.xpose.msra.mxu0 %v1702
    %2309 = vmatpush.xpose.msra.mxu0 %v1694
    %2310 = vmatpush.xpose.msra.mxu0 %v1686
    %2311 = vmatpush.xpose.msra.mxu0 %v1678
    %2312 = vmatpush.xpose.msra.mxu0 %v1670
    %2313 = vmatpush.xpose.msra.mxu0 %v1662
    %2314 = vmatpush.xpose.msra.mxu0 %v1654
    %2315 = vmatpush.xpose.msra.mxu0 %v1646
    %2316 = vmatpush.xpose.msra.mxu0 %v1638
    %2317 = vmatpush.xpose.msra.mxu0 %v1630
    %2318 = vmatpush.xpose.msra.mxu0 %v1622
    %2319 = vmatpush.xpose.msra.mxu0 %v1614
    %2320 = vmatmul.f32.gmra.mxu0 %v1840
    %v2321 = vpop.f32.mrf.mxu0
    %v2322 = vadd.f32 %v2281, %v2321
    %2323 = vmatmul.f32.gmra.mxu0 %v1848
    %v2324 = vpop.f32.mrf.mxu0
    %v2325 = vadd.f32 %v2284, %v2324
    %2326 = vmatmul.f32.gmra.mxu0 %v1856
    %v2327 = vpop.f32.mrf.mxu0
    %v2328 = vadd.f32 %v2287, %v2327
    %2329 = vmatmul.f32.gmra.mxu0 %v1864
    %v2330 = vpop.f32.mrf.mxu0
    %v2331 = vadd.f32 %v2290, %v2330
    %2332 = vmatmul.f32.gmra.mxu0 %v1872
    %v2333 = vpop.f32.mrf.mxu0
    %v2334 = vadd.f32 %v2293, %v2333
    %2335 = vmatmul.f32.gmra.mxu0 %v1880
    %v2336 = vpop.f32.mrf.mxu0
    %v2337 = vadd.f32 %v2296, %v2336
    %2338 = vmatmul.f32.gmra.mxu0 %v1888
    %v2339 = vpop.f32.mrf.mxu0
    %v2340 = vadd.f32 %v2299, %v2339
    %2341 = vmatmul.f32.gmra.mxu0 %v1896
    %v2342 = vpop.f32.mrf.mxu0
    %v2343 = vadd.f32 %v2302, %v2342
    %2344 = vdwg.mxu0
    %2345 = vmatpush.xpose.msra.mxu0 %v1735
    %2346 = vmatpush.xpose.msra.mxu0 %v1727
    %2347 = vmatpush.xpose.msra.mxu0 %v1719
    %2348 = vmatpush.xpose.msra.mxu0 %v1711
    %2349 = vmatpush.xpose.msra.mxu0 %v1703
    %2350 = vmatpush.xpose.msra.mxu0 %v1695
    %2351 = vmatpush.xpose.msra.mxu0 %v1687
    %2352 = vmatpush.xpose.msra.mxu0 %v1679
    %2353 = vmatpush.xpose.msra.mxu0 %v1671
    %2354 = vmatpush.xpose.msra.mxu0 %v1663
    %2355 = vmatpush.xpose.msra.mxu0 %v1655
    %2356 = vmatpush.xpose.msra.mxu0 %v1647
    %2357 = vmatpush.xpose.msra.mxu0 %v1639
    %2358 = vmatpush.xpose.msra.mxu0 %v1631
    %2359 = vmatpush.xpose.msra.mxu0 %v1623
    %2360 = vmatpush.xpose.msra.mxu0 %v1615
    %2361 = vmatmul.f32.gmra.mxu0 %v1841
    %v2362 = vpop.f32.mrf.mxu0
    %v2363 = vadd.f32 %v2322, %v2362
    %2364 = vmatmul.f32.gmra.mxu0 %v1849
    %v2365 = vpop.f32.mrf.mxu0
    %v2366 = vadd.f32 %v2325, %v2365
    %2367 = vmatmul.f32.gmra.mxu0 %v1857
    %v2368 = vpop.f32.mrf.mxu0
    %v2369 = vadd.f32 %v2328, %v2368
    %2370 = vmatmul.f32.gmra.mxu0 %v1865
    %v2371 = vpop.f32.mrf.mxu0
    %v2372 = vadd.f32 %v2331, %v2371
    %2373 = vmatmul.f32.gmra.mxu0 %v1873
    %v2374 = vpop.f32.mrf.mxu0
    %v2375 = vadd.f32 %v2334, %v2374
    %2376 = vmatmul.f32.gmra.mxu0 %v1881
    %v2377 = vpop.f32.mrf.mxu0
    %v2378 = vadd.f32 %v2337, %v2377
    %2379 = vmatmul.f32.gmra.mxu0 %v1889
    %v2380 = vpop.f32.mrf.mxu0
    %v2381 = vadd.f32 %v2340, %v2380
    %2382 = vmatmul.f32.gmra.mxu0 %v1897
    %v2383 = vpop.f32.mrf.mxu0
    %v2384 = vadd.f32 %v2343, %v2383
    %2385 = vdwg.mxu0
    %2386 = vmatpush.xpose.msra.mxu0 %v1736
    %2387 = vmatpush.xpose.msra.mxu0 %v1728
    %2388 = vmatpush.xpose.msra.mxu0 %v1720
    %2389 = vmatpush.xpose.msra.mxu0 %v1712
    %2390 = vmatpush.xpose.msra.mxu0 %v1704
    %2391 = vmatpush.xpose.msra.mxu0 %v1696
    %2392 = vmatpush.xpose.msra.mxu0 %v1688
    %2393 = vmatpush.xpose.msra.mxu0 %v1680
    %2394 = vmatpush.xpose.msra.mxu0 %v1672
    %2395 = vmatpush.xpose.msra.mxu0 %v1664
    %2396 = vmatpush.xpose.msra.mxu0 %v1656
    %2397 = vmatpush.xpose.msra.mxu0 %v1648
    %2398 = vmatpush.xpose.msra.mxu0 %v1640
    %2399 = vmatpush.xpose.msra.mxu0 %v1632
    %2400 = vmatpush.xpose.msra.mxu0 %v1624
    %2401 = vmatpush.xpose.msra.mxu0 %v1616
    %2402 = vmatmul.f32.gmra.mxu0 %v1842
    %v2403 = vpop.f32.mrf.mxu0
    %v2404 = vadd.f32 %v2363, %v2403
    %2405 = vmatmul.f32.gmra.mxu0 %v1850
    %v2406 = vpop.f32.mrf.mxu0
    %v2407 = vadd.f32 %v2366, %v2406
    %2408 = vmatmul.f32.gmra.mxu0 %v1858
    %v2409 = vpop.f32.mrf.mxu0
    %v2410 = vadd.f32 %v2369, %v2409
    %2411 = vmatmul.f32.gmra.mxu0 %v1866
    %v2412 = vpop.f32.mrf.mxu0
    %v2413 = vadd.f32 %v2372, %v2412
    %2414 = vmatmul.f32.gmra.mxu0 %v1874
    %v2415 = vpop.f32.mrf.mxu0
    %v2416 = vadd.f32 %v2375, %v2415
    %2417 = vmatmul.f32.gmra.mxu0 %v1882
    %v2418 = vpop.f32.mrf.mxu0
    %v2419 = vadd.f32 %v2378, %v2418
    %2420 = vmatmul.f32.gmra.mxu0 %v1890
    %v2421 = vpop.f32.mrf.mxu0
    %v2422 = vadd.f32 %v2381, %v2421
    %2423 = vmatmul.f32.gmra.mxu0 %v1898
    %v2424 = vpop.f32.mrf.mxu0
    %v2425 = vadd.f32 %v2384, %v2424
    %2426 = vdwg.mxu0
    %2427 = vmatpush.xpose.msra.mxu0 %v1737
    %2428 = vmatpush.xpose.msra.mxu0 %v1729
    %2429 = vmatpush.xpose.msra.mxu0 %v1721
    %2430 = vmatpush.xpose.msra.mxu0 %v1713
    %2431 = vmatpush.xpose.msra.mxu0 %v1705
    %2432 = vmatpush.xpose.msra.mxu0 %v1697
    %2433 = vmatpush.xpose.msra.mxu0 %v1689
    %2434 = vmatpush.xpose.msra.mxu0 %v1681
    %2435 = vmatpush.xpose.msra.mxu0 %v1673
    %2436 = vmatpush.xpose.msra.mxu0 %v1665
    %2437 = vmatpush.xpose.msra.mxu0 %v1657
    %2438 = vmatpush.xpose.msra.mxu0 %v1649
    %2439 = vmatpush.xpose.msra.mxu0 %v1641
    %2440 = vmatpush.xpose.msra.mxu0 %v1633
    %2441 = vmatpush.xpose.msra.mxu0 %v1625
    %2442 = vmatpush.xpose.msra.mxu0 %v1617
    %2443 = vmatmul.f32.gmra.mxu0 %v1843
    %v2444 = vpop.f32.mrf.mxu0
    %v2445 = vadd.f32 %v2404, %v2444
    %2446 = vmatmul.f32.gmra.mxu0 %v1851
    %v2447 = vpop.f32.mrf.mxu0
    %v2448 = vadd.f32 %v2407, %v2447
    %2449 = vmatmul.f32.gmra.mxu0 %v1859
    %v2450 = vpop.f32.mrf.mxu0
    %v2451 = vadd.f32 %v2410, %v2450
    %2452 = vmatmul.f32.gmra.mxu0 %v1867
    %v2453 = vpop.f32.mrf.mxu0
    %v2454 = vadd.f32 %v2413, %v2453
    %2455 = vmatmul.f32.gmra.mxu0 %v1875
    %v2456 = vpop.f32.mrf.mxu0
    %v2457 = vadd.f32 %v2416, %v2456
    %2458 = vmatmul.f32.gmra.mxu0 %v1883
    %v2459 = vpop.f32.mrf.mxu0
    %v2460 = vadd.f32 %v2419, %v2459
    %2461 = vmatmul.f32.gmra.mxu0 %v1891
    %v2462 = vpop.f32.mrf.mxu0
    %v2463 = vadd.f32 %v2422, %v2462
    %2464 = vmatmul.f32.gmra.mxu0 %v1899
    %v2465 = vpop.f32.mrf.mxu0
    %v2466 = vadd.f32 %v2425, %v2465
    %2467 = vdwg.mxu0
    %2468 = vmatpush.xpose.msra.mxu0 %v1738
    %2469 = vmatpush.xpose.msra.mxu0 %v1730
    %2470 = vmatpush.xpose.msra.mxu0 %v1722
    %2471 = vmatpush.xpose.msra.mxu0 %v1714
    %2472 = vmatpush.xpose.msra.mxu0 %v1706
    %2473 = vmatpush.xpose.msra.mxu0 %v1698
    %2474 = vmatpush.xpose.msra.mxu0 %v1690
    %2475 = vmatpush.xpose.msra.mxu0 %v1682
    %2476 = vmatpush.xpose.msra.mxu0 %v1674
    %2477 = vmatpush.xpose.msra.mxu0 %v1666
    %2478 = vmatpush.xpose.msra.mxu0 %v1658
    %2479 = vmatpush.xpose.msra.mxu0 %v1650
    %2480 = vmatpush.xpose.msra.mxu0 %v1642
    %2481 = vmatpush.xpose.msra.mxu0 %v1634
    %2482 = vmatpush.xpose.msra.mxu0 %v1626
    %2483 = vmatpush.xpose.msra.mxu0 %v1618
    %2484 = vmatmul.f32.gmra.mxu0 %v1844
    %v2485 = vpop.f32.mrf.mxu0
    %v2486 = vadd.f32 %v2445, %v2485
    %2487 = vmatmul.f32.gmra.mxu0 %v1852
    %v2488 = vpop.f32.mrf.mxu0
    %v2489 = vadd.f32 %v2448, %v2488
    %2490 = vmatmul.f32.gmra.mxu0 %v1860
    %v2491 = vpop.f32.mrf.mxu0
    %v2492 = vadd.f32 %v2451, %v2491
    %2493 = vmatmul.f32.gmra.mxu0 %v1868
    %v2494 = vpop.f32.mrf.mxu0
    %v2495 = vadd.f32 %v2454, %v2494
    %2496 = vmatmul.f32.gmra.mxu0 %v1876
    %v2497 = vpop.f32.mrf.mxu0
    %v2498 = vadd.f32 %v2457, %v2497
    %2499 = vmatmul.f32.gmra.mxu0 %v1884
    %v2500 = vpop.f32.mrf.mxu0
    %v2501 = vadd.f32 %v2460, %v2500
    %2502 = vmatmul.f32.gmra.mxu0 %v1892
    %v2503 = vpop.f32.mrf.mxu0
    %v2504 = vadd.f32 %v2463, %v2503
    %2505 = vmatmul.f32.gmra.mxu0 %v1900
    %v2506 = vpop.f32.mrf.mxu0
    %v2507 = vadd.f32 %v2466, %v2506
    %2508 = vdwg.mxu0
    %2509 = vmatpush.xpose.msra.mxu0 %v1739
    %2510 = vmatpush.xpose.msra.mxu0 %v1731
    %2511 = vmatpush.xpose.msra.mxu0 %v1723
    %2512 = vmatpush.xpose.msra.mxu0 %v1715
    %2513 = vmatpush.xpose.msra.mxu0 %v1707
    %2514 = vmatpush.xpose.msra.mxu0 %v1699
    %2515 = vmatpush.xpose.msra.mxu0 %v1691
    %2516 = vmatpush.xpose.msra.mxu0 %v1683
    %2517 = vmatpush.xpose.msra.mxu0 %v1675
    %2518 = vmatpush.xpose.msra.mxu0 %v1667
    %2519 = vmatpush.xpose.msra.mxu0 %v1659
    %2520 = vmatpush.xpose.msra.mxu0 %v1651
    %2521 = vmatpush.xpose.msra.mxu0 %v1643
    %2522 = vmatpush.xpose.msra.mxu0 %v1635
    %2523 = vmatpush.xpose.msra.mxu0 %v1627
    %2524 = vmatpush.xpose.msra.mxu0 %v1619
    %2525 = vmatmul.f32.gmra.mxu0 %v1845
    %v2526 = vpop.f32.mrf.mxu0
    %v2527 = vadd.f32 %v2486, %v2526
    %2528 = vmatmul.f32.gmra.mxu0 %v1853
    %v2529 = vpop.f32.mrf.mxu0
    %v2530 = vadd.f32 %v2489, %v2529
    %2531 = vmatmul.f32.gmra.mxu0 %v1861
    %v2532 = vpop.f32.mrf.mxu0
    %v2533 = vadd.f32 %v2492, %v2532
    %2534 = vmatmul.f32.gmra.mxu0 %v1869
    %v2535 = vpop.f32.mrf.mxu0
    %v2536 = vadd.f32 %v2495, %v2535
    %2537 = vmatmul.f32.gmra.mxu0 %v1877
    %v2538 = vpop.f32.mrf.mxu0
    %v2539 = vadd.f32 %v2498, %v2538
    %2540 = vmatmul.f32.gmra.mxu0 %v1885
    %v2541 = vpop.f32.mrf.mxu0
    %v2542 = vadd.f32 %v2501, %v2541
    %2543 = vmatmul.f32.gmra.mxu0 %v1893
    %v2544 = vpop.f32.mrf.mxu0
    %v2545 = vadd.f32 %v2504, %v2544
    %2546 = vmatmul.f32.gmra.mxu0 %v1901
    %v2547 = vpop.f32.mrf.mxu0
    %v2548 = vadd.f32 %v2507, %v2547
    %2549 = vdwg.mxu0
    %2550 = vmatpush.xpose.msra.mxu0 %v1740
    %2551 = vmatpush.xpose.msra.mxu0 %v1732
    %2552 = vmatpush.xpose.msra.mxu0 %v1724
    %2553 = vmatpush.xpose.msra.mxu0 %v1716
    %2554 = vmatpush.xpose.msra.mxu0 %v1708
    %2555 = vmatpush.xpose.msra.mxu0 %v1700
    %2556 = vmatpush.xpose.msra.mxu0 %v1692
    %2557 = vmatpush.xpose.msra.mxu0 %v1684
    %2558 = vmatpush.xpose.msra.mxu0 %v1676
    %2559 = vmatpush.xpose.msra.mxu0 %v1668
    %2560 = vmatpush.xpose.msra.mxu0 %v1660
    %2561 = vmatpush.xpose.msra.mxu0 %v1652
    %2562 = vmatpush.xpose.msra.mxu0 %v1644
    %2563 = vmatpush.xpose.msra.mxu0 %v1636
    %2564 = vmatpush.xpose.msra.mxu0 %v1628
    %2565 = vmatpush.xpose.msra.mxu0 %v1620
    %2566 = vmatmul.f32.gmra.mxu0 %v1846
    %v2567 = vpop.f32.mrf.mxu0
    %v2568 = vadd.f32 %v2527, %v2567
    %2569 = vmatmul.f32.gmra.mxu0 %v1854
    %v2570 = vpop.f32.mrf.mxu0
    %v2571 = vadd.f32 %v2530, %v2570
    %2572 = vmatmul.f32.gmra.mxu0 %v1862
    %v2573 = vpop.f32.mrf.mxu0
    %v2574 = vadd.f32 %v2533, %v2573
    %2575 = vmatmul.f32.gmra.mxu0 %v1870
    %v2576 = vpop.f32.mrf.mxu0
    %v2577 = vadd.f32 %v2536, %v2576
    %2578 = vmatmul.f32.gmra.mxu0 %v1878
    %v2579 = vpop.f32.mrf.mxu0
    %v2580 = vadd.f32 %v2539, %v2579
    %2581 = vmatmul.f32.gmra.mxu0 %v1886
    %v2582 = vpop.f32.mrf.mxu0
    %v2583 = vadd.f32 %v2542, %v2582
    %2584 = vmatmul.f32.gmra.mxu0 %v1894
    %v2585 = vpop.f32.mrf.mxu0
    %v2586 = vadd.f32 %v2545, %v2585
    %2587 = vmatmul.f32.gmra.mxu0 %v1902
    %v2588 = vpop.f32.mrf.mxu0
    %v2589 = vadd.f32 %v2548, %v2588
    %2590 = vdwg.mxu0
    %v2591 = vadd.f32 %v2255, %v2568
    %v2592 = vadd.f32 %v2256, %v2571
    %v2593 = vadd.f32 %v2257, %v2574
    %v2594 = vadd.f32 %v2258, %v2577
    %v2595 = vadd.f32 %v2259, %v2580
    %v2596 = vadd.f32 %v2260, %v2583
    %v2597 = vadd.f32 %v2261, %v2586
    %v2598 = vadd.f32 %v2262, %v2589
    %2599 = vst [vmem:[#allocation2 + $0x40] sm:$0xff] %v2591
    %2600 = vst [vmem:[#allocation2 + $0x48] sm:$0xff] %v2592
    %2601 = vst [vmem:[#allocation2 + $0x50] sm:$0xff] %v2593
    %2602 = vst [vmem:[#allocation2 + $0x58] sm:$0xff] %v2594
    %2603 = vst [vmem:[#allocation2 + $0x60] sm:$0xff] %v2595
    %2604 = vst [vmem:[#allocation2 + $0x68] sm:$0xff] %v2596
    %2605 = vst [vmem:[#allocation2 + $0x70] sm:$0xff] %v2597
    %2606 = vst [vmem:[#allocation2 + $0x78] sm:$0xff] %v2598
    // Predicated region
    $region14: #{tpu_custom_call.1} parent=1 // pred_check
      %p2607 = pneg %p29
    $region15: #{tpu_custom_call.1} parent=1 // pred_check_branch
      %2609 = sbr.rel (%p2607) target = $region17
    $region16: #{tpu_custom_call.1} parent=1 // pred_region
      %v2610 = vld [vmem:[#allocation2] sm:$0xff]
      %v2611 = vld [vmem:[#allocation2 + $0x8] sm:$0xff]
      %v2612 = vld [vmem:[#allocation2 + $0x10] sm:$0xff]
      %v2613 = vld [vmem:[#allocation2 + $0x18] sm:$0xff]
      %v2614 = vld [vmem:[#allocation2 + $0x20] sm:$0xff]
      %v2615 = vld [vmem:[#allocation2 + $0x28] sm:$0xff]
      %v2616 = vld [vmem:[#allocation2 + $0x30] sm:$0xff]
      %v2617 = vld [vmem:[#allocation2 + $0x38] sm:$0xff]
      %v2618 = vmul.f32 %v2610, 0.64
      %v2619 = vmul.f32 %v2611, 0.64
      %v2620 = vmul.f32 %v2612, 0.64
      %v2621 = vmul.f32 %v2613, 0.64
      %v2622 = vmul.f32 %v2614, 0.64
      %v2623 = vmul.f32 %v2615, 0.64
      %v2624 = vmul.f32 %v2616, 0.64
      %v2625 = vmul.f32 %v2617, 0.64
      %v2626 = vand.u32 2147483647, %v2618
      %v2627 = vand.u32 2147483647, %v2619
      %v2628 = vand.u32 2147483647, %v2620
      %v2629 = vand.u32 2147483647, %v2621
      %v2630 = vand.u32 2147483647, %v2622
      %v2631 = vand.u32 2147483647, %v2623
      %v2632 = vand.u32 2147483647, %v2624
      %v2633 = vand.u32 2147483647, %v2625
      %v2634 = vld [vmem:[#allocation2 + $0x40] sm:$0xff]
      %v2635 = vld [vmem:[#allocation2 + $0x48] sm:$0xff]
      %v2636 = vld [vmem:[#allocation2 + $0x50] sm:$0xff]
      %v2637 = vld [vmem:[#allocation2 + $0x58] sm:$0xff]
      %v2638 = vld [vmem:[#allocation2 + $0x60] sm:$0xff]
      %v2639 = vld [vmem:[#allocation2 + $0x68] sm:$0xff]
      %v2640 = vld [vmem:[#allocation2 + $0x70] sm:$0xff]
      %v2641 = vld [vmem:[#allocation2 + $0x78] sm:$0xff]
      %v2642 = vmul.f32 %v2634, 0.6896552
      %v2643 = vmul.f32 %v2635, 0.6896552
      %v2644 = vmul.f32 %v2636, 0.6896552
      %v2645 = vmul.f32 %v2637, 0.6896552
      %v2646 = vmul.f32 %v2638, 0.6896552
      %v2647 = vmul.f32 %v2639, 0.6896552
      %v2648 = vmul.f32 %v2640, 0.6896552
      %v2649 = vmul.f32 %v2641, 0.6896552
      %v2650 = vand.u32 2147483647, %v2642
      %v2651 = vand.u32 2147483647, %v2643
      %v2652 = vand.u32 2147483647, %v2644
      %v2653 = vand.u32 2147483647, %v2645
      %v2654 = vand.u32 2147483647, %v2646
      %v2655 = vand.u32 2147483647, %v2647
      %v2656 = vand.u32 2147483647, %v2648
      %v2657 = vand.u32 2147483647, %v2649
      %v2658 = vmax.f32 %v2626, %v2650
      %v2659 = vmax.f32 %v2627, %v2651
      %v2660 = vmax.f32 %v2628, %v2652
      %v2661 = vmax.f32 %v2629, %v2653
      %v2662 = vmax.f32 %v2630, %v2654
      %v2663 = vmax.f32 %v2631, %v2655
      %v2664 = vmax.f32 %v2632, %v2656
      %v2665 = vmax.f32 %v2633, %v2657
      %2666 = vst [vmem:[#allocation10] sm:$0xff] %v2658
      %2667 = vst [vmem:[#allocation10 + $0x8] sm:$0xff] %v2659
      %2668 = vst [vmem:[#allocation10 + $0x10] sm:$0xff] %v2660
      %2669 = vst [vmem:[#allocation10 + $0x18] sm:$0xff] %v2661
      %2670 = vst [vmem:[#allocation10 + $0x20] sm:$0xff] %v2662
      %2671 = vst [vmem:[#allocation10 + $0x28] sm:$0xff] %v2663
      %2672 = vst [vmem:[#allocation10 + $0x30] sm:$0xff] %v2664
      %2673 = vst [vmem:[#allocation10 + $0x38] sm:$0xff] %v2665
    $region17: #{tpu_custom_call.1} parent=1 // pred_fallthru
      _
    // Predicated region
    $region18: #{tpu_custom_call.1} parent=1 // pred_check
      _
    $region19: #{tpu_custom_call.1} parent=1 // pred_check_branch
      %2675 = sbr.rel (0) target = $region21
    $region20: #{tpu_custom_call.1} parent=1 // pred_region
      %2677 = vsyncadd [#allocation9], 0
      %s2678 = sshll.u32 [#allocation10], 4
      %s2679 = int_to_ptr.vmem [resolvable:$true] %s2678
      %s2680 = sshll.u32 %s1, 4
      %s2681 = int_to_ptr.hbm [resolvable:$true] %s2680
      %2686 = dma.vmem_to_hbm [thread:$0]  %s2679, 1024, %s2681, [#allocation9], 128, 128, 8
    $region21: #{tpu_custom_call.1} parent=1 // pred_fallthru
      _
    // Predicated region
    $region22: #{tpu_custom_call.1} parent=1 // pred_check
      _
    $region23: #{tpu_custom_call.1} parent=1 // pred_check_branch
      %2688 = sbr.rel (0) target = $region25
    $region24: #{tpu_custom_call.1} parent=1 // pred_region
      %2690 = dma.done [#allocation9], 1024
    $region25: #{tpu_custom_call.1} parent=1 // pred_fallthru
      _
    %2691 = vsyncpa [#allocation8], 1
    %2692 = vsyncpa [#allocation9], 1

</llo_original>
